<compile_context>
chip_gen: v6e
topology: v6e:2x2x1
jax: 0.10.0
libtpu: 0.0.40
codegen_flags: <defaults>
</compile_context>

<pallas_src>
import math
from functools import partial

import jax
import jax.numpy as jnp
from jax import lax
from jax.experimental import pallas as pl
from jax.experimental.pallas import tpu as pltpu


# ----------------------------- in-kernel helpers -----------------------------

def _layer_norm(x, gamma, beta, eps=1e-5):
    mu = jnp.mean(x, axis=-1, keepdims=True)
    var = jnp.mean((x - mu) ** 2, axis=-1, keepdims=True)
    return (x - mu) * lax.rsqrt(var + eps) * gamma + beta


def _new_gelu(x):
    c = math.sqrt(2.0 / math.pi)
    return 0.5 * x * (1.0 + jnp.tanh(c * (x + 0.044715 * x * x * x)))


# ------------------------------- Pallas kernel --------------------------------

def bert_block_kernel(x_ref, mask_ref, g0_ref, b0_ref,
                      wqkv_ref, bqkv_ref, wp_ref, bp_ref, g1_ref, be1_ref,
                      w1_ref, b1_ref, w2_ref, b2_ref, g2_ref, be2_ref,
                      out_ref,
                      q_scr, k_scr, v_scr, y_scr,
                      *, n_heads, fuse_input_ln):
    x = x_ref[0]                                   # (T, C) f32
    if fuse_input_ln:
        # BertEmbeddings LayerNorm fused into the first block (static flag).
        x = _layer_norm(x, g0_ref[...], b0_ref[...])
    T, C = x.shape
    hd = C // n_heads
    scale = jnp.float32(1.0 / math.sqrt(hd))

    # Key-side additive mask bias, computed ONCE (hoisted out of the head loop).
    # Reference does `attn - inf * (1 - mask)`; a finite large-negative keeps the
    # softmax NaN-free while giving identical probabilities (assumes >=1 valid key).
    m = mask_ref[0]                                # (1, T)
    bias = jnp.where(m > 0.0, jnp.float32(0.0), jnp.float32(-1e30))   # (1, T)

    # --- fused QKV projection: one bf16 matmul, f32 accumulation on the MXU ---
    xb = x.astype(jnp.bfloat16)
    qkv = jnp.dot(xb, wqkv_ref[...],
                  preferred_element_type=jnp.float32) + bqkv_ref[...]   # (T, 3C) f32

    # Re-layout into head-major VMEM scratch (static slices / static stores only).
    # 1/sqrt(hd) is folded into q here: (T, hd) multiply instead of (T, T) later.
    for h in range(n_heads):
        q_scr[h] = (qkv[:, h * hd:(h + 1) * hd] * scale).astype(jnp.bfloat16)
        k_scr[h] = qkv[:, C + h * hd:C + (h + 1) * hd].astype(jnp.bfloat16)
        v_scr[h] = qkv[:, 2 * C + h * hd:2 * C + (h + 1) * hd].astype(jnp.bfloat16)

    # --- multi-headed self attention: visible fori_loop over heads ---
    # All matmul operands bf16; softmax math kept in f32.
    def head_body(h, carry):
        qh = q_scr[h]                              # (T, hd) bf16 (pre-scaled)
        kh = k_scr[h]
        vh = v_scr[h]
        s = lax.dot_general(qh, kh, (((1,), (1,)), ((), ())),
                            preferred_element_type=jnp.float32)        # (T, T) f32
        s = s + bias                               # key-side mask
        s = s - jnp.max(s, axis=-1, keepdims=True)
        p = jnp.exp(s)
        # approx reciprocal (EUP): tiny relative error vs exact 1/sum, fine for inference.
        p = p * pl.reciprocal(jnp.sum(p, axis=-1, keepdims=True), approx=True)
        # TODO(synk): attention dropout (p_drop_attn) omitted -- inference mode.
        yh = jnp.dot(p.astype(jnp.bfloat16), vh,
                     preferred_element_type=jnp.float32)                # (T, hd)
        y_scr[h] = yh.astype(jnp.bfloat16)
        return carry

    lax.fori_loop(0, n_heads, head_body, 0)

    # Concatenate heads (static lane-concat) -> ONE lane-dense output projection.
    y = jnp.concatenate([y_scr[j] for j in range(n_heads)], axis=-1)    # (T, C) bf16
    attn = jnp.dot(y, wp_ref[...],
                   preferred_element_type=jnp.float32) + bp_ref[...]    # (T, C) f32

    # --- residual + LayerNorm 1 (hidden dropout omitted -- inference mode) ---
    h1 = _layer_norm(x + attn, g1_ref[...], be1_ref[...])

    # --- position-wise feed forward + residual + LayerNorm 2 ---
    # TODO(synk): at BERT-base on v7x, tile w1/w2 + the (T,F) intermediate along dim_ff.
    ff = jnp.dot(h1.astype(jnp.bfloat16), w1_ref[...],
                 preferred_element_type=jnp.float32) + b1_ref[...]
    ff = _new_gelu(ff)
    ff = jnp.dot(ff.astype(jnp.bfloat16), w2_ref[...],
                 preferred_element_type=jnp.float32) + b2_ref[...]
    out_ref[0] = _layer_norm(h1 + ff, g2_ref[...], be2_ref[...])


# ------------------------------- wrappers -------------------------------------

_BUFFERED_OK = True  # flipped off if this JAX build rejects pipeline_mode/Buffered(1)


def _const_spec(shape, buffered):
    """BlockSpec for a grid-constant (weight/bias) operand."""
    n = len(shape)
    idx = lambda *_args, _n=n: (0,) * _n
    if buffered:
        try:
            # Constant block index => no double-buffering needed; halves weight VMEM.
            return pl.BlockSpec(shape, idx, pipeline_mode=pl.Buffered(1))
        except Exception:  # pragma: no cover - older pallas without pipeline_mode
            pass
    return pl.BlockSpec(shape, idx)


def _pick_vmem_limit():
    """Per-generation VMEM limit: ~48 MiB on v7x (64 MiB phys), ~96 MiB on v5e/v6e."""
    try:
        cap = int(pltpu.get_tpu_info().vmem_capacity_bytes)
        return int(min(96 * 1024 * 1024, cap - cap // 4))
    except Exception:
        return 48 * 1024 * 1024  # conservative (fits every generation)


def bert_block(x, mask3, g0, b0, p, n_heads, fuse_input_ln, vmem_limit):
    B, T, C = x.shape
    Fdim = p["w1"].shape[1]
    hd = C // n_heads

    kernel = partial(bert_block_kernel, n_heads=n_heads, fuse_input_ln=fuse_input_ln)

    # Advisory cost estimate so XLA can overlap the per-layer custom calls.
    flops = 2 * B * T * (4 * C * C + 2 * C * Fdim) + 4 * B * T * T * C
    transcendentals = B * (n_heads * T * T + T * Fdim)
    bytes_accessed = ((2 * B * T * C + B * T) * 4            # activations + mask (f32)
                      + (4 * C * C + 2 * C * Fdim) * 2       # bf16 weights
                      + (9 * C + Fdim) * 4)                  # biases + LN params (f32)
    cost = pl.CostEstimate(flops=int(flops), transcendentals=int(transcendentals),
                           bytes_accessed=int(bytes_accessed))

    def run(buffered):
        in_specs = [
            pl.BlockSpec((1, T, C), lambda b: (b, 0, 0)),     # x
            pl.BlockSpec((1, 1, T), lambda b: (b, 0, 0)),     # mask
            _const_spec((1, C), buffered), _const_spec((1, C), buffered),       # fused input LN
            _const_spec((C, 3 * C), buffered), _const_spec((1, 3 * C), buffered),  # wqkv, bqkv
            _const_spec((C, C), buffered), _const_spec((1, C), buffered),       # wp, bp
            _const_spec((1, C), buffered), _const_spec((1, C), buffered),       # ln1 g, b
            _const_spec((C, Fdim), buffered), _const_spec((1, Fdim), buffered), # fc1
            _const_spec((Fdim, C), buffered), _const_spec((1, C), buffered),    # fc2
            _const_spec((1, C), buffered), _const_spec((1, C), buffered),       # ln2 g, b
        ]
        return pl.pallas_call(
            kernel,
            out_shape=jax.ShapeDtypeStruct((B, T, C), jnp.float32),
            grid_spec=pltpu.PrefetchScalarGridSpec(
                num_scalar_prefetch=0,
                grid=(B,),
                in_specs=in_specs,
                out_specs=pl.BlockSpec((1, T, C), lambda b: (b, 0, 0)),
                scratch_shapes=[
                    pltpu.VMEM((n_heads, T, hd), jnp.bfloat16),   # q (head-major)
                    pltpu.VMEM((n_heads, T, hd), jnp.bfloat16),   # k
                    pltpu.VMEM((n_heads, T, hd), jnp.bfloat16),   # v
                    pltpu.VMEM((n_heads, T, hd), jnp.bfloat16),   # per-head outputs
                ],
            ),
            compiler_params=pltpu.CompilerParams(
                dimension_semantics=("parallel",),    # batch axis: feeds both TCs for B>=2
                vmem_limit_bytes=vmem_limit,
            ),
            cost_estimate=cost,
        )(x, mask3, g0, b0,
          p["wqkv"], p["bqkv"], p["wp"], p["bp"], p["g1"], p["be1"],
          p["w1"], p["b1"], p["w2"], p["b2"], p["g2"], p["be2"])

    global _BUFFERED_OK
    if _BUFFERED_OK:
        try:
            return run(True)
        except Exception:
            _BUFFERED_OK = False   # this build rejects Buffered(1); retry un-buffered
    return run(False)


def transformer_forward(tokens, segment, mask, params, cfg):
    """Full forward: embeddings -> n_layers blocks. tokens/segment/mask: (B, T)."""
    B, T = tokens.shape
    C = params["tok_emb"].shape[1]
    # BertEmbeddings: token + position + segment embedding (gather = plain-JAX glue).
    emb = (params["tok_emb"][tokens]
           + params["pos_emb"][jnp.arange(T)][None, :, :]
           + params["seg_emb"][segment]).astype(jnp.float32)

    if not params["layers"]:
        # No blocks: apply the embedding LayerNorm in plain JAX.
        mu = emb.mean(-1, keepdims=True)
        var = ((emb - mu) ** 2).mean(-1, keepdims=True)
        return (emb - mu) * lax.rsqrt(var + 1e-5) * params["emb_g"] + params["emb_b"]

    mask3 = mask.astype(jnp.float32).reshape(B, 1, T)
    ident_g = jnp.ones((1, C), jnp.float32)
    ident_b = jnp.zeros((1, C), jnp.float32)
    vmem_limit = _pick_vmem_limit()

    # TODO(synk): prefetch layer i+1's weights during layer i via cross-pallas_call
    #             DMA futures (sem + VMEM outputs) to hide the per-layer weight fetch.
    x = emb
    for li, layer_params in enumerate(params["layers"]):
        if li == 0:
            # Embedding LayerNorm fused into the first block kernel.
            x = bert_block(x, mask3, params["emb_g"], params["emb_b"],
                           layer_params, cfg["n_heads"], True, vmem_limit)
        else:
            x = bert_block(x, mask3, ident_g, ident_b,
                           layer_params, cfg["n_heads"], False, vmem_limit)
    return x


# ------------------------------- parameter init --------------------------------

def init_params(key, cfg):
    C, Fdim = cfg["n_embd"], cfg["dim_ff"]
    assert C % cfg["n_heads"] == 0

    def nxt():
        nonlocal key
        key, sub = jax.random.split(key)
        return sub

    def dense(i, o):
        # Matmul weights stored in bf16 (MXU operands); biases / LN params stay f32.
        return (0.02 * jax.random.normal(nxt(), (i, o), jnp.float32)).astype(jnp.bfloat16)

    params = {
        "tok_emb": 0.02 * jax.random.normal(nxt(), (cfg["vocab_size"], C), jnp.float32),
        "pos_emb": 0.02 * jax.random.normal(nxt(), (cfg["max_pos"], C), jnp.float32),
        "seg_emb": 0.02 * jax.random.normal(nxt(), (cfg["n_segments"], C), jnp.float32),
        "emb_g": jnp.ones((1, C), jnp.float32),
        "emb_b": jnp.zeros((1, C), jnp.float32),
        "layers": [],
    }
    for _ in range(cfg["n_layers"]):
        params["layers"].append({
            # Fused QKV weight (q | k | v along the output dim), same math as 3 Linears.
            "wqkv": dense(C, 3 * C), "bqkv": jnp.zeros((1, 3 * C), jnp.float32),
            "wp": dense(C, C), "bp": jnp.zeros((1, C), jnp.float32),
            "g1": jnp.ones((1, C), jnp.float32), "be1": jnp.zeros((1, C), jnp.float32),
            "w1": dense(C, Fdim), "b1": jnp.zeros((1, Fdim), jnp.float32),
            "w2": dense(Fdim, C), "b2": jnp.zeros((1, C), jnp.float32),
            "g2": jnp.ones((1, C), jnp.float32), "be2": jnp.zeros((1, C), jnp.float32),
        })
    return params


# ----------------------------------- main --------------------------------------

if __name__ == "__main__":
    # Toy config (C=32, T=8).  NOTE: at these sizes lane utilization is inherently
    # low (C < 128); a real deployment would fold B*T into the sublane dim and use
    # C/F that are multiples of 128.
    cfg = dict(n_embd=32, n_heads=4, dim_ff=128, n_layers=2,
               vocab_size=50, max_pos=16, n_segments=2)
    B, T = 2, 8

    key = jax.random.PRNGKey(0)
    k_params, k_tok, k_seg = jax.random.split(key, 3)
    params = init_params(k_params, cfg)

    tokens = jax.random.randint(k_tok, (B, T), 0, cfg["vocab_size"], dtype=jnp.int32)
    segment = jax.random.randint(k_seg, (B, T), 0, cfg["n_segments"], dtype=jnp.int32)
    mask = jnp.ones((B, T), jnp.float32).at[1, T - 1].set(0.0)  # mask last token of ex. 1

    out = transformer_forward(tokens, segment, mask, params, cfg)
    out = jax.block_until_ready(out)
    assert out.shape == (B, T, cfg["n_embd"]) and out.dtype == jnp.float32
    assert bool(jnp.all(jnp.isfinite(out)))
    print("KERNEL_OK")
</pallas_src>

<mosaic_0001>
module attributes {stable_mosaic.version = 11 : i64} {
  func.func @bert_block_kernel(%arg0: i32, %arg1: memref<1x8x32xf32, #tpu.memory_space<vmem>>, %arg2: memref<1x1x8xf32, #tpu.memory_space<vmem>>, %arg3: memref<1x32xf32, #tpu.memory_space<vmem>>, %arg4: memref<1x32xf32, #tpu.memory_space<vmem>>, %arg5: memref<32x96xbf16, #tpu.memory_space<vmem>>, %arg6: memref<1x96xf32, #tpu.memory_space<vmem>>, %arg7: memref<32x32xbf16, #tpu.memory_space<vmem>>, %arg8: memref<1x32xf32, #tpu.memory_space<vmem>>, %arg9: memref<1x32xf32, #tpu.memory_space<vmem>>, %arg10: memref<1x32xf32, #tpu.memory_space<vmem>>, %arg11: memref<32x128xbf16, #tpu.memory_space<vmem>>, %arg12: memref<1x128xf32, #tpu.memory_space<vmem>>, %arg13: memref<128x32xbf16, #tpu.memory_space<vmem>>, %arg14: memref<1x32xf32, #tpu.memory_space<vmem>>, %arg15: memref<1x32xf32, #tpu.memory_space<vmem>>, %arg16: memref<1x32xf32, #tpu.memory_space<vmem>>, %arg17: memref<1x8x32xf32, #tpu.memory_space<vmem>>, %arg18: memref<4x8x8xbf16, #tpu.memory_space<vmem>>, %arg19: memref<4x8x8xbf16, #tpu.memory_space<vmem>>, %arg20: memref<4x8x8xbf16, #tpu.memory_space<vmem>>, %arg21: memref<4x8x8xbf16, #tpu.memory_space<vmem>>) attributes {dimension_semantics = [#tpu.dimension_semantics<parallel>], iteration_bounds = array<i64: 2>, scalar_prefetch = 0 : i64, scratch_operands = 4 : i64, tpu.core_type = #tpu.core_type<tc>, window_params = [{transform_indices = @transform_0, window_bounds = array<i64: 1, 8, 32>}, {transform_indices = @transform_1, window_bounds = array<i64: 1, 1, 8>}, {pipeline_mode = #tpu.pipeline_mode<synchronous>, transform_indices = @transform_2, window_bounds = array<i64: 1, 32>}, {pipeline_mode = #tpu.pipeline_mode<synchronous>, transform_indices = @transform_3, window_bounds = array<i64: 1, 32>}, {pipeline_mode = #tpu.pipeline_mode<synchronous>, transform_indices = @transform_4, window_bounds = array<i64: 32, 96>}, {pipeline_mode = #tpu.pipeline_mode<synchronous>, transform_indices = @transform_5, window_bounds = array<i64: 1, 96>}, {pipeline_mode = #tpu.pipeline_mode<synchronous>, transform_indices = @transform_6, window_bounds = array<i64: 32, 32>}, {pipeline_mode = #tpu.pipeline_mode<synchronous>, transform_indices = @transform_7, window_bounds = array<i64: 1, 32>}, {pipeline_mode = #tpu.pipeline_mode<synchronous>, transform_indices = @transform_8, window_bounds = array<i64: 1, 32>}, {pipeline_mode = #tpu.pipeline_mode<synchronous>, transform_indices = @transform_9, window_bounds = array<i64: 1, 32>}, {pipeline_mode = #tpu.pipeline_mode<synchronous>, transform_indices = @transform_10, window_bounds = array<i64: 32, 128>}, {pipeline_mode = #tpu.pipeline_mode<synchronous>, transform_indices = @transform_11, window_bounds = array<i64: 1, 128>}, {pipeline_mode = #tpu.pipeline_mode<synchronous>, transform_indices = @transform_12, window_bounds = array<i64: 128, 32>}, {pipeline_mode = #tpu.pipeline_mode<synchronous>, transform_indices = @transform_13, window_bounds = array<i64: 1, 32>}, {pipeline_mode = #tpu.pipeline_mode<synchronous>, transform_indices = @transform_14, window_bounds = array<i64: 1, 32>}, {pipeline_mode = #tpu.pipeline_mode<synchronous>, transform_indices = @transform_15, window_bounds = array<i64: 1, 32>}, {transform_indices = @transform_16, window_bounds = array<i64: 1, 8, 32>}]} {
    %c0 = arith.constant 0 : index
    %c0_0 = arith.constant 0 : index
    %c0_1 = arith.constant 0 : index
    %0 = vector.load %arg1[%c0, %c0_0, %c0_1] : memref<1x8x32xf32, #tpu.memory_space<vmem>>, vector<1x8x32xf32>
    %1 = vector.shape_cast %0 : vector<1x8x32xf32> to vector<8x32xf32>
    %c0_2 = arith.constant 0 : index
    %c0_3 = arith.constant 0 : index
    %2 = vector.load %arg3[%c0_2, %c0_3] : memref<1x32xf32, #tpu.memory_space<vmem>>, vector<1x32xf32>
    %c0_4 = arith.constant 0 : index
    %c0_5 = arith.constant 0 : index
    %3 = vector.load %arg4[%c0_4, %c0_5] : memref<1x32xf32, #tpu.memory_space<vmem>>, vector<1x32xf32>
    %cst = arith.constant dense<0.000000e+00> : vector<8xf32>
    %4 = vector.multi_reduction <add>, %1, %cst [1] : vector<8x32xf32> to vector<8xf32>
    %5 = vector.shape_cast %4 : vector<8xf32> to vector<8x1xf32>
    %cst_6 = arith.constant 3.200000e+01 : f32
    %6 = vector.broadcast %cst_6 : f32 to vector<8x1xf32>
    %7 = arith.divf %5, %6 : vector<8x1xf32>
    %8 = vector.broadcast %7 : vector<8x1xf32> to vector<8x32xf32>
    %9 = arith.subf %1, %8 : vector<8x32xf32>
    %10 = arith.mulf %9, %9 : vector<8x32xf32>
    %cst_7 = arith.constant dense<0.000000e+00> : vector<8xf32>
    %11 = vector.multi_reduction <add>, %10, %cst_7 [1] : vector<8x32xf32> to vector<8xf32>
    %12 = vector.shape_cast %11 : vector<8xf32> to vector<8x1xf32>
    %cst_8 = arith.constant 3.200000e+01 : f32
    %13 = vector.broadcast %cst_8 : f32 to vector<8x1xf32>
    %14 = arith.divf %12, %13 : vector<8x1xf32>
    %15 = vector.broadcast %7 : vector<8x1xf32> to vector<8x32xf32>
    %16 = arith.subf %1, %15 : vector<8x32xf32>
    %cst_9 = arith.constant 9.99999974E-6 : f32
    %17 = vector.broadcast %cst_9 : f32 to vector<8x1xf32>
    %18 = arith.addf %14, %17 : vector<8x1xf32>
    %19 = math.rsqrt %18 : vector<8x1xf32>
    %20 = vector.broadcast %19 : vector<8x1xf32> to vector<8x32xf32>
    %21 = arith.mulf %16, %20 : vector<8x32xf32>
    %22 = vector.broadcast %2 : vector<1x32xf32> to vector<8x32xf32>
    %23 = arith.mulf %21, %22 : vector<8x32xf32>
    %24 = vector.broadcast %3 : vector<1x32xf32> to vector<8x32xf32>
    %25 = arith.addf %23, %24 : vector<8x32xf32>
    %c0_10 = arith.constant 0 : index
    %c0_11 = arith.constant 0 : index
    %c0_12 = arith.constant 0 : index
    %26 = vector.load %arg2[%c0_10, %c0_11, %c0_12] : memref<1x1x8xf32, #tpu.memory_space<vmem>>, vector<1x1x8xf32>
    %27 = vector.shape_cast %26 : vector<1x1x8xf32> to vector<1x8xf32>
    %cst_13 = arith.constant 0.000000e+00 : f32
    %28 = vector.broadcast %cst_13 : f32 to vector<1x8xf32>
    %29 = arith.cmpf ogt, %27, %28 : vector<1x8xf32>
    %cst_14 = arith.constant 0.000000e+00 : f32
    %cst_15 = arith.constant -1.000000e+30 : f32
    %30 = vector.broadcast %cst_14 : f32 to vector<1x8xf32>
    %31 = vector.broadcast %cst_15 : f32 to vector<1x8xf32>
    %32 = arith.select %29, %30, %31 : vector<1x8xi1>, vector<1x8xf32>
    %33 = arith.truncf %25 : vector<8x32xf32> to vector<8x32xbf16>
    %c0_16 = arith.constant 0 : index
    %c0_17 = arith.constant 0 : index
    %34 = vector.load %arg5[%c0_16, %c0_17] : memref<32x96xbf16, #tpu.memory_space<vmem>>, vector<32x96xbf16>
    %cst_18 = arith.constant dense<0.000000e+00> : vector<8x96xf32>
    %35 = tpu.matmul %33, %34, %cst_18 {dimension_numbers = #tpu.dot_dimension_numbers<[1], [0], [0], [1], [0, 0, 1, 1], [], []>} : vector<8x32xbf16>, vector<32x96xbf16>, vector<8x96xf32> -> vector<8x96xf32>
    %c0_19 = arith.constant 0 : index
    %c0_20 = arith.constant 0 : index
    %36 = vector.load %arg6[%c0_19, %c0_20] : memref<1x96xf32, #tpu.memory_space<vmem>>, vector<1x96xf32>
    %37 = vector.broadcast %36 : vector<1x96xf32> to vector<8x96xf32>
    %38 = arith.addf %35, %37 : vector<8x96xf32>
    %39 = vector.extract_strided_slice %38 {offsets = [0, 0], sizes = [8, 8], strides = [1, 1]} : vector<8x96xf32> to vector<8x8xf32>
    %cst_21 = arith.constant 0.353553385 : f32
    %40 = vector.broadcast %cst_21 : f32 to vector<8x8xf32>
    %41 = arith.mulf %39, %40 : vector<8x8xf32>
    %42 = arith.truncf %41 : vector<8x8xf32> to vector<8x8xbf16>
    %c0_22 = arith.constant 0 : index
    %c0_23 = arith.constant 0 : index
    %c0_24 = arith.constant 0 : index
    %43 = vector.load %arg18[%c0_22, %c0_23, %c0_24] : memref<4x8x8xbf16, #tpu.memory_space<vmem>>, vector<1x8x8xbf16>
    %44 = vector.shape_cast %43 : vector<1x8x8xbf16> to vector<8x8xbf16>
    %45 = vector.shape_cast %42 : vector<8x8xbf16> to vector<1x8x8xbf16>
    tpu.vector_store %arg18[%c0_22, %c0_23, %c0_24], %45 {strides = array<i32>} : memref<4x8x8xbf16, #tpu.memory_space<vmem>>, vector<1x8x8xbf16>,
    %46 = vector.extract_strided_slice %38 {offsets = [0, 32], sizes = [8, 8], strides = [1, 1]} : vector<8x96xf32> to vector<8x8xf32>
    %47 = arith.truncf %46 : vector<8x8xf32> to vector<8x8xbf16>
    %c0_25 = arith.constant 0 : index
    %c0_26 = arith.constant 0 : index
    %c0_27 = arith.constant 0 : index
    %48 = vector.load %arg19[%c0_25, %c0_26, %c0_27] : memref<4x8x8xbf16, #tpu.memory_space<vmem>>, vector<1x8x8xbf16>
    %49 = vector.shape_cast %48 : vector<1x8x8xbf16> to vector<8x8xbf16>
    %50 = vector.shape_cast %47 : vector<8x8xbf16> to vector<1x8x8xbf16>
    tpu.vector_store %arg19[%c0_25, %c0_26, %c0_27], %50 {strides = array<i32>} : memref<4x8x8xbf16, #tpu.memory_space<vmem>>, vector<1x8x8xbf16>,
    %51 = vector.extract_strided_slice %38 {offsets = [0, 64], sizes = [8, 8], strides = [1, 1]} : vector<8x96xf32> to vector<8x8xf32>
    %52 = arith.truncf %51 : vector<8x8xf32> to vector<8x8xbf16>
    %c0_28 = arith.constant 0 : index
    %c0_29 = arith.constant 0 : index
    %c0_30 = arith.constant 0 : index
    %53 = vector.load %arg20[%c0_28, %c0_29, %c0_30] : memref<4x8x8xbf16, #tpu.memory_space<vmem>>, vector<1x8x8xbf16>
    %54 = vector.shape_cast %53 : vector<1x8x8xbf16> to vector<8x8xbf16>
    %55 = vector.shape_cast %52 : vector<8x8xbf16> to vector<1x8x8xbf16>
    tpu.vector_store %arg20[%c0_28, %c0_29, %c0_30], %55 {strides = array<i32>} : memref<4x8x8xbf16, #tpu.memory_space<vmem>>, vector<1x8x8xbf16>,
    %56 = vector.extract_strided_slice %38 {offsets = [0, 8], sizes = [8, 8], strides = [1, 1]} : vector<8x96xf32> to vector<8x8xf32>
    %cst_31 = arith.constant 0.353553385 : f32
    %57 = vector.broadcast %cst_31 : f32 to vector<8x8xf32>
    %58 = arith.mulf %56, %57 : vector<8x8xf32>
    %59 = arith.truncf %58 : vector<8x8xf32> to vector<8x8xbf16>
    %c1 = arith.constant 1 : index
    %c0_32 = arith.constant 0 : index
    %c0_33 = arith.constant 0 : index
    %60 = vector.load %arg18[%c1, %c0_32, %c0_33] : memref<4x8x8xbf16, #tpu.memory_space<vmem>>, vector<1x8x8xbf16>
    %61 = vector.shape_cast %60 : vector<1x8x8xbf16> to vector<8x8xbf16>
    %62 = vector.shape_cast %59 : vector<8x8xbf16> to vector<1x8x8xbf16>
    tpu.vector_store %arg18[%c1, %c0_32, %c0_33], %62 {strides = array<i32>} : memref<4x8x8xbf16, #tpu.memory_space<vmem>>, vector<1x8x8xbf16>,
    %63 = vector.extract_strided_slice %38 {offsets = [0, 40], sizes = [8, 8], strides = [1, 1]} : vector<8x96xf32> to vector<8x8xf32>
    %64 = arith.truncf %63 : vector<8x8xf32> to vector<8x8xbf16>
    %c1_34 = arith.constant 1 : index
    %c0_35 = arith.constant 0 : index
    %c0_36 = arith.constant 0 : index
    %65 = vector.load %arg19[%c1_34, %c0_35, %c0_36] : memref<4x8x8xbf16, #tpu.memory_space<vmem>>, vector<1x8x8xbf16>
    %66 = vector.shape_cast %65 : vector<1x8x8xbf16> to vector<8x8xbf16>
    %67 = vector.shape_cast %64 : vector<8x8xbf16> to vector<1x8x8xbf16>
    tpu.vector_store %arg19[%c1_34, %c0_35, %c0_36], %67 {strides = array<i32>} : memref<4x8x8xbf16, #tpu.memory_space<vmem>>, vector<1x8x8xbf16>,
    %68 = vector.extract_strided_slice %38 {offsets = [0, 72], sizes = [8, 8], strides = [1, 1]} : vector<8x96xf32> to vector<8x8xf32>
    %69 = arith.truncf %68 : vector<8x8xf32> to vector<8x8xbf16>
    %c1_37 = arith.constant 1 : index
    %c0_38 = arith.constant 0 : index
    %c0_39 = arith.constant 0 : index
    %70 = vector.load %arg20[%c1_37, %c0_38, %c0_39] : memref<4x8x8xbf16, #tpu.memory_space<vmem>>, vector<1x8x8xbf16>
    %71 = vector.shape_cast %70 : vector<1x8x8xbf16> to vector<8x8xbf16>
    %72 = vector.shape_cast %69 : vector<8x8xbf16> to vector<1x8x8xbf16>
    tpu.vector_store %arg20[%c1_37, %c0_38, %c0_39], %72 {strides = array<i32>} : memref<4x8x8xbf16, #tpu.memory_space<vmem>>, vector<1x8x8xbf16>,
    %73 = vector.extract_strided_slice %38 {offsets = [0, 16], sizes = [8, 8], strides = [1, 1]} : vector<8x96xf32> to vector<8x8xf32>
    %cst_40 = arith.constant 0.353553385 : f32
    %74 = vector.broadcast %cst_40 : f32 to vector<8x8xf32>
    %75 = arith.mulf %73, %74 : vector<8x8xf32>
    %76 = arith.truncf %75 : vector<8x8xf32> to vector<8x8xbf16>
    %c2 = arith.constant 2 : index
    %c0_41 = arith.constant 0 : index
    %c0_42 = arith.constant 0 : index
    %77 = vector.load %arg18[%c2, %c0_41, %c0_42] : memref<4x8x8xbf16, #tpu.memory_space<vmem>>, vector<1x8x8xbf16>
    %78 = vector.shape_cast %77 : vector<1x8x8xbf16> to vector<8x8xbf16>
    %79 = vector.shape_cast %76 : vector<8x8xbf16> to vector<1x8x8xbf16>
    tpu.vector_store %arg18[%c2, %c0_41, %c0_42], %79 {strides = array<i32>} : memref<4x8x8xbf16, #tpu.memory_space<vmem>>, vector<1x8x8xbf16>,
    %80 = vector.extract_strided_slice %38 {offsets = [0, 48], sizes = [8, 8], strides = [1, 1]} : vector<8x96xf32> to vector<8x8xf32>
    %81 = arith.truncf %80 : vector<8x8xf32> to vector<8x8xbf16>
    %c2_43 = arith.constant 2 : index
    %c0_44 = arith.constant 0 : index
    %c0_45 = arith.constant 0 : index
    %82 = vector.load %arg19[%c2_43, %c0_44, %c0_45] : memref<4x8x8xbf16, #tpu.memory_space<vmem>>, vector<1x8x8xbf16>
    %83 = vector.shape_cast %82 : vector<1x8x8xbf16> to vector<8x8xbf16>
    %84 = vector.shape_cast %81 : vector<8x8xbf16> to vector<1x8x8xbf16>
    tpu.vector_store %arg19[%c2_43, %c0_44, %c0_45], %84 {strides = array<i32>} : memref<4x8x8xbf16, #tpu.memory_space<vmem>>, vector<1x8x8xbf16>,
    %85 = vector.extract_strided_slice %38 {offsets = [0, 80], sizes = [8, 8], strides = [1, 1]} : vector<8x96xf32> to vector<8x8xf32>
    %86 = arith.truncf %85 : vector<8x8xf32> to vector<8x8xbf16>
    %c2_46 = arith.constant 2 : index
    %c0_47 = arith.constant 0 : index
    %c0_48 = arith.constant 0 : index
    %87 = vector.load %arg20[%c2_46, %c0_47, %c0_48] : memref<4x8x8xbf16, #tpu.memory_space<vmem>>, vector<1x8x8xbf16>
    %88 = vector.shape_cast %87 : vector<1x8x8xbf16> to vector<8x8xbf16>
    %89 = vector.shape_cast %86 : vector<8x8xbf16> to vector<1x8x8xbf16>
    tpu.vector_store %arg20[%c2_46, %c0_47, %c0_48], %89 {strides = array<i32>} : memref<4x8x8xbf16, #tpu.memory_space<vmem>>, vector<1x8x8xbf16>,
    %90 = vector.extract_strided_slice %38 {offsets = [0, 24], sizes = [8, 8], strides = [1, 1]} : vector<8x96xf32> to vector<8x8xf32>
    %cst_49 = arith.constant 0.353553385 : f32
    %91 = vector.broadcast %cst_49 : f32 to vector<8x8xf32>
    %92 = arith.mulf %90, %91 : vector<8x8xf32>
    %93 = arith.truncf %92 : vector<8x8xf32> to vector<8x8xbf16>
    %c3 = arith.constant 3 : index
    %c0_50 = arith.constant 0 : index
    %c0_51 = arith.constant 0 : index
    %94 = vector.load %arg18[%c3, %c0_50, %c0_51] : memref<4x8x8xbf16, #tpu.memory_space<vmem>>, vector<1x8x8xbf16>
    %95 = vector.shape_cast %94 : vector<1x8x8xbf16> to vector<8x8xbf16>
    %96 = vector.shape_cast %93 : vector<8x8xbf16> to vector<1x8x8xbf16>
    tpu.vector_store %arg18[%c3, %c0_50, %c0_51], %96 {strides = array<i32>} : memref<4x8x8xbf16, #tpu.memory_space<vmem>>, vector<1x8x8xbf16>,
    %97 = vector.extract_strided_slice %38 {offsets = [0, 56], sizes = [8, 8], strides = [1, 1]} : vector<8x96xf32> to vector<8x8xf32>
    %98 = arith.truncf %97 : vector<8x8xf32> to vector<8x8xbf16>
    %c3_52 = arith.constant 3 : index
    %c0_53 = arith.constant 0 : index
    %c0_54 = arith.constant 0 : index
    %99 = vector.load %arg19[%c3_52, %c0_53, %c0_54] : memref<4x8x8xbf16, #tpu.memory_space<vmem>>, vector<1x8x8xbf16>
    %100 = vector.shape_cast %99 : vector<1x8x8xbf16> to vector<8x8xbf16>
    %101 = vector.shape_cast %98 : vector<8x8xbf16> to vector<1x8x8xbf16>
    tpu.vector_store %arg19[%c3_52, %c0_53, %c0_54], %101 {strides = array<i32>} : memref<4x8x8xbf16, #tpu.memory_space<vmem>>, vector<1x8x8xbf16>,
    %102 = vector.extract_strided_slice %38 {offsets = [0, 88], sizes = [8, 8], strides = [1, 1]} : vector<8x96xf32> to vector<8x8xf32>
    %103 = arith.truncf %102 : vector<8x8xf32> to vector<8x8xbf16>
    %c3_55 = arith.constant 3 : index
    %c0_56 = arith.constant 0 : index
    %c0_57 = arith.constant 0 : index
    %104 = vector.load %arg20[%c3_55, %c0_56, %c0_57] : memref<4x8x8xbf16, #tpu.memory_space<vmem>>, vector<1x8x8xbf16>
    %105 = vector.shape_cast %104 : vector<1x8x8xbf16> to vector<8x8xbf16>
    %106 = vector.shape_cast %103 : vector<8x8xbf16> to vector<1x8x8xbf16>
    tpu.vector_store %arg20[%c3_55, %c0_56, %c0_57], %106 {strides = array<i32>} : memref<4x8x8xbf16, #tpu.memory_space<vmem>>, vector<1x8x8xbf16>,
    %c0_i32 = arith.constant 0 : i32
    %c4_i32 = arith.constant 4 : i32
    %107 = arith.addi %c0_i32, %c4_i32 : i32
    %c1_i32 = arith.constant 1 : i32
    scf.for %arg22 = %c0_i32 to %107 step %c1_i32  : i32 {
      %200 = arith.index_cast %arg22 : i32 to index
      %c0_111 = arith.constant 0 : index
      %c0_112 = arith.constant 0 : index
      %201 = vector.load %arg18[%200, %c0_111, %c0_112] : memref<4x8x8xbf16, #tpu.memory_space<vmem>>, vector<1x8x8xbf16>
      %202 = vector.shape_cast %201 : vector<1x8x8xbf16> to vector<8x8xbf16>
      %203 = arith.index_cast %arg22 : i32 to index
      %c0_113 = arith.constant 0 : index
      %c0_114 = arith.constant 0 : index
      %204 = vector.load %arg19[%203, %c0_113, %c0_114] : memref<4x8x8xbf16, #tpu.memory_space<vmem>>, vector<1x8x8xbf16>
      %205 = vector.shape_cast %204 : vector<1x8x8xbf16> to vector<8x8xbf16>
      %206 = arith.index_cast %arg22 : i32 to index
      %c0_115 = arith.constant 0 : index
      %c0_116 = arith.constant 0 : index
      %207 = vector.load %arg20[%206, %c0_115, %c0_116] : memref<4x8x8xbf16, #tpu.memory_space<vmem>>, vector<1x8x8xbf16>
      %208 = vector.shape_cast %207 : vector<1x8x8xbf16> to vector<8x8xbf16>
      %cst_117 = arith.constant dense<0.000000e+00> : vector<8x8xf32>
      %209 = tpu.matmul %202, %205, %cst_117 {dimension_numbers = #tpu.dot_dimension_numbers<[1], [1], [0], [0], [0, 0, 1, 0], [], []>} : vector<8x8xbf16>, vector<8x8xbf16>, vector<8x8xf32> -> vector<8x8xf32>
      %210 = vector.broadcast %32 : vector<1x8xf32> to vector<8x8xf32>
      %211 = arith.addf %209, %210 : vector<8x8xf32>
      %cst_118 = arith.constant dense<0xFF800000> : vector<8xf32>
      %212 = vector.multi_reduction <maximumf>, %211, %cst_118 [1] : vector<8x8xf32> to vector<8xf32>
      %213 = vector.shape_cast %212 : vector<8xf32> to vector<8x1xf32>
      %214 = vector.broadcast %213 : vector<8x1xf32> to vector<8x8xf32>
      %215 = arith.subf %211, %214 : vector<8x8xf32>
      %216 = math.exp %215 : vector<8x8xf32>
      %cst_119 = arith.constant dense<0.000000e+00> : vector<8xf32>
      %217 = vector.multi_reduction <add>, %216, %cst_119 [1] : vector<8x8xf32> to vector<8xf32>
      %218 = vector.shape_cast %217 : vector<8xf32> to vector<8x1xf32>
      %219 = tpu.reciprocal %218 {approx = true} : vector<8x1xf32> -> vector<8x1xf32>
      %220 = vector.broadcast %219 : vector<8x1xf32> to vector<8x8xf32>
      %221 = arith.mulf %216, %220 : vector<8x8xf32>
      %222 = arith.truncf %221 : vector<8x8xf32> to vector<8x8xbf16>
      %cst_120 = arith.constant dense<0.000000e+00> : vector<8x8xf32>
      %223 = tpu.matmul %222, %208, %cst_120 {dimension_numbers = #tpu.dot_dimension_numbers<[1], [0], [0], [1], [0, 0, 1, 1], [], []>} : vector<8x8xbf16>, vector<8x8xbf16>, vector<8x8xf32> -> vector<8x8xf32>
      %224 = arith.truncf %223 : vector<8x8xf32> to vector<8x8xbf16>
      %225 = arith.index_cast %arg22 : i32 to index
      %c0_121 = arith.constant 0 : index
      %c0_122 = arith.constant 0 : index
      %226 = vector.load %arg21[%225, %c0_121, %c0_122] : memref<4x8x8xbf16, #tpu.memory_space<vmem>>, vector<1x8x8xbf16>
      %227 = vector.shape_cast %226 : vector<1x8x8xbf16> to vector<8x8xbf16>
      %228 = vector.shape_cast %224 : vector<8x8xbf16> to vector<1x8x8xbf16>
      tpu.vector_store %arg21[%225, %c0_121, %c0_122], %228 {strides = array<i32>} : memref<4x8x8xbf16, #tpu.memory_space<vmem>>, vector<1x8x8xbf16>,
    }
    %c4_i32_58 = arith.constant 4 : i32
    %c0_59 = arith.constant 0 : index
    %c0_60 = arith.constant 0 : index
    %c0_61 = arith.constant 0 : index
    %108 = vector.load %arg21[%c0_59, %c0_60, %c0_61] : memref<4x8x8xbf16, #tpu.memory_space<vmem>>, vector<1x8x8xbf16>
    %109 = vector.shape_cast %108 : vector<1x8x8xbf16> to vector<8x8xbf16>
    %c1_62 = arith.constant 1 : index
    %c0_63 = arith.constant 0 : index
    %c0_64 = arith.constant 0 : index
    %110 = vector.load %arg21[%c1_62, %c0_63, %c0_64] : memref<4x8x8xbf16, #tpu.memory_space<vmem>>, vector<1x8x8xbf16>
    %111 = vector.shape_cast %110 : vector<1x8x8xbf16> to vector<8x8xbf16>
    %c2_65 = arith.constant 2 : index
    %c0_66 = arith.constant 0 : index
    %c0_67 = arith.constant 0 : index
    %112 = vector.load %arg21[%c2_65, %c0_66, %c0_67] : memref<4x8x8xbf16, #tpu.memory_space<vmem>>, vector<1x8x8xbf16>
    %113 = vector.shape_cast %112 : vector<1x8x8xbf16> to vector<8x8xbf16>
    %c3_68 = arith.constant 3 : index
    %c0_69 = arith.constant 0 : index
    %c0_70 = arith.constant 0 : index
    %114 = vector.load %arg21[%c3_68, %c0_69, %c0_70] : memref<4x8x8xbf16, #tpu.memory_space<vmem>>, vector<1x8x8xbf16>
    %115 = vector.shape_cast %114 : vector<1x8x8xbf16> to vector<8x8xbf16>
    %116 = tpu.concatenate %109, %111, %113, %115 in 1 : vector<8x8xbf16>, vector<8x8xbf16>, vector<8x8xbf16>, vector<8x8xbf16> -> vector<8x32xbf16>
    %c0_71 = arith.constant 0 : index
    %c0_72 = arith.constant 0 : index
    %117 = vector.load %arg7[%c0_71, %c0_72] : memref<32x32xbf16, #tpu.memory_space<vmem>>, vector<32x32xbf16>
    %cst_73 = arith.constant dense<0.000000e+00> : vector<8x32xf32>
    %118 = tpu.matmul %116, %117, %cst_73 {dimension_numbers = #tpu.dot_dimension_numbers<[1], [0], [0], [1], [0, 0, 1, 1], [], []>} : vector<8x32xbf16>, vector<32x32xbf16>, vector<8x32xf32> -> vector<8x32xf32>
    %c0_74 = arith.constant 0 : index
    %c0_75 = arith.constant 0 : index
    %119 = vector.load %arg8[%c0_74, %c0_75] : memref<1x32xf32, #tpu.memory_space<vmem>>, vector<1x32xf32>
    %120 = vector.broadcast %119 : vector<1x32xf32> to vector<8x32xf32>
    %121 = arith.addf %118, %120 : vector<8x32xf32>
    %122 = arith.addf %25, %121 : vector<8x32xf32>
    %c0_76 = arith.constant 0 : index
    %c0_77 = arith.constant 0 : index
    %123 = vector.load %arg9[%c0_76, %c0_77] : memref<1x32xf32, #tpu.memory_space<vmem>>, vector<1x32xf32>
    %c0_78 = arith.constant 0 : index
    %c0_79 = arith.constant 0 : index
    %124 = vector.load %arg10[%c0_78, %c0_79] : memref<1x32xf32, #tpu.memory_space<vmem>>, vector<1x32xf32>
    %cst_80 = arith.constant dense<0.000000e+00> : vector<8xf32>
    %125 = vector.multi_reduction <add>, %122, %cst_80 [1] : vector<8x32xf32> to vector<8xf32>
    %126 = vector.shape_cast %125 : vector<8xf32> to vector<8x1xf32>
    %cst_81 = arith.constant 3.200000e+01 : f32
    %127 = vector.broadcast %cst_81 : f32 to vector<8x1xf32>
    %128 = arith.divf %126, %127 : vector<8x1xf32>
    %129 = vector.broadcast %128 : vector<8x1xf32> to vector<8x32xf32>
    %130 = arith.subf %122, %129 : vector<8x32xf32>
    %131 = arith.mulf %130, %130 : vector<8x32xf32>
    %cst_82 = arith.constant dense<0.000000e+00> : vector<8xf32>
    %132 = vector.multi_reduction <add>, %131, %cst_82 [1] : vector<8x32xf32> to vector<8xf32>
    %133 = vector.shape_cast %132 : vector<8xf32> to vector<8x1xf32>
    %cst_83 = arith.constant 3.200000e+01 : f32
    %134 = vector.broadcast %cst_83 : f32 to vector<8x1xf32>
    %135 = arith.divf %133, %134 : vector<8x1xf32>
    %136 = vector.broadcast %128 : vector<8x1xf32> to vector<8x32xf32>
    %137 = arith.subf %122, %136 : vector<8x32xf32>
    %cst_84 = arith.constant 9.99999974E-6 : f32
    %138 = vector.broadcast %cst_84 : f32 to vector<8x1xf32>
    %139 = arith.addf %135, %138 : vector<8x1xf32>
    %140 = math.rsqrt %139 : vector<8x1xf32>
    %141 = vector.broadcast %140 : vector<8x1xf32> to vector<8x32xf32>
    %142 = arith.mulf %137, %141 : vector<8x32xf32>
    %143 = vector.broadcast %123 : vector<1x32xf32> to vector<8x32xf32>
    %144 = arith.mulf %142, %143 : vector<8x32xf32>
    %145 = vector.broadcast %124 : vector<1x32xf32> to vector<8x32xf32>
    %146 = arith.addf %144, %145 : vector<8x32xf32>
    %147 = arith.truncf %146 : vector<8x32xf32> to vector<8x32xbf16>
    %c0_85 = arith.constant 0 : index
    %c0_86 = arith.constant 0 : index
    %148 = vector.load %arg11[%c0_85, %c0_86] : memref<32x128xbf16, #tpu.memory_space<vmem>>, vector<32x128xbf16>
    %cst_87 = arith.constant dense<0.000000e+00> : vector<8x128xf32>
    %149 = tpu.matmul %147, %148, %cst_87 {dimension_numbers = #tpu.dot_dimension_numbers<[1], [0], [0], [1], [0, 0, 1, 1], [], []>} : vector<8x32xbf16>, vector<32x128xbf16>, vector<8x128xf32> -> vector<8x128xf32>
    %c0_88 = arith.constant 0 : index
    %c0_89 = arith.constant 0 : index
    %150 = vector.load %arg12[%c0_88, %c0_89] : memref<1x128xf32, #tpu.memory_space<vmem>>, vector<1x128xf32>
    %151 = vector.broadcast %150 : vector<1x128xf32> to vector<8x128xf32>
    %152 = arith.addf %149, %151 : vector<8x128xf32>
    %cst_90 = arith.constant 5.000000e-01 : f32
    %153 = vector.broadcast %cst_90 : f32 to vector<8x128xf32>
    %154 = arith.mulf %153, %152 : vector<8x128xf32>
    %cst_91 = arith.constant 4.471500e-02 : f32
    %155 = vector.broadcast %cst_91 : f32 to vector<8x128xf32>
    %156 = arith.mulf %155, %152 : vector<8x128xf32>
    %157 = arith.mulf %156, %152 : vector<8x128xf32>
    %158 = arith.mulf %157, %152 : vector<8x128xf32>
    %159 = arith.addf %152, %158 : vector<8x128xf32>
    %cst_92 = arith.constant 0.797884583 : f32
    %160 = vector.broadcast %cst_92 : f32 to vector<8x128xf32>
    %161 = arith.mulf %160, %159 : vector<8x128xf32>
    %162 = math.tanh %161 : vector<8x128xf32>
    %cst_93 = arith.constant 1.000000e+00 : f32
    %163 = vector.broadcast %cst_93 : f32 to vector<8x128xf32>
    %164 = arith.addf %163, %162 : vector<8x128xf32>
    %165 = arith.mulf %154, %164 : vector<8x128xf32>
    %166 = arith.truncf %165 : vector<8x128xf32> to vector<8x128xbf16>
    %c0_94 = arith.constant 0 : index
    %c0_95 = arith.constant 0 : index
    %167 = vector.load %arg13[%c0_94, %c0_95] : memref<128x32xbf16, #tpu.memory_space<vmem>>, vector<128x32xbf16>
    %cst_96 = arith.constant dense<0.000000e+00> : vector<8x32xf32>
    %168 = tpu.matmul %166, %167, %cst_96 {dimension_numbers = #tpu.dot_dimension_numbers<[1], [0], [0], [1], [0, 0, 1, 1], [], []>} : vector<8x128xbf16>, vector<128x32xbf16>, vector<8x32xf32> -> vector<8x32xf32>
    %c0_97 = arith.constant 0 : index
    %c0_98 = arith.constant 0 : index
    %169 = vector.load %arg14[%c0_97, %c0_98] : memref<1x32xf32, #tpu.memory_space<vmem>>, vector<1x32xf32>
    %170 = vector.broadcast %169 : vector<1x32xf32> to vector<8x32xf32>
    %171 = arith.addf %168, %170 : vector<8x32xf32>
    %172 = arith.addf %146, %171 : vector<8x32xf32>
    %c0_99 = arith.constant 0 : index
    %c0_100 = arith.constant 0 : index
    %173 = vector.load %arg15[%c0_99, %c0_100] : memref<1x32xf32, #tpu.memory_space<vmem>>, vector<1x32xf32>
    %c0_101 = arith.constant 0 : index
    %c0_102 = arith.constant 0 : index
    %174 = vector.load %arg16[%c0_101, %c0_102] : memref<1x32xf32, #tpu.memory_space<vmem>>, vector<1x32xf32>
    %cst_103 = arith.constant dense<0.000000e+00> : vector<8xf32>
    %175 = vector.multi_reduction <add>, %172, %cst_103 [1] : vector<8x32xf32> to vector<8xf32>
    %176 = vector.shape_cast %175 : vector<8xf32> to vector<8x1xf32>
    %cst_104 = arith.constant 3.200000e+01 : f32
    %177 = vector.broadcast %cst_104 : f32 to vector<8x1xf32>
    %178 = arith.divf %176, %177 : vector<8x1xf32>
    %179 = vector.broadcast %178 : vector<8x1xf32> to vector<8x32xf32>
    %180 = arith.subf %172, %179 : vector<8x32xf32>
    %181 = arith.mulf %180, %180 : vector<8x32xf32>
    %cst_105 = arith.constant dense<0.000000e+00> : vector<8xf32>
    %182 = vector.multi_reduction <add>, %181, %cst_105 [1] : vector<8x32xf32> to vector<8xf32>
    %183 = vector.shape_cast %182 : vector<8xf32> to vector<8x1xf32>
    %cst_106 = arith.constant 3.200000e+01 : f32
    %184 = vector.broadcast %cst_106 : f32 to vector<8x1xf32>
    %185 = arith.divf %183, %184 : vector<8x1xf32>
    %186 = vector.broadcast %178 : vector<8x1xf32> to vector<8x32xf32>
    %187 = arith.subf %172, %186 : vector<8x32xf32>
    %cst_107 = arith.constant 9.99999974E-6 : f32
    %188 = vector.broadcast %cst_107 : f32 to vector<8x1xf32>
    %189 = arith.addf %185, %188 : vector<8x1xf32>
    %190 = math.rsqrt %189 : vector<8x1xf32>
    %191 = vector.broadcast %190 : vector<8x1xf32> to vector<8x32xf32>
    %192 = arith.mulf %187, %191 : vector<8x32xf32>
    %193 = vector.broadcast %173 : vector<1x32xf32> to vector<8x32xf32>
    %194 = arith.mulf %192, %193 : vector<8x32xf32>
    %195 = vector.broadcast %174 : vector<1x32xf32> to vector<8x32xf32>
    %196 = arith.addf %194, %195 : vector<8x32xf32>
    %c0_108 = arith.constant 0 : index
    %c0_109 = arith.constant 0 : index
    %c0_110 = arith.constant 0 : index
    %197 = vector.load %arg17[%c0_108, %c0_109, %c0_110] : memref<1x8x32xf32, #tpu.memory_space<vmem>>, vector<1x8x32xf32>
    %198 = vector.shape_cast %197 : vector<1x8x32xf32> to vector<8x32xf32>
    %199 = vector.shape_cast %196 : vector<8x32xf32> to vector<1x8x32xf32>
    tpu.vector_store %arg17[%c0_108, %c0_109, %c0_110], %199 {strides = array<i32>} : memref<1x8x32xf32, #tpu.memory_space<vmem>>, vector<1x8x32xf32>,
    return
  }
  func.func @transform_0(%arg0: i32) -> (i32, i32, i32) {
    %c0_i32 = arith.constant 0 : i32
    %c0_i32_0 = arith.constant 0 : i32
    %c0_i32_1 = arith.constant 0 : i32
    return %arg0, %c0_i32, %c0_i32_0 : i32, i32, i32
  }
  func.func @transform_1(%arg0: i32) -> (i32, i32, i32) {
    %c0_i32 = arith.constant 0 : i32
    %c0_i32_0 = arith.constant 0 : i32
    %c0_i32_1 = arith.constant 0 : i32
    return %arg0, %c0_i32, %c0_i32_0 : i32, i32, i32
  }
  func.func @transform_2(%arg0: i32) -> (i32, i32) {
    %c0_i32 = arith.constant 0 : i32
    %c0_i32_0 = arith.constant 0 : i32
    %c0_i32_1 = arith.constant 0 : i32
    return %c0_i32, %c0_i32_0 : i32, i32
  }
  func.func @transform_3(%arg0: i32) -> (i32, i32) {
    %c0_i32 = arith.constant 0 : i32
    %c0_i32_0 = arith.constant 0 : i32
    %c0_i32_1 = arith.constant 0 : i32
    return %c0_i32, %c0_i32_0 : i32, i32
  }
  func.func @transform_4(%arg0: i32) -> (i32, i32) {
    %c0_i32 = arith.constant 0 : i32
    %c0_i32_0 = arith.constant 0 : i32
    %c0_i32_1 = arith.constant 0 : i32
    return %c0_i32, %c0_i32_0 : i32, i32
  }
  func.func @transform_5(%arg0: i32) -> (i32, i32) {
    %c0_i32 = arith.constant 0 : i32
    %c0_i32_0 = arith.constant 0 : i32
    %c0_i32_1 = arith.constant 0 : i32
    return %c0_i32, %c0_i32_0 : i32, i32
  }
  func.func @transform_6(%arg0: i32) -> (i32, i32) {
    %c0_i32 = arith.constant 0 : i32
    %c0_i32_0 = arith.constant 0 : i32
    %c0_i32_1 = arith.constant 0 : i32
    return %c0_i32, %c0_i32_0 : i32, i32
  }
  func.func @transform_7(%arg0: i32) -> (i32, i32) {
    %c0_i32 = arith.constant 0 : i32
    %c0_i32_0 = arith.constant 0 : i32
    %c0_i32_1 = arith.constant 0 : i32
    return %c0_i32, %c0_i32_0 : i32, i32
  }
  func.func @transform_8(%arg0: i32) -> (i32, i32) {
    %c0_i32 = arith.constant 0 : i32
    %c0_i32_0 = arith.constant 0 : i32
    %c0_i32_1 = arith.constant 0 : i32
    return %c0_i32, %c0_i32_0 : i32, i32
  }
  func.func @transform_9(%arg0: i32) -> (i32, i32) {
    %c0_i32 = arith.constant 0 : i32
    %c0_i32_0 = arith.constant 0 : i32
    %c0_i32_1 = arith.constant 0 : i32
    return %c0_i32, %c0_i32_0 : i32, i32
  }
  func.func @transform_10(%arg0: i32) -> (i32, i32) {
    %c0_i32 = arith.constant 0 : i32
    %c0_i32_0 = arith.constant 0 : i32
    %c0_i32_1 = arith.constant 0 : i32
    return %c0_i32, %c0_i32_0 : i32, i32
  }
  func.func @transform_11(%arg0: i32) -> (i32, i32) {
    %c0_i32 = arith.constant 0 : i32
    %c0_i32_0 = arith.constant 0 : i32
    %c0_i32_1 = arith.constant 0 : i32
    return %c0_i32, %c0_i32_0 : i32, i32
  }
  func.func @transform_12(%arg0: i32) -> (i32, i32) {
    %c0_i32 = arith.constant 0 : i32
    %c0_i32_0 = arith.constant 0 : i32
    %c0_i32_1 = arith.constant 0 : i32
    return %c0_i32, %c0_i32_0 : i32, i32
  }
  func.func @transform_13(%arg0: i32) -> (i32, i32) {
    %c0_i32 = arith.constant 0 : i32
    %c0_i32_0 = arith.constant 0 : i32
    %c0_i32_1 = arith.constant 0 : i32
    return %c0_i32, %c0_i32_0 : i32, i32
  }
  func.func @transform_14(%arg0: i32) -> (i32, i32) {
    %c0_i32 = arith.constant 0 : i32
    %c0_i32_0 = arith.constant 0 : i32
    %c0_i32_1 = arith.constant 0 : i32
    return %c0_i32, %c0_i32_0 : i32, i32
  }
  func.func @transform_15(%arg0: i32) -> (i32, i32) {
    %c0_i32 = arith.constant 0 : i32
    %c0_i32_0 = arith.constant 0 : i32
    %c0_i32_1 = arith.constant 0 : i32
    return %c0_i32, %c0_i32_0 : i32, i32
  }
  func.func @transform_16(%arg0: i32) -> (i32, i32, i32) {
    %c0_i32 = arith.constant 0 : i32
    %c0_i32_0 = arith.constant 0 : i32
    %c0_i32_1 = arith.constant 0 : i32
    return %arg0, %c0_i32, %c0_i32_0 : i32, i32, i32
  }
}

module attributes {stable_mosaic.version = 11 : i64} {
  func.func @bert_block_kernel(%arg0: i32, %arg1: memref<1x8x32xf32, #tpu.memory_space<vmem>>, %arg2: memref<1x1x8xf32, #tpu.memory_space<vmem>>, %arg3: memref<1x32xf32, #tpu.memory_space<vmem>>, %arg4: memref<1x32xf32, #tpu.memory_space<vmem>>, %arg5: memref<32x96xbf16, #tpu.memory_space<vmem>>, %arg6: memref<1x96xf32, #tpu.memory_space<vmem>>, %arg7: memref<32x32xbf16, #tpu.memory_space<vmem>>, %arg8: memref<1x32xf32, #tpu.memory_space<vmem>>, %arg9: memref<1x32xf32, #tpu.memory_space<vmem>>, %arg10: memref<1x32xf32, #tpu.memory_space<vmem>>, %arg11: memref<32x128xbf16, #tpu.memory_space<vmem>>, %arg12: memref<1x128xf32, #tpu.memory_space<vmem>>, %arg13: memref<128x32xbf16, #tpu.memory_space<vmem>>, %arg14: memref<1x32xf32, #tpu.memory_space<vmem>>, %arg15: memref<1x32xf32, #tpu.memory_space<vmem>>, %arg16: memref<1x32xf32, #tpu.memory_space<vmem>>, %arg17: memref<1x8x32xf32, #tpu.memory_space<vmem>>, %arg18: memref<4x8x8xbf16, #tpu.memory_space<vmem>>, %arg19: memref<4x8x8xbf16, #tpu.memory_space<vmem>>, %arg20: memref<4x8x8xbf16, #tpu.memory_space<vmem>>, %arg21: memref<4x8x8xbf16, #tpu.memory_space<vmem>>) attributes {dimension_semantics = [#tpu.dimension_semantics<parallel>], iteration_bounds = array<i64: 2>, scalar_prefetch = 0 : i64, scratch_operands = 4 : i64, tpu.core_type = #tpu.core_type<tc>, window_params = [{transform_indices = @transform_0, window_bounds = array<i64: 1, 8, 32>}, {transform_indices = @transform_1, window_bounds = array<i64: 1, 1, 8>}, {pipeline_mode = #tpu.pipeline_mode<synchronous>, transform_indices = @transform_2, window_bounds = array<i64: 1, 32>}, {pipeline_mode = #tpu.pipeline_mode<synchronous>, transform_indices = @transform_3, window_bounds = array<i64: 1, 32>}, {pipeline_mode = #tpu.pipeline_mode<synchronous>, transform_indices = @transform_4, window_bounds = array<i64: 32, 96>}, {pipeline_mode = #tpu.pipeline_mode<synchronous>, transform_indices = @transform_5, window_bounds = array<i64: 1, 96>}, {pipeline_mode = #tpu.pipeline_mode<synchronous>, transform_indices = @transform_6, window_bounds = array<i64: 32, 32>}, {pipeline_mode = #tpu.pipeline_mode<synchronous>, transform_indices = @transform_7, window_bounds = array<i64: 1, 32>}, {pipeline_mode = #tpu.pipeline_mode<synchronous>, transform_indices = @transform_8, window_bounds = array<i64: 1, 32>}, {pipeline_mode = #tpu.pipeline_mode<synchronous>, transform_indices = @transform_9, window_bounds = array<i64: 1, 32>}, {pipeline_mode = #tpu.pipeline_mode<synchronous>, transform_indices = @transform_10, window_bounds = array<i64: 32, 128>}, {pipeline_mode = #tpu.pipeline_mode<synchronous>, transform_indices = @transform_11, window_bounds = array<i64: 1, 128>}, {pipeline_mode = #tpu.pipeline_mode<synchronous>, transform_indices = @transform_12, window_bounds = array<i64: 128, 32>}, {pipeline_mode = #tpu.pipeline_mode<synchronous>, transform_indices = @transform_13, window_bounds = array<i64: 1, 32>}, {pipeline_mode = #tpu.pipeline_mode<synchronous>, transform_indices = @transform_14, window_bounds = array<i64: 1, 32>}, {pipeline_mode = #tpu.pipeline_mode<synchronous>, transform_indices = @transform_15, window_bounds = array<i64: 1, 32>}, {transform_indices = @transform_16, window_bounds = array<i64: 1, 8, 32>}]} {
    %c0 = arith.constant 0 : index
    %c0_0 = arith.constant 0 : index
    %c0_1 = arith.constant 0 : index
    %0 = vector.load %arg1[%c0, %c0_0, %c0_1] : memref<1x8x32xf32, #tpu.memory_space<vmem>>, vector<1x8x32xf32>
    %1 = vector.shape_cast %0 : vector<1x8x32xf32> to vector<8x32xf32>
    %c0_2 = arith.constant 0 : index
    %c0_3 = arith.constant 0 : index
    %2 = vector.load %arg3[%c0_2, %c0_3] : memref<1x32xf32, #tpu.memory_space<vmem>>, vector<1x32xf32>
    %c0_4 = arith.constant 0 : index
    %c0_5 = arith.constant 0 : index
    %3 = vector.load %arg4[%c0_4, %c0_5] : memref<1x32xf32, #tpu.memory_space<vmem>>, vector<1x32xf32>
    %cst = arith.constant dense<0.000000e+00> : vector<8xf32>
    %4 = vector.multi_reduction <add>, %1, %cst [1] : vector<8x32xf32> to vector<8xf32>
    %5 = vector.shape_cast %4 : vector<8xf32> to vector<8x1xf32>
    %cst_6 = arith.constant 3.200000e+01 : f32
    %6 = vector.broadcast %cst_6 : f32 to vector<8x1xf32>
    %7 = arith.divf %5, %6 : vector<8x1xf32>
    %8 = vector.broadcast %7 : vector<8x1xf32> to vector<8x32xf32>
    %9 = arith.subf %1, %8 : vector<8x32xf32>
    %10 = arith.mulf %9, %9 : vector<8x32xf32>
    %cst_7 = arith.constant dense<0.000000e+00> : vector<8xf32>
    %11 = vector.multi_reduction <add>, %10, %cst_7 [1] : vector<8x32xf32> to vector<8xf32>
    %12 = vector.shape_cast %11 : vector<8xf32> to vector<8x1xf32>
    %cst_8 = arith.constant 3.200000e+01 : f32
    %13 = vector.broadcast %cst_8 : f32 to vector<8x1xf32>
    %14 = arith.divf %12, %13 : vector<8x1xf32>
    %15 = vector.broadcast %7 : vector<8x1xf32> to vector<8x32xf32>
    %16 = arith.subf %1, %15 : vector<8x32xf32>
    %cst_9 = arith.constant 9.99999974E-6 : f32
    %17 = vector.broadcast %cst_9 : f32 to vector<8x1xf32>
    %18 = arith.addf %14, %17 : vector<8x1xf32>
    %19 = math.rsqrt %18 : vector<8x1xf32>
    %20 = vector.broadcast %19 : vector<8x1xf32> to vector<8x32xf32>
    %21 = arith.mulf %16, %20 : vector<8x32xf32>
    %22 = vector.broadcast %2 : vector<1x32xf32> to vector<8x32xf32>
    %23 = arith.mulf %21, %22 : vector<8x32xf32>
    %24 = vector.broadcast %3 : vector<1x32xf32> to vector<8x32xf32>
    %25 = arith.addf %23, %24 : vector<8x32xf32>
    %c0_10 = arith.constant 0 : index
    %c0_11 = arith.constant 0 : index
    %c0_12 = arith.constant 0 : index
    %26 = vector.load %arg2[%c0_10, %c0_11, %c0_12] : memref<1x1x8xf32, #tpu.memory_space<vmem>>, vector<1x1x8xf32>
    %27 = vector.shape_cast %26 : vector<1x1x8xf32> to vector<1x8xf32>
    %cst_13 = arith.constant 0.000000e+00 : f32
    %28 = vector.broadcast %cst_13 : f32 to vector<1x8xf32>
    %29 = arith.cmpf ogt, %27, %28 : vector<1x8xf32>
    %cst_14 = arith.constant 0.000000e+00 : f32
    %cst_15 = arith.constant -1.000000e+30 : f32
    %30 = vector.broadcast %cst_14 : f32 to vector<1x8xf32>
    %31 = vector.broadcast %cst_15 : f32 to vector<1x8xf32>
    %32 = arith.select %29, %30, %31 : vector<1x8xi1>, vector<1x8xf32>
    %33 = arith.truncf %25 : vector<8x32xf32> to vector<8x32xbf16>
    %c0_16 = arith.constant 0 : index
    %c0_17 = arith.constant 0 : index
    %34 = vector.load %arg5[%c0_16, %c0_17] : memref<32x96xbf16, #tpu.memory_space<vmem>>, vector<32x96xbf16>
    %cst_18 = arith.constant dense<0.000000e+00> : vector<8x96xf32>
    %35 = tpu.matmul %33, %34, %cst_18 {dimension_numbers = #tpu.dot_dimension_numbers<[1], [0], [0], [1], [0, 0, 1, 1], [], []>} : vector<8x32xbf16>, vector<32x96xbf16>, vector<8x96xf32> -> vector<8x96xf32>
    %c0_19 = arith.constant 0 : index
    %c0_20 = arith.constant 0 : index
    %36 = vector.load %arg6[%c0_19, %c0_20] : memref<1x96xf32, #tpu.memory_space<vmem>>, vector<1x96xf32>
    %37 = vector.broadcast %36 : vector<1x96xf32> to vector<8x96xf32>
    %38 = arith.addf %35, %37 : vector<8x96xf32>
    %39 = vector.extract_strided_slice %38 {offsets = [0, 0], sizes = [8, 8], strides = [1, 1]} : vector<8x96xf32> to vector<8x8xf32>
    %cst_21 = arith.constant 0.353553385 : f32
    %40 = vector.broadcast %cst_21 : f32 to vector<8x8xf32>
    %41 = arith.mulf %39, %40 : vector<8x8xf32>
    %42 = arith.truncf %41 : vector<8x8xf32> to vector<8x8xbf16>
    %c0_22 = arith.constant 0 : index
    %c0_23 = arith.constant 0 : index
    %c0_24 = arith.constant 0 : index
    %43 = vector.load %arg18[%c0_22, %c0_23, %c0_24] : memref<4x8x8xbf16, #tpu.memory_space<vmem>>, vector<1x8x8xbf16>
    %44 = vector.shape_cast %43 : vector<1x8x8xbf16> to vector<8x8xbf16>
    %45 = vector.shape_cast %42 : vector<8x8xbf16> to vector<1x8x8xbf16>
    tpu.vector_store %arg18[%c0_22, %c0_23, %c0_24], %45 {strides = array<i32>} : memref<4x8x8xbf16, #tpu.memory_space<vmem>>, vector<1x8x8xbf16>,
    %46 = vector.extract_strided_slice %38 {offsets = [0, 32], sizes = [8, 8], strides = [1, 1]} : vector<8x96xf32> to vector<8x8xf32>
    %47 = arith.truncf %46 : vector<8x8xf32> to vector<8x8xbf16>
    %c0_25 = arith.constant 0 : index
    %c0_26 = arith.constant 0 : index
    %c0_27 = arith.constant 0 : index
    %48 = vector.load %arg19[%c0_25, %c0_26, %c0_27] : memref<4x8x8xbf16, #tpu.memory_space<vmem>>, vector<1x8x8xbf16>
    %49 = vector.shape_cast %48 : vector<1x8x8xbf16> to vector<8x8xbf16>
    %50 = vector.shape_cast %47 : vector<8x8xbf16> to vector<1x8x8xbf16>
    tpu.vector_store %arg19[%c0_25, %c0_26, %c0_27], %50 {strides = array<i32>} : memref<4x8x8xbf16, #tpu.memory_space<vmem>>, vector<1x8x8xbf16>,
    %51 = vector.extract_strided_slice %38 {offsets = [0, 64], sizes = [8, 8], strides = [1, 1]} : vector<8x96xf32> to vector<8x8xf32>
    %52 = arith.truncf %51 : vector<8x8xf32> to vector<8x8xbf16>
    %c0_28 = arith.constant 0 : index
    %c0_29 = arith.constant 0 : index
    %c0_30 = arith.constant 0 : index
    %53 = vector.load %arg20[%c0_28, %c0_29, %c0_30] : memref<4x8x8xbf16, #tpu.memory_space<vmem>>, vector<1x8x8xbf16>
    %54 = vector.shape_cast %53 : vector<1x8x8xbf16> to vector<8x8xbf16>
    %55 = vector.shape_cast %52 : vector<8x8xbf16> to vector<1x8x8xbf16>
    tpu.vector_store %arg20[%c0_28, %c0_29, %c0_30], %55 {strides = array<i32>} : memref<4x8x8xbf16, #tpu.memory_space<vmem>>, vector<1x8x8xbf16>,
    %56 = vector.extract_strided_slice %38 {offsets = [0, 8], sizes = [8, 8], strides = [1, 1]} : vector<8x96xf32> to vector<8x8xf32>
    %cst_31 = arith.constant 0.353553385 : f32
    %57 = vector.broadcast %cst_31 : f32 to vector<8x8xf32>
    %58 = arith.mulf %56, %57 : vector<8x8xf32>
    %59 = arith.truncf %58 : vector<8x8xf32> to vector<8x8xbf16>
    %c1 = arith.constant 1 : index
    %c0_32 = arith.constant 0 : index
    %c0_33 = arith.constant 0 : index
    %60 = vector.load %arg18[%c1, %c0_32, %c0_33] : memref<4x8x8xbf16, #tpu.memory_space<vmem>>, vector<1x8x8xbf16>
    %61 = vector.shape_cast %60 : vector<1x8x8xbf16> to vector<8x8xbf16>
    %62 = vector.shape_cast %59 : vector<8x8xbf16> to vector<1x8x8xbf16>
    tpu.vector_store %arg18[%c1, %c0_32, %c0_33], %62 {strides = array<i32>} : memref<4x8x8xbf16, #tpu.memory_space<vmem>>, vector<1x8x8xbf16>,
    %63 = vector.extract_strided_slice %38 {offsets = [0, 40], sizes = [8, 8], strides = [1, 1]} : vector<8x96xf32> to vector<8x8xf32>
    %64 = arith.truncf %63 : vector<8x8xf32> to vector<8x8xbf16>
    %c1_34 = arith.constant 1 : index
    %c0_35 = arith.constant 0 : index
    %c0_36 = arith.constant 0 : index
    %65 = vector.load %arg19[%c1_34, %c0_35, %c0_36] : memref<4x8x8xbf16, #tpu.memory_space<vmem>>, vector<1x8x8xbf16>
    %66 = vector.shape_cast %65 : vector<1x8x8xbf16> to vector<8x8xbf16>
    %67 = vector.shape_cast %64 : vector<8x8xbf16> to vector<1x8x8xbf16>
    tpu.vector_store %arg19[%c1_34, %c0_35, %c0_36], %67 {strides = array<i32>} : memref<4x8x8xbf16, #tpu.memory_space<vmem>>, vector<1x8x8xbf16>,
    %68 = vector.extract_strided_slice %38 {offsets = [0, 72], sizes = [8, 8], strides = [1, 1]} : vector<8x96xf32> to vector<8x8xf32>
    %69 = arith.truncf %68 : vector<8x8xf32> to vector<8x8xbf16>
    %c1_37 = arith.constant 1 : index
    %c0_38 = arith.constant 0 : index
    %c0_39 = arith.constant 0 : index
    %70 = vector.load %arg20[%c1_37, %c0_38, %c0_39] : memref<4x8x8xbf16, #tpu.memory_space<vmem>>, vector<1x8x8xbf16>
    %71 = vector.shape_cast %70 : vector<1x8x8xbf16> to vector<8x8xbf16>
    %72 = vector.shape_cast %69 : vector<8x8xbf16> to vector<1x8x8xbf16>
    tpu.vector_store %arg20[%c1_37, %c0_38, %c0_39], %72 {strides = array<i32>} : memref<4x8x8xbf16, #tpu.memory_space<vmem>>, vector<1x8x8xbf16>,
    %73 = vector.extract_strided_slice %38 {offsets = [0, 16], sizes = [8, 8], strides = [1, 1]} : vector<8x96xf32> to vector<8x8xf32>
    %cst_40 = arith.constant 0.353553385 : f32
    %74 = vector.broadcast %cst_40 : f32 to vector<8x8xf32>
    %75 = arith.mulf %73, %74 : vector<8x8xf32>
    %76 = arith.truncf %75 : vector<8x8xf32> to vector<8x8xbf16>
    %c2 = arith.constant 2 : index
    %c0_41 = arith.constant 0 : index
    %c0_42 = arith.constant 0 : index
    %77 = vector.load %arg18[%c2, %c0_41, %c0_42] : memref<4x8x8xbf16, #tpu.memory_space<vmem>>, vector<1x8x8xbf16>
    %78 = vector.shape_cast %77 : vector<1x8x8xbf16> to vector<8x8xbf16>
    %79 = vector.shape_cast %76 : vector<8x8xbf16> to vector<1x8x8xbf16>
    tpu.vector_store %arg18[%c2, %c0_41, %c0_42], %79 {strides = array<i32>} : memref<4x8x8xbf16, #tpu.memory_space<vmem>>, vector<1x8x8xbf16>,
    %80 = vector.extract_strided_slice %38 {offsets = [0, 48], sizes = [8, 8], strides = [1, 1]} : vector<8x96xf32> to vector<8x8xf32>
    %81 = arith.truncf %80 : vector<8x8xf32> to vector<8x8xbf16>
    %c2_43 = arith.constant 2 : index
    %c0_44 = arith.constant 0 : index
    %c0_45 = arith.constant 0 : index
    %82 = vector.load %arg19[%c2_43, %c0_44, %c0_45] : memref<4x8x8xbf16, #tpu.memory_space<vmem>>, vector<1x8x8xbf16>
    %83 = vector.shape_cast %82 : vector<1x8x8xbf16> to vector<8x8xbf16>
    %84 = vector.shape_cast %81 : vector<8x8xbf16> to vector<1x8x8xbf16>
    tpu.vector_store %arg19[%c2_43, %c0_44, %c0_45], %84 {strides = array<i32>} : memref<4x8x8xbf16, #tpu.memory_space<vmem>>, vector<1x8x8xbf16>,
    %85 = vector.extract_strided_slice %38 {offsets = [0, 80], sizes = [8, 8], strides = [1, 1]} : vector<8x96xf32> to vector<8x8xf32>
    %86 = arith.truncf %85 : vector<8x8xf32> to vector<8x8xbf16>
    %c2_46 = arith.constant 2 : index
    %c0_47 = arith.constant 0 : index
    %c0_48 = arith.constant 0 : index
    %87 = vector.load %arg20[%c2_46, %c0_47, %c0_48] : memref<4x8x8xbf16, #tpu.memory_space<vmem>>, vector<1x8x8xbf16>
    %88 = vector.shape_cast %87 : vector<1x8x8xbf16> to vector<8x8xbf16>
    %89 = vector.shape_cast %86 : vector<8x8xbf16> to vector<1x8x8xbf16>
    tpu.vector_store %arg20[%c2_46, %c0_47, %c0_48], %89 {strides = array<i32>} : memref<4x8x8xbf16, #tpu.memory_space<vmem>>, vector<1x8x8xbf16>,
    %90 = vector.extract_strided_slice %38 {offsets = [0, 24], sizes = [8, 8], strides = [1, 1]} : vector<8x96xf32> to vector<8x8xf32>
    %cst_49 = arith.constant 0.353553385 : f32
    %91 = vector.broadcast %cst_49 : f32 to vector<8x8xf32>
    %92 = arith.mulf %90, %91 : vector<8x8xf32>
    %93 = arith.truncf %92 : vector<8x8xf32> to vector<8x8xbf16>
    %c3 = arith.constant 3 : index
    %c0_50 = arith.constant 0 : index
    %c0_51 = arith.constant 0 : index
    %94 = vector.load %arg18[%c3, %c0_50, %c0_51] : memref<4x8x8xbf16, #tpu.memory_space<vmem>>, vector<1x8x8xbf16>
    %95 = vector.shape_cast %94 : vector<1x8x8xbf16> to vector<8x8xbf16>
    %96 = vector.shape_cast %93 : vector<8x8xbf16> to vector<1x8x8xbf16>
    tpu.vector_store %arg18[%c3, %c0_50, %c0_51], %96 {strides = array<i32>} : memref<4x8x8xbf16, #tpu.memory_space<vmem>>, vector<1x8x8xbf16>,
    %97 = vector.extract_strided_slice %38 {offsets = [0, 56], sizes = [8, 8], strides = [1, 1]} : vector<8x96xf32> to vector<8x8xf32>
    %98 = arith.truncf %97 : vector<8x8xf32> to vector<8x8xbf16>
    %c3_52 = arith.constant 3 : index
    %c0_53 = arith.constant 0 : index
    %c0_54 = arith.constant 0 : index
    %99 = vector.load %arg19[%c3_52, %c0_53, %c0_54] : memref<4x8x8xbf16, #tpu.memory_space<vmem>>, vector<1x8x8xbf16>
    %100 = vector.shape_cast %99 : vector<1x8x8xbf16> to vector<8x8xbf16>
    %101 = vector.shape_cast %98 : vector<8x8xbf16> to vector<1x8x8xbf16>
    tpu.vector_store %arg19[%c3_52, %c0_53, %c0_54], %101 {strides = array<i32>} : memref<4x8x8xbf16, #tpu.memory_space<vmem>>, vector<1x8x8xbf16>,
    %102 = vector.extract_strided_slice %38 {offsets = [0, 88], sizes = [8, 8], strides = [1, 1]} : vector<8x96xf32> to vector<8x8xf32>
    %103 = arith.truncf %102 : vector<8x8xf32> to vector<8x8xbf16>
    %c3_55 = arith.constant 3 : index
    %c0_56 = arith.constant 0 : index
    %c0_57 = arith.constant 0 : index
    %104 = vector.load %arg20[%c3_55, %c0_56, %c0_57] : memref<4x8x8xbf16, #tpu.memory_space<vmem>>, vector<1x8x8xbf16>
    %105 = vector.shape_cast %104 : vector<1x8x8xbf16> to vector<8x8xbf16>
    %106 = vector.shape_cast %103 : vector<8x8xbf16> to vector<1x8x8xbf16>
    tpu.vector_store %arg20[%c3_55, %c0_56, %c0_57], %106 {strides = array<i32>} : memref<4x8x8xbf16, #tpu.memory_space<vmem>>, vector<1x8x8xbf16>,
    %c0_i32 = arith.constant 0 : i32
    %c4_i32 = arith.constant 4 : i32
    %107 = arith.addi %c0_i32, %c4_i32 : i32
    %c1_i32 = arith.constant 1 : i32
    scf.for %arg22 = %c0_i32 to %107 step %c1_i32  : i32 {
      %200 = arith.index_cast %arg22 : i32 to index
      %c0_111 = arith.constant 0 : index
      %c0_112 = arith.constant 0 : index
      %201 = vector.load %arg18[%200, %c0_111, %c0_112] : memref<4x8x8xbf16, #tpu.memory_space<vmem>>, vector<1x8x8xbf16>
      %202 = vector.shape_cast %201 : vector<1x8x8xbf16> to vector<8x8xbf16>
      %203 = arith.index_cast %arg22 : i32 to index
      %c0_113 = arith.constant 0 : index
      %c0_114 = arith.constant 0 : index
      %204 = vector.load %arg19[%203, %c0_113, %c0_114] : memref<4x8x8xbf16, #tpu.memory_space<vmem>>, vector<1x8x8xbf16>
      %205 = vector.shape_cast %204 : vector<1x8x8xbf16> to vector<8x8xbf16>
      %206 = arith.index_cast %arg22 : i32 to index
      %c0_115 = arith.constant 0 : index
      %c0_116 = arith.constant 0 : index
      %207 = vector.load %arg20[%206, %c0_115, %c0_116] : memref<4x8x8xbf16, #tpu.memory_space<vmem>>, vector<1x8x8xbf16>
      %208 = vector.shape_cast %207 : vector<1x8x8xbf16> to vector<8x8xbf16>
      %cst_117 = arith.constant dense<0.000000e+00> : vector<8x8xf32>
      %209 = tpu.matmul %202, %205, %cst_117 {dimension_numbers = #tpu.dot_dimension_numbers<[1], [1], [0], [0], [0, 0, 1, 0], [], []>} : vector<8x8xbf16>, vector<8x8xbf16>, vector<8x8xf32> -> vector<8x8xf32>
      %210 = vector.broadcast %32 : vector<1x8xf32> to vector<8x8xf32>
      %211 = arith.addf %209, %210 : vector<8x8xf32>
      %cst_118 = arith.constant dense<0xFF800000> : vector<8xf32>
      %212 = vector.multi_reduction <maximumf>, %211, %cst_118 [1] : vector<8x8xf32> to vector<8xf32>
      %213 = vector.shape_cast %212 : vector<8xf32> to vector<8x1xf32>
      %214 = vector.broadcast %213 : vector<8x1xf32> to vector<8x8xf32>
      %215 = arith.subf %211, %214 : vector<8x8xf32>
      %216 = math.exp %215 : vector<8x8xf32>
      %cst_119 = arith.constant dense<0.000000e+00> : vector<8xf32>
      %217 = vector.multi_reduction <add>, %216, %cst_119 [1] : vector<8x8xf32> to vector<8xf32>
      %218 = vector.shape_cast %217 : vector<8xf32> to vector<8x1xf32>
      %219 = tpu.reciprocal %218 {approx = true} : vector<8x1xf32> -> vector<8x1xf32>
      %220 = vector.broadcast %219 : vector<8x1xf32> to vector<8x8xf32>
      %221 = arith.mulf %216, %220 : vector<8x8xf32>
      %222 = arith.truncf %221 : vector<8x8xf32> to vector<8x8xbf16>
      %cst_120 = arith.constant dense<0.000000e+00> : vector<8x8xf32>
      %223 = tpu.matmul %222, %208, %cst_120 {dimension_numbers = #tpu.dot_dimension_numbers<[1], [0], [0], [1], [0, 0, 1, 1], [], []>} : vector<8x8xbf16>, vector<8x8xbf16>, vector<8x8xf32> -> vector<8x8xf32>
      %224 = arith.truncf %223 : vector<8x8xf32> to vector<8x8xbf16>
      %225 = arith.index_cast %arg22 : i32 to index
      %c0_121 = arith.constant 0 : index
      %c0_122 = arith.constant 0 : index
      %226 = vector.load %arg21[%225, %c0_121, %c0_122] : memref<4x8x8xbf16, #tpu.memory_space<vmem>>, vector<1x8x8xbf16>
      %227 = vector.shape_cast %226 : vector<1x8x8xbf16> to vector<8x8xbf16>
      %228 = vector.shape_cast %224 : vector<8x8xbf16> to vector<1x8x8xbf16>
      tpu.vector_store %arg21[%225, %c0_121, %c0_122], %228 {strides = array<i32>} : memref<4x8x8xbf16, #tpu.memory_space<vmem>>, vector<1x8x8xbf16>,
    }
    %c4_i32_58 = arith.constant 4 : i32
    %c0_59 = arith.constant 0 : index
    %c0_60 = arith.constant 0 : index
    %c0_61 = arith.constant 0 : index
    %108 = vector.load %arg21[%c0_59, %c0_60, %c0_61] : memref<4x8x8xbf16, #tpu.memory_space<vmem>>, vector<1x8x8xbf16>
    %109 = vector.shape_cast %108 : vector<1x8x8xbf16> to vector<8x8xbf16>
    %c1_62 = arith.constant 1 : index
    %c0_63 = arith.constant 0 : index
    %c0_64 = arith.constant 0 : index
    %110 = vector.load %arg21[%c1_62, %c0_63, %c0_64] : memref<4x8x8xbf16, #tpu.memory_space<vmem>>, vector<1x8x8xbf16>
    %111 = vector.shape_cast %110 : vector<1x8x8xbf16> to vector<8x8xbf16>
    %c2_65 = arith.constant 2 : index
    %c0_66 = arith.constant 0 : index
    %c0_67 = arith.constant 0 : index
    %112 = vector.load %arg21[%c2_65, %c0_66, %c0_67] : memref<4x8x8xbf16, #tpu.memory_space<vmem>>, vector<1x8x8xbf16>
    %113 = vector.shape_cast %112 : vector<1x8x8xbf16> to vector<8x8xbf16>
    %c3_68 = arith.constant 3 : index
    %c0_69 = arith.constant 0 : index
    %c0_70 = arith.constant 0 : index
    %114 = vector.load %arg21[%c3_68, %c0_69, %c0_70] : memref<4x8x8xbf16, #tpu.memory_space<vmem>>, vector<1x8x8xbf16>
    %115 = vector.shape_cast %114 : vector<1x8x8xbf16> to vector<8x8xbf16>
    %116 = tpu.concatenate %109, %111, %113, %115 in 1 : vector<8x8xbf16>, vector<8x8xbf16>, vector<8x8xbf16>, vector<8x8xbf16> -> vector<8x32xbf16>
    %c0_71 = arith.constant 0 : index
    %c0_72 = arith.constant 0 : index
    %117 = vector.load %arg7[%c0_71, %c0_72] : memref<32x32xbf16, #tpu.memory_space<vmem>>, vector<32x32xbf16>
    %cst_73 = arith.constant dense<0.000000e+00> : vector<8x32xf32>
    %118 = tpu.matmul %116, %117, %cst_73 {dimension_numbers = #tpu.dot_dimension_numbers<[1], [0], [0], [1], [0, 0, 1, 1], [], []>} : vector<8x32xbf16>, vector<32x32xbf16>, vector<8x32xf32> -> vector<8x32xf32>
    %c0_74 = arith.constant 0 : index
    %c0_75 = arith.constant 0 : index
    %119 = vector.load %arg8[%c0_74, %c0_75] : memref<1x32xf32, #tpu.memory_space<vmem>>, vector<1x32xf32>
    %120 = vector.broadcast %119 : vector<1x32xf32> to vector<8x32xf32>
    %121 = arith.addf %118, %120 : vector<8x32xf32>
    %122 = arith.addf %25, %121 : vector<8x32xf32>
    %c0_76 = arith.constant 0 : index
    %c0_77 = arith.constant 0 : index
    %123 = vector.load %arg9[%c0_76, %c0_77] : memref<1x32xf32, #tpu.memory_space<vmem>>, vector<1x32xf32>
    %c0_78 = arith.constant 0 : index
    %c0_79 = arith.constant 0 : index
    %124 = vector.load %arg10[%c0_78, %c0_79] : memref<1x32xf32, #tpu.memory_space<vmem>>, vector<1x32xf32>
    %cst_80 = arith.constant dense<0.000000e+00> : vector<8xf32>
    %125 = vector.multi_reduction <add>, %122, %cst_80 [1] : vector<8x32xf32> to vector<8xf32>
    %126 = vector.shape_cast %125 : vector<8xf32> to vector<8x1xf32>
    %cst_81 = arith.constant 3.200000e+01 : f32
    %127 = vector.broadcast %cst_81 : f32 to vector<8x1xf32>
    %128 = arith.divf %126, %127 : vector<8x1xf32>
    %129 = vector.broadcast %128 : vector<8x1xf32> to vector<8x32xf32>
    %130 = arith.subf %122, %129 : vector<8x32xf32>
    %131 = arith.mulf %130, %130 : vector<8x32xf32>
    %cst_82 = arith.constant dense<0.000000e+00> : vector<8xf32>
    %132 = vector.multi_reduction <add>, %131, %cst_82 [1] : vector<8x32xf32> to vector<8xf32>
    %133 = vector.shape_cast %132 : vector<8xf32> to vector<8x1xf32>
    %cst_83 = arith.constant 3.200000e+01 : f32
    %134 = vector.broadcast %cst_83 : f32 to vector<8x1xf32>
    %135 = arith.divf %133, %134 : vector<8x1xf32>
    %136 = vector.broadcast %128 : vector<8x1xf32> to vector<8x32xf32>
    %137 = arith.subf %122, %136 : vector<8x32xf32>
    %cst_84 = arith.constant 9.99999974E-6 : f32
    %138 = vector.broadcast %cst_84 : f32 to vector<8x1xf32>
    %139 = arith.addf %135, %138 : vector<8x1xf32>
    %140 = math.rsqrt %139 : vector<8x1xf32>
    %141 = vector.broadcast %140 : vector<8x1xf32> to vector<8x32xf32>
    %142 = arith.mulf %137, %141 : vector<8x32xf32>
    %143 = vector.broadcast %123 : vector<1x32xf32> to vector<8x32xf32>
    %144 = arith.mulf %142, %143 : vector<8x32xf32>
    %145 = vector.broadcast %124 : vector<1x32xf32> to vector<8x32xf32>
    %146 = arith.addf %144, %145 : vector<8x32xf32>
    %147 = arith.truncf %146 : vector<8x32xf32> to vector<8x32xbf16>
    %c0_85 = arith.constant 0 : index
    %c0_86 = arith.constant 0 : index
    %148 = vector.load %arg11[%c0_85, %c0_86] : memref<32x128xbf16, #tpu.memory_space<vmem>>, vector<32x128xbf16>
    %cst_87 = arith.constant dense<0.000000e+00> : vector<8x128xf32>
    %149 = tpu.matmul %147, %148, %cst_87 {dimension_numbers = #tpu.dot_dimension_numbers<[1], [0], [0], [1], [0, 0, 1, 1], [], []>} : vector<8x32xbf16>, vector<32x128xbf16>, vector<8x128xf32> -> vector<8x128xf32>
    %c0_88 = arith.constant 0 : index
    %c0_89 = arith.constant 0 : index
    %150 = vector.load %arg12[%c0_88, %c0_89] : memref<1x128xf32, #tpu.memory_space<vmem>>, vector<1x128xf32>
    %151 = vector.broadcast %150 : vector<1x128xf32> to vector<8x128xf32>
    %152 = arith.addf %149, %151 : vector<8x128xf32>
    %cst_90 = arith.constant 5.000000e-01 : f32
    %153 = vector.broadcast %cst_90 : f32 to vector<8x128xf32>
    %154 = arith.mulf %153, %152 : vector<8x128xf32>
    %cst_91 = arith.constant 4.471500e-02 : f32
    %155 = vector.broadcast %cst_91 : f32 to vector<8x128xf32>
    %156 = arith.mulf %155, %152 : vector<8x128xf32>
    %157 = arith.mulf %156, %152 : vector<8x128xf32>
    %158 = arith.mulf %157, %152 : vector<8x128xf32>
    %159 = arith.addf %152, %158 : vector<8x128xf32>
    %cst_92 = arith.constant 0.797884583 : f32
    %160 = vector.broadcast %cst_92 : f32 to vector<8x128xf32>
    %161 = arith.mulf %160, %159 : vector<8x128xf32>
    %162 = math.tanh %161 : vector<8x128xf32>
    %cst_93 = arith.constant 1.000000e+00 : f32
    %163 = vector.broadcast %cst_93 : f32 to vector<8x128xf32>
    %164 = arith.addf %163, %162 : vector<8x128xf32>
    %165 = arith.mulf %154, %164 : vector<8x128xf32>
    %166 = arith.truncf %165 : vector<8x128xf32> to vector<8x128xbf16>
    %c0_94 = arith.constant 0 : index
    %c0_95 = arith.constant 0 : index
    %167 = vector.load %arg13[%c0_94, %c0_95] : memref<128x32xbf16, #tpu.memory_space<vmem>>, vector<128x32xbf16>
    %cst_96 = arith.constant dense<0.000000e+00> : vector<8x32xf32>
    %168 = tpu.matmul %166, %167, %cst_96 {dimension_numbers = #tpu.dot_dimension_numbers<[1], [0], [0], [1], [0, 0, 1, 1], [], []>} : vector<8x128xbf16>, vector<128x32xbf16>, vector<8x32xf32> -> vector<8x32xf32>
    %c0_97 = arith.constant 0 : index
    %c0_98 = arith.constant 0 : index
    %169 = vector.load %arg14[%c0_97, %c0_98] : memref<1x32xf32, #tpu.memory_space<vmem>>, vector<1x32xf32>
    %170 = vector.broadcast %169 : vector<1x32xf32> to vector<8x32xf32>
    %171 = arith.addf %168, %170 : vector<8x32xf32>
    %172 = arith.addf %146, %171 : vector<8x32xf32>
    %c0_99 = arith.constant 0 : index
    %c0_100 = arith.constant 0 : index
    %173 = vector.load %arg15[%c0_99, %c0_100] : memref<1x32xf32, #tpu.memory_space<vmem>>, vector<1x32xf32>
    %c0_101 = arith.constant 0 : index
    %c0_102 = arith.constant 0 : index
    %174 = vector.load %arg16[%c0_101, %c0_102] : memref<1x32xf32, #tpu.memory_space<vmem>>, vector<1x32xf32>
    %cst_103 = arith.constant dense<0.000000e+00> : vector<8xf32>
    %175 = vector.multi_reduction <add>, %172, %cst_103 [1] : vector<8x32xf32> to vector<8xf32>
    %176 = vector.shape_cast %175 : vector<8xf32> to vector<8x1xf32>
    %cst_104 = arith.constant 3.200000e+01 : f32
    %177 = vector.broadcast %cst_104 : f32 to vector<8x1xf32>
    %178 = arith.divf %176, %177 : vector<8x1xf32>
    %179 = vector.broadcast %178 : vector<8x1xf32> to vector<8x32xf32>
    %180 = arith.subf %172, %179 : vector<8x32xf32>
    %181 = arith.mulf %180, %180 : vector<8x32xf32>
    %cst_105 = arith.constant dense<0.000000e+00> : vector<8xf32>
    %182 = vector.multi_reduction <add>, %181, %cst_105 [1] : vector<8x32xf32> to vector<8xf32>
    %183 = vector.shape_cast %182 : vector<8xf32> to vector<8x1xf32>
    %cst_106 = arith.constant 3.200000e+01 : f32
    %184 = vector.broadcast %cst_106 : f32 to vector<8x1xf32>
    %185 = arith.divf %183, %184 : vector<8x1xf32>
    %186 = vector.broadcast %178 : vector<8x1xf32> to vector<8x32xf32>
    %187 = arith.subf %172, %186 : vector<8x32xf32>
    %cst_107 = arith.constant 9.99999974E-6 : f32
    %188 = vector.broadcast %cst_107 : f32 to vector<8x1xf32>
    %189 = arith.addf %185, %188 : vector<8x1xf32>
    %190 = math.rsqrt %189 : vector<8x1xf32>
    %191 = vector.broadcast %190 : vector<8x1xf32> to vector<8x32xf32>
    %192 = arith.mulf %187, %191 : vector<8x32xf32>
    %193 = vector.broadcast %173 : vector<1x32xf32> to vector<8x32xf32>
    %194 = arith.mulf %192, %193 : vector<8x32xf32>
    %195 = vector.broadcast %174 : vector<1x32xf32> to vector<8x32xf32>
    %196 = arith.addf %194, %195 : vector<8x32xf32>
    %c0_108 = arith.constant 0 : index
    %c0_109 = arith.constant 0 : index
    %c0_110 = arith.constant 0 : index
    %197 = vector.load %arg17[%c0_108, %c0_109, %c0_110] : memref<1x8x32xf32, #tpu.memory_space<vmem>>, vector<1x8x32xf32>
    %198 = vector.shape_cast %197 : vector<1x8x32xf32> to vector<8x32xf32>
    %199 = vector.shape_cast %196 : vector<8x32xf32> to vector<1x8x32xf32>
    tpu.vector_store %arg17[%c0_108, %c0_109, %c0_110], %199 {strides = array<i32>} : memref<1x8x32xf32, #tpu.memory_space<vmem>>, vector<1x8x32xf32>,
    return
  }
  func.func @transform_0(%arg0: i32) -> (i32, i32, i32) {
    %c0_i32 = arith.constant 0 : i32
    %c0_i32_0 = arith.constant 0 : i32
    %c0_i32_1 = arith.constant 0 : i32
    return %arg0, %c0_i32, %c0_i32_0 : i32, i32, i32
  }
  func.func @transform_1(%arg0: i32) -> (i32, i32, i32) {
    %c0_i32 = arith.constant 0 : i32
    %c0_i32_0 = arith.constant 0 : i32
    %c0_i32_1 = arith.constant 0 : i32
    return %arg0, %c0_i32, %c0_i32_0 : i32, i32, i32
  }
  func.func @transform_2(%arg0: i32) -> (i32, i32) {
    %c0_i32 = arith.constant 0 : i32
    %c0_i32_0 = arith.constant 0 : i32
    %c0_i32_1 = arith.constant 0 : i32
    return %c0_i32, %c0_i32_0 : i32, i32
  }
  func.func @transform_3(%arg0: i32) -> (i32, i32) {
    %c0_i32 = arith.constant 0 : i32
    %c0_i32_0 = arith.constant 0 : i32
    %c0_i32_1 = arith.constant 0 : i32
    return %c0_i32, %c0_i32_0 : i32, i32
  }
  func.func @transform_4(%arg0: i32) -> (i32, i32) {
    %c0_i32 = arith.constant 0 : i32
    %c0_i32_0 = arith.constant 0 : i32
    %c0_i32_1 = arith.constant 0 : i32
    return %c0_i32, %c0_i32_0 : i32, i32
  }
  func.func @transform_5(%arg0: i32) -> (i32, i32) {
    %c0_i32 = arith.constant 0 : i32
    %c0_i32_0 = arith.constant 0 : i32
    %c0_i32_1 = arith.constant 0 : i32
    return %c0_i32, %c0_i32_0 : i32, i32
  }
  func.func @transform_6(%arg0: i32) -> (i32, i32) {
    %c0_i32 = arith.constant 0 : i32
    %c0_i32_0 = arith.constant 0 : i32
    %c0_i32_1 = arith.constant 0 : i32
    return %c0_i32, %c0_i32_0 : i32, i32
  }
  func.func @transform_7(%arg0: i32) -> (i32, i32) {
    %c0_i32 = arith.constant 0 : i32
    %c0_i32_0 = arith.constant 0 : i32
    %c0_i32_1 = arith.constant 0 : i32
    return %c0_i32, %c0_i32_0 : i32, i32
  }
  func.func @transform_8(%arg0: i32) -> (i32, i32) {
    %c0_i32 = arith.constant 0 : i32
    %c0_i32_0 = arith.constant 0 : i32
    %c0_i32_1 = arith.constant 0 : i32
    return %c0_i32, %c0_i32_0 : i32, i32
  }
  func.func @transform_9(%arg0: i32) -> (i32, i32) {
    %c0_i32 = arith.constant 0 : i32
    %c0_i32_0 = arith.constant 0 : i32
    %c0_i32_1 = arith.constant 0 : i32
    return %c0_i32, %c0_i32_0 : i32, i32
  }
  func.func @transform_10(%arg0: i32) -> (i32, i32) {
    %c0_i32 = arith.constant 0 : i32
    %c0_i32_0 = arith.constant 0 : i32
    %c0_i32_1 = arith.constant 0 : i32
    return %c0_i32, %c0_i32_0 : i32, i32
  }
  func.func @transform_11(%arg0: i32) -> (i32, i32) {
    %c0_i32 = arith.constant 0 : i32
    %c0_i32_0 = arith.constant 0 : i32
    %c0_i32_1 = arith.constant 0 : i32
    return %c0_i32, %c0_i32_0 : i32, i32
  }
  func.func @transform_12(%arg0: i32) -> (i32, i32) {
    %c0_i32 = arith.constant 0 : i32
    %c0_i32_0 = arith.constant 0 : i32
    %c0_i32_1 = arith.constant 0 : i32
    return %c0_i32, %c0_i32_0 : i32, i32
  }
  func.func @transform_13(%arg0: i32) -> (i32, i32) {
    %c0_i32 = arith.constant 0 : i32
    %c0_i32_0 = arith.constant 0 : i32
    %c0_i32_1 = arith.constant 0 : i32
    return %c0_i32, %c0_i32_0 : i32, i32
  }
  func.func @transform_14(%arg0: i32) -> (i32, i32) {
    %c0_i32 = arith.constant 0 : i32
    %c0_i32_0 = arith.constant 0 : i32
    %c0_i32_1 = arith.constant 0 : i32
    return %c0_i32, %c0_i32_0 : i32, i32
  }
  func.func @transform_15(%arg0: i32) -> (i32, i32) {
    %c0_i32 = arith.constant 0 : i32
    %c0_i32_0 = arith.constant 0 : i32
    %c0_i32_1 = arith.constant 0 : i32
    return %c0_i32, %c0_i32_0 : i32, i32
  }
  func.func @transform_16(%arg0: i32) -> (i32, i32, i32) {
    %c0_i32 = arith.constant 0 : i32
    %c0_i32_0 = arith.constant 0 : i32
    %c0_i32_1 = arith.constant 0 : i32
    return %arg0, %c0_i32, %c0_i32_0 : i32, i32, i32
  }
}

</mosaic_0001>

<llo_original>
// kernel: tpu_custom_call.1
$region0: #{tpu_custom_call.1}
  #allocation0 [shape = 'u32[]', space=smem, size = 0x4, offset = 0x4, fixed_abs, tag = 'smem constant byte address 0x4 - core index']
  #allocation1 [shape = 'u32[144,128]{1,0:T(1,128)}', space=vmem, size = 0x12000, scoped, tag = 'internal scratch']
  #allocation2 [shape = 'bf16[4,8,8]{2,1,0:T(8,128)(2,1)}', space=vmem, size = 0x2000, scoped, tag = 'scratch operand']
  #allocation3 [shape = 'bf16[4,8,8]{2,1,0:T(8,128)(2,1)}', space=vmem, size = 0x2000, scoped, tag = 'scratch operand']
  #allocation4 [shape = 'bf16[4,8,8]{2,1,0:T(8,128)(2,1)}', space=vmem, size = 0x2000, scoped, tag = 'scratch operand']
  #allocation5 [shape = 'bf16[4,8,8]{2,1,0:T(8,128)(2,1)}', space=vmem, size = 0x2000, scoped, tag = 'scratch operand']
  %s0 = inlined_call_operand.vmem [shape: f32[2,8,32], index: 0, kind: input, shape index: {}]
  %s1 = inlined_call_operand.vmem [shape: f32[2,1,8], index: 1, kind: input, shape index: {}]
  %s2 = inlined_call_operand.vmem [shape: f32[1,32], index: 2, kind: input, shape index: {}]
  %s3 = inlined_call_operand.vmem [shape: f32[1,32], index: 3, kind: input, shape index: {}]
  %s4 = inlined_call_operand.vmem [shape: bf16[32,96], index: 4, kind: input, shape index: {}]
  %s5 = inlined_call_operand.vmem [shape: f32[1,96], index: 5, kind: input, shape index: {}]
  %s6 = inlined_call_operand.vmem [shape: bf16[32,32], index: 6, kind: input, shape index: {}]
  %s7 = inlined_call_operand.vmem [shape: f32[1,32], index: 7, kind: input, shape index: {}]
  %s8 = inlined_call_operand.vmem [shape: f32[1,32], index: 8, kind: input, shape index: {}]
  %s9 = inlined_call_operand.vmem [shape: f32[1,32], index: 9, kind: input, shape index: {}]
  %s10 = inlined_call_operand.vmem [shape: bf16[32,128], index: 10, kind: input, shape index: {}]
  %s11 = inlined_call_operand.vmem [shape: f32[1,128], index: 11, kind: input, shape index: {}]
  %s12 = inlined_call_operand.vmem [shape: bf16[128,32], index: 12, kind: input, shape index: {}]
  %s13 = inlined_call_operand.vmem [shape: f32[1,32], index: 13, kind: input, shape index: {}]
  %s14 = inlined_call_operand.vmem [shape: f32[1,32], index: 14, kind: input, shape index: {}]
  %s15 = inlined_call_operand.vmem [shape: f32[1,32], index: 15, kind: input, shape index: {}]
  %s16 = inlined_call_operand.hbm [shape: f32[2,8,32], index: 16, kind: output, shape index: {}]
  %s17 = sld [smem:[#allocation0]]
  $region104: #{tpu_custom_call.1} parent=0
    _
  %s19 = ssub.s32 1, %s17
  %s20 = scalar_select 0, %s19, %s17
  $region1: #{tpu_custom_call.1} parent=0
    #allocation6 [shape = 'u8[8192]{0}', space=vmem, size = 0x2000, scoped, tag = 'output window, operand 0']
    #allocation7 [shape = 's32[2]{0}', space=sflag, size = 0x8, scoped, tag = 'scoped memory for tpu_custom_call.1']
    %21 = vsyncpa [#allocation7], 0
    %s22 = scalar_lea.sflag [#allocation7], 1
    %23 = vsyncpa %s22, 0
    loop: start=0, step=1, limit=4
    $region2: #{tpu_custom_call.1} parent=1 // loop_pre_header
      _
    $region3: #{tpu_custom_call.1} parent=1 // loop_header
      %s25 = sphi 0, %s29
      %p26 = scmp.ge.s32.totalorder %s25, 4
      %s35 = sphi 0, %s37
      %s38 = sphi 0, %s35
      %s39 = sphi 0, %s38
      %s55 = sphi 0, %s39
      %s61 = sphi 0, %s63
      %s64 = sphi 0, %s61
      %s65 = sphi 0, %s64
      %s81 = sphi 0, %s65
      %s85 = sphi 0, %s85
      %s87 = sphi 0, %s85
      %s88 = sphi 0, %s87
      %s102 = sphi 0, %s88
      %s106 = sphi 0, %s106
      %s108 = sphi 0, %s106
      %s109 = sphi 0, %s108
      %s123 = sphi 0, %s109
      %s127 = sphi 0, %s127
      %s129 = sphi 0, %s127
      %s130 = sphi 0, %s129
      %s144 = sphi 0, %s130
      %s148 = sphi 0, %s148
      %s150 = sphi 0, %s148
      %s151 = sphi 0, %s150
      %s165 = sphi 0, %s151
      %s169 = sphi 0, %s169
      %s171 = sphi 0, %s169
      %s172 = sphi 0, %s171
      %s186 = sphi 0, %s172
      %s190 = sphi 0, %s190
      %s192 = sphi 0, %s190
      %s193 = sphi 0, %s192
      %s207 = sphi 0, %s193
      %s211 = sphi 0, %s211
      %s213 = sphi 0, %s211
      %s214 = sphi 0, %s213
      %s228 = sphi 0, %s214
      %s232 = sphi 0, %s232
      %s234 = sphi 0, %s232
      %s235 = sphi 0, %s234
      %s249 = sphi 0, %s235
      %s253 = sphi 0, %s253
      %s255 = sphi 0, %s253
      %s256 = sphi 0, %s255
      %s270 = sphi 0, %s256
      %s274 = sphi 0, %s274
      %s276 = sphi 0, %s274
      %s277 = sphi 0, %s276
      %s291 = sphi 0, %s277
      %s295 = sphi 0, %s295
      %s297 = sphi 0, %s295
      %s298 = sphi 0, %s297
      %s312 = sphi 0, %s298
      %s316 = sphi 0, %s316
      %s318 = sphi 0, %s316
      %s319 = sphi 0, %s318
      %s333 = sphi 0, %s319
      %s337 = sphi 0, %s337
      %s339 = sphi 0, %s337
      %s340 = sphi 0, %s339
      %s354 = sphi 0, %s340
      %s358 = sphi 0, %s358
      %s360 = sphi 0, %s358
      %s361 = sphi 0, %s360
      %s375 = sphi 0, %s361
      %s381 = sphi 0, %s383
      %s384 = sphi 0, %s381
      %s385 = sphi 0, %s384
      %s401 = sphi 0, %s385
    $region4: #{tpu_custom_call.1} parent=1 // loop_header_branch
      %28 = sbr.rel (%p26) target = $region8
    $region5: #{tpu_custom_call.1} parent=1 // loop_body
      %s30 = ssub.s32 %s25, 1
      %s31 = ssub.s32 %s25, 2
      %s32 = sadd.s32 %s25, 1
      %s33 = ssub.s32 %s25, %s32
      %p34 = scmp.eq.s32.totalorder %s33, 0
      %s36 = sadd.s32 %s35, 1
      %s37 = scalar_select %p34, %s35, %s36
      %p40 = pneg %p34
      %p41 = scmp.eq.s32.totalorder %s25, 1
      %p42 = por %p40, %p41
      %p43 = scmp.ne.s32.totalorder %s35, %s38
      %p44 = scmp.eq.s32.totalorder %s25, 0
      %p45 = por %p43, %p44
      %p46 = scmp.ne.s32.totalorder %s35, %s38
      %p47 = scmp.eq.s32.totalorder %s30, 1
      %p48 = por %p46, %p47
      %p49 = scmp.ne.s32.totalorder %s38, %s39
      %p50 = scmp.eq.s32.totalorder %s30, 0
      %p51 = por %p49, %p50
      %p52 = scmp.ne.s32.totalorder %s38, %s39
      %p53 = scmp.eq.s32.totalorder %s31, 1
      %p54 = por %p52, %p53
      %p56 = scmp.ne.s32.totalorder %s39, %s55
      %p57 = scmp.eq.s32.totalorder %s31, 0
      %p58 = por %p56, %p57
      %s59 = ssub.s32 %s25, %s32
      %p60 = scmp.eq.s32.totalorder %s59, 0
      %s62 = sadd.s32 %s61, 1
      %s63 = scalar_select %p60, %s61, %s62
      %p66 = pneg %p60
      %p67 = scmp.eq.s32.totalorder %s25, 1
      %p68 = por %p66, %p67
      %p69 = scmp.ne.s32.totalorder %s61, %s64
      %p70 = scmp.eq.s32.totalorder %s25, 0
      %p71 = por %p69, %p70
      %p72 = scmp.ne.s32.totalorder %s61, %s64
      %p73 = scmp.eq.s32.totalorder %s30, 1
      %p74 = por %p72, %p73
      %p75 = scmp.ne.s32.totalorder %s64, %s65
      %p76 = scmp.eq.s32.totalorder %s30, 0
      %p77 = por %p75, %p76
      %p78 = scmp.ne.s32.totalorder %s64, %s65
      %p79 = scmp.eq.s32.totalorder %s31, 1
      %p80 = por %p78, %p79
      %p82 = scmp.ne.s32.totalorder %s65, %s81
      %p83 = scmp.eq.s32.totalorder %s31, 0
      %p84 = por %p82, %p83
      %s86 = sadd.s32 %s85, 1
      %p89 = scmp.eq.s32.totalorder %s25, 1
      %p90 = scmp.ne.s32.totalorder %s85, %s87
      %p91 = scmp.eq.s32.totalorder %s25, 0
      %p92 = por %p90, %p91
      %p93 = scmp.ne.s32.totalorder %s85, %s87
      %p94 = scmp.eq.s32.totalorder %s30, 1
      %p95 = por %p93, %p94
      %p96 = scmp.ne.s32.totalorder %s87, %s88
      %p97 = scmp.eq.s32.totalorder %s30, 0
      %p98 = por %p96, %p97
      %p99 = scmp.ne.s32.totalorder %s87, %s88
      %p100 = scmp.eq.s32.totalorder %s31, 1
      %p101 = por %p99, %p100
      %p103 = scmp.ne.s32.totalorder %s88, %s102
      %p104 = scmp.eq.s32.totalorder %s31, 0
      %p105 = por %p103, %p104
      %s107 = sadd.s32 %s106, 1
      %p110 = scmp.eq.s32.totalorder %s25, 1
      %p111 = scmp.ne.s32.totalorder %s106, %s108
      %p112 = scmp.eq.s32.totalorder %s25, 0
      %p113 = por %p111, %p112
      %p114 = scmp.ne.s32.totalorder %s106, %s108
      %p115 = scmp.eq.s32.totalorder %s30, 1
      %p116 = por %p114, %p115
      %p117 = scmp.ne.s32.totalorder %s108, %s109
      %p118 = scmp.eq.s32.totalorder %s30, 0
      %p119 = por %p117, %p118
      %p120 = scmp.ne.s32.totalorder %s108, %s109
      %p121 = scmp.eq.s32.totalorder %s31, 1
      %p122 = por %p120, %p121
      %p124 = scmp.ne.s32.totalorder %s109, %s123
      %p125 = scmp.eq.s32.totalorder %s31, 0
      %p126 = por %p124, %p125
      %s128 = sadd.s32 %s127, 1
      %p131 = scmp.eq.s32.totalorder %s25, 1
      %p132 = scmp.ne.s32.totalorder %s127, %s129
      %p133 = scmp.eq.s32.totalorder %s25, 0
      %p134 = por %p132, %p133
      %p135 = scmp.ne.s32.totalorder %s127, %s129
      %p136 = scmp.eq.s32.totalorder %s30, 1
      %p137 = por %p135, %p136
      %p138 = scmp.ne.s32.totalorder %s129, %s130
      %p139 = scmp.eq.s32.totalorder %s30, 0
      %p140 = por %p138, %p139
      %p141 = scmp.ne.s32.totalorder %s129, %s130
      %p142 = scmp.eq.s32.totalorder %s31, 1
      %p143 = por %p141, %p142
      %p145 = scmp.ne.s32.totalorder %s130, %s144
      %p146 = scmp.eq.s32.totalorder %s31, 0
      %p147 = por %p145, %p146
      %s149 = sadd.s32 %s148, 1
      %p152 = scmp.eq.s32.totalorder %s25, 1
      %p153 = scmp.ne.s32.totalorder %s148, %s150
      %p154 = scmp.eq.s32.totalorder %s25, 0
      %p155 = por %p153, %p154
      %p156 = scmp.ne.s32.totalorder %s148, %s150
      %p157 = scmp.eq.s32.totalorder %s30, 1
      %p158 = por %p156, %p157
      %p159 = scmp.ne.s32.totalorder %s150, %s151
      %p160 = scmp.eq.s32.totalorder %s30, 0
      %p161 = por %p159, %p160
      %p162 = scmp.ne.s32.totalorder %s150, %s151
      %p163 = scmp.eq.s32.totalorder %s31, 1
      %p164 = por %p162, %p163
      %p166 = scmp.ne.s32.totalorder %s151, %s165
      %p167 = scmp.eq.s32.totalorder %s31, 0
      %p168 = por %p166, %p167
      %s170 = sadd.s32 %s169, 1
      %p173 = scmp.eq.s32.totalorder %s25, 1
      %p174 = scmp.ne.s32.totalorder %s169, %s171
      %p175 = scmp.eq.s32.totalorder %s25, 0
      %p176 = por %p174, %p175
      %p177 = scmp.ne.s32.totalorder %s169, %s171
      %p178 = scmp.eq.s32.totalorder %s30, 1
      %p179 = por %p177, %p178
      %p180 = scmp.ne.s32.totalorder %s171, %s172
      %p181 = scmp.eq.s32.totalorder %s30, 0
      %p182 = por %p180, %p181
      %p183 = scmp.ne.s32.totalorder %s171, %s172
      %p184 = scmp.eq.s32.totalorder %s31, 1
      %p185 = por %p183, %p184
      %p187 = scmp.ne.s32.totalorder %s172, %s186
      %p188 = scmp.eq.s32.totalorder %s31, 0
      %p189 = por %p187, %p188
      %s191 = sadd.s32 %s190, 1
      %p194 = scmp.eq.s32.totalorder %s25, 1
      %p195 = scmp.ne.s32.totalorder %s190, %s192
      %p196 = scmp.eq.s32.totalorder %s25, 0
      %p197 = por %p195, %p196
      %p198 = scmp.ne.s32.totalorder %s190, %s192
      %p199 = scmp.eq.s32.totalorder %s30, 1
      %p200 = por %p198, %p199
      %p201 = scmp.ne.s32.totalorder %s192, %s193
      %p202 = scmp.eq.s32.totalorder %s30, 0
      %p203 = por %p201, %p202
      %p204 = scmp.ne.s32.totalorder %s192, %s193
      %p205 = scmp.eq.s32.totalorder %s31, 1
      %p206 = por %p204, %p205
      %p208 = scmp.ne.s32.totalorder %s193, %s207
      %p209 = scmp.eq.s32.totalorder %s31, 0
      %p210 = por %p208, %p209
      %s212 = sadd.s32 %s211, 1
      %p215 = scmp.eq.s32.totalorder %s25, 1
      %p216 = scmp.ne.s32.totalorder %s211, %s213
      %p217 = scmp.eq.s32.totalorder %s25, 0
      %p218 = por %p216, %p217
      %p219 = scmp.ne.s32.totalorder %s211, %s213
      %p220 = scmp.eq.s32.totalorder %s30, 1
      %p221 = por %p219, %p220
      %p222 = scmp.ne.s32.totalorder %s213, %s214
      %p223 = scmp.eq.s32.totalorder %s30, 0
      %p224 = por %p222, %p223
      %p225 = scmp.ne.s32.totalorder %s213, %s214
      %p226 = scmp.eq.s32.totalorder %s31, 1
      %p227 = por %p225, %p226
      %p229 = scmp.ne.s32.totalorder %s214, %s228
      %p230 = scmp.eq.s32.totalorder %s31, 0
      %p231 = por %p229, %p230
      %s233 = sadd.s32 %s232, 1
      %p236 = scmp.eq.s32.totalorder %s25, 1
      %p237 = scmp.ne.s32.totalorder %s232, %s234
      %p238 = scmp.eq.s32.totalorder %s25, 0
      %p239 = por %p237, %p238
      %p240 = scmp.ne.s32.totalorder %s232, %s234
      %p241 = scmp.eq.s32.totalorder %s30, 1
      %p242 = por %p240, %p241
      %p243 = scmp.ne.s32.totalorder %s234, %s235
      %p244 = scmp.eq.s32.totalorder %s30, 0
      %p245 = por %p243, %p244
      %p246 = scmp.ne.s32.totalorder %s234, %s235
      %p247 = scmp.eq.s32.totalorder %s31, 1
      %p248 = por %p246, %p247
      %p250 = scmp.ne.s32.totalorder %s235, %s249
      %p251 = scmp.eq.s32.totalorder %s31, 0
      %p252 = por %p250, %p251
      %s254 = sadd.s32 %s253, 1
      %p257 = scmp.eq.s32.totalorder %s25, 1
      %p258 = scmp.ne.s32.totalorder %s253, %s255
      %p259 = scmp.eq.s32.totalorder %s25, 0
      %p260 = por %p258, %p259
      %p261 = scmp.ne.s32.totalorder %s253, %s255
      %p262 = scmp.eq.s32.totalorder %s30, 1
      %p263 = por %p261, %p262
      %p264 = scmp.ne.s32.totalorder %s255, %s256
      %p265 = scmp.eq.s32.totalorder %s30, 0
      %p266 = por %p264, %p265
      %p267 = scmp.ne.s32.totalorder %s255, %s256
      %p268 = scmp.eq.s32.totalorder %s31, 1
      %p269 = por %p267, %p268
      %p271 = scmp.ne.s32.totalorder %s256, %s270
      %p272 = scmp.eq.s32.totalorder %s31, 0
      %p273 = por %p271, %p272
      %s275 = sadd.s32 %s274, 1
      %p278 = scmp.eq.s32.totalorder %s25, 1
      %p279 = scmp.ne.s32.totalorder %s274, %s276
      %p280 = scmp.eq.s32.totalorder %s25, 0
      %p281 = por %p279, %p280
      %p282 = scmp.ne.s32.totalorder %s274, %s276
      %p283 = scmp.eq.s32.totalorder %s30, 1
      %p284 = por %p282, %p283
      %p285 = scmp.ne.s32.totalorder %s276, %s277
      %p286 = scmp.eq.s32.totalorder %s30, 0
      %p287 = por %p285, %p286
      %p288 = scmp.ne.s32.totalorder %s276, %s277
      %p289 = scmp.eq.s32.totalorder %s31, 1
      %p290 = por %p288, %p289
      %p292 = scmp.ne.s32.totalorder %s277, %s291
      %p293 = scmp.eq.s32.totalorder %s31, 0
      %p294 = por %p292, %p293
      %s296 = sadd.s32 %s295, 1
      %p299 = scmp.eq.s32.totalorder %s25, 1
      %p300 = scmp.ne.s32.totalorder %s295, %s297
      %p301 = scmp.eq.s32.totalorder %s25, 0
      %p302 = por %p300, %p301
      %p303 = scmp.ne.s32.totalorder %s295, %s297
      %p304 = scmp.eq.s32.totalorder %s30, 1
      %p305 = por %p303, %p304
      %p306 = scmp.ne.s32.totalorder %s297, %s298
      %p307 = scmp.eq.s32.totalorder %s30, 0
      %p308 = por %p306, %p307
      %p309 = scmp.ne.s32.totalorder %s297, %s298
      %p310 = scmp.eq.s32.totalorder %s31, 1
      %p311 = por %p309, %p310
      %p313 = scmp.ne.s32.totalorder %s298, %s312
      %p314 = scmp.eq.s32.totalorder %s31, 0
      %p315 = por %p313, %p314
      %s317 = sadd.s32 %s316, 1
      %p320 = scmp.eq.s32.totalorder %s25, 1
      %p321 = scmp.ne.s32.totalorder %s316, %s318
      %p322 = scmp.eq.s32.totalorder %s25, 0
      %p323 = por %p321, %p322
      %p324 = scmp.ne.s32.totalorder %s316, %s318
      %p325 = scmp.eq.s32.totalorder %s30, 1
      %p326 = por %p324, %p325
      %p327 = scmp.ne.s32.totalorder %s318, %s319
      %p328 = scmp.eq.s32.totalorder %s30, 0
      %p329 = por %p327, %p328
      %p330 = scmp.ne.s32.totalorder %s318, %s319
      %p331 = scmp.eq.s32.totalorder %s31, 1
      %p332 = por %p330, %p331
      %p334 = scmp.ne.s32.totalorder %s319, %s333
      %p335 = scmp.eq.s32.totalorder %s31, 0
      %p336 = por %p334, %p335
      %s338 = sadd.s32 %s337, 1
      %p341 = scmp.eq.s32.totalorder %s25, 1
      %p342 = scmp.ne.s32.totalorder %s337, %s339
      %p343 = scmp.eq.s32.totalorder %s25, 0
      %p344 = por %p342, %p343
      %p345 = scmp.ne.s32.totalorder %s337, %s339
      %p346 = scmp.eq.s32.totalorder %s30, 1
      %p347 = por %p345, %p346
      %p348 = scmp.ne.s32.totalorder %s339, %s340
      %p349 = scmp.eq.s32.totalorder %s30, 0
      %p350 = por %p348, %p349
      %p351 = scmp.ne.s32.totalorder %s339, %s340
      %p352 = scmp.eq.s32.totalorder %s31, 1
      %p353 = por %p351, %p352
      %p355 = scmp.ne.s32.totalorder %s340, %s354
      %p356 = scmp.eq.s32.totalorder %s31, 0
      %p357 = por %p355, %p356
      %s359 = sadd.s32 %s358, 1
      %p362 = scmp.eq.s32.totalorder %s25, 1
      %p363 = scmp.ne.s32.totalorder %s358, %s360
      %p364 = scmp.eq.s32.totalorder %s25, 0
      %p365 = por %p363, %p364
      %p366 = scmp.ne.s32.totalorder %s358, %s360
      %p367 = scmp.eq.s32.totalorder %s30, 1
      %p368 = por %p366, %p367
      %p369 = scmp.ne.s32.totalorder %s360, %s361
      %p370 = scmp.eq.s32.totalorder %s30, 0
      %p371 = por %p369, %p370
      %p372 = scmp.ne.s32.totalorder %s360, %s361
      %p373 = scmp.eq.s32.totalorder %s31, 1
      %p374 = por %p372, %p373
      %p376 = scmp.ne.s32.totalorder %s361, %s375
      %p377 = scmp.eq.s32.totalorder %s31, 0
      %p378 = por %p376, %p377
      %s379 = ssub.s32 %s25, %s32
      %p380 = scmp.eq.s32.totalorder %s379, 0
      %s382 = sadd.s32 %s381, 1
      %s383 = scalar_select %p380, %s381, %s382
      %p386 = pneg %p380
      %p387 = scmp.eq.s32.totalorder %s25, 1
      %p388 = por %p386, %p387
      %p389 = scmp.ne.s32.totalorder %s381, %s384
      %p390 = scmp.eq.s32.totalorder %s25, 0
      %p391 = por %p389, %p390
      %p392 = scmp.ne.s32.totalorder %s381, %s384
      %p393 = scmp.eq.s32.totalorder %s30, 1
      %p394 = por %p392, %p393
      %p395 = scmp.ne.s32.totalorder %s384, %s385
      %p396 = scmp.eq.s32.totalorder %s30, 0
      %p397 = por %p395, %p396
      %p398 = scmp.ne.s32.totalorder %s384, %s385
      %p399 = scmp.eq.s32.totalorder %s31, 1
      %p400 = por %p398, %p399
      %p402 = scmp.ne.s32.totalorder %s385, %s401
      %p403 = scmp.eq.s32.totalorder %s31, 0
      %p404 = por %p402, %p403
      %p405 = scmp.le.s32.totalorder 1, %s25
      %p406 = scmp.lt.s32.totalorder %s25, 3
      %p407 = pnand %p405, %p406
      %p408 = pneg %p407
      // Predicated region
      $region9: #{tpu_custom_call.1} parent=5 // pred_check
        _
      $region10: #{tpu_custom_call.1} parent=5 // pred_check_branch
        %410 = sbr.rel (%p407) target = $region12
      $region11: #{tpu_custom_call.1} parent=5 // pred_region
        %s411 = ssub.s32 %s25, 1
        // Predicated region
        $region13: #{tpu_custom_call.1} parent=11 // pred_check
          %p412 = pneg %p98
        $region14: #{tpu_custom_call.1} parent=11 // pred_check_branch
          %414 = sbr.rel (%p412) target = $region16
        $region15: #{tpu_custom_call.1} parent=11 // pred_region
          _
        $region16: #{tpu_custom_call.1} parent=11 // pred_fallthru
          _
        // Predicated region
        $region17: #{tpu_custom_call.1} parent=11 // pred_check
          %p415 = pneg %p119
        $region18: #{tpu_custom_call.1} parent=11 // pred_check_branch
          %417 = sbr.rel (%p415) target = $region20
        $region19: #{tpu_custom_call.1} parent=11 // pred_region
          _
        $region20: #{tpu_custom_call.1} parent=11 // pred_fallthru
          _
        // Predicated region
        $region21: #{tpu_custom_call.1} parent=11 // pred_check
          %p418 = pneg %p140
        $region22: #{tpu_custom_call.1} parent=11 // pred_check_branch
          %420 = sbr.rel (%p418) target = $region24
        $region23: #{tpu_custom_call.1} parent=11 // pred_region
          _
        $region24: #{tpu_custom_call.1} parent=11 // pred_fallthru
          _
        // Predicated region
        $region25: #{tpu_custom_call.1} parent=11 // pred_check
          %p421 = pneg %p161
        $region26: #{tpu_custom_call.1} parent=11 // pred_check_branch
          %423 = sbr.rel (%p421) target = $region28
        $region27: #{tpu_custom_call.1} parent=11 // pred_region
          _
        $region28: #{tpu_custom_call.1} parent=11 // pred_fallthru
          _
        // Predicated region
        $region29: #{tpu_custom_call.1} parent=11 // pred_check
          %p424 = pneg %p182
        $region30: #{tpu_custom_call.1} parent=11 // pred_check_branch
          %426 = sbr.rel (%p424) target = $region32
        $region31: #{tpu_custom_call.1} parent=11 // pred_region
          _
        $region32: #{tpu_custom_call.1} parent=11 // pred_fallthru
          _
        // Predicated region
        $region33: #{tpu_custom_call.1} parent=11 // pred_check
          %p427 = pneg %p203
        $region34: #{tpu_custom_call.1} parent=11 // pred_check_branch
          %429 = sbr.rel (%p427) target = $region36
        $region35: #{tpu_custom_call.1} parent=11 // pred_region
          _
        $region36: #{tpu_custom_call.1} parent=11 // pred_fallthru
          _
        // Predicated region
        $region37: #{tpu_custom_call.1} parent=11 // pred_check
          %p430 = pneg %p224
        $region38: #{tpu_custom_call.1} parent=11 // pred_check_branch
          %432 = sbr.rel (%p430) target = $region40
        $region39: #{tpu_custom_call.1} parent=11 // pred_region
          _
        $region40: #{tpu_custom_call.1} parent=11 // pred_fallthru
          _
        // Predicated region
        $region41: #{tpu_custom_call.1} parent=11 // pred_check
          %p433 = pneg %p245
        $region42: #{tpu_custom_call.1} parent=11 // pred_check_branch
          %435 = sbr.rel (%p433) target = $region44
        $region43: #{tpu_custom_call.1} parent=11 // pred_region
          _
        $region44: #{tpu_custom_call.1} parent=11 // pred_fallthru
          _
        // Predicated region
        $region45: #{tpu_custom_call.1} parent=11 // pred_check
          %p436 = pneg %p266
        $region46: #{tpu_custom_call.1} parent=11 // pred_check_branch
          %438 = sbr.rel (%p436) target = $region48
        $region47: #{tpu_custom_call.1} parent=11 // pred_region
          _
        $region48: #{tpu_custom_call.1} parent=11 // pred_fallthru
          _
        // Predicated region
        $region49: #{tpu_custom_call.1} parent=11 // pred_check
          %p439 = pneg %p287
        $region50: #{tpu_custom_call.1} parent=11 // pred_check_branch
          %441 = sbr.rel (%p439) target = $region52
        $region51: #{tpu_custom_call.1} parent=11 // pred_region
          _
        $region52: #{tpu_custom_call.1} parent=11 // pred_fallthru
          _
        // Predicated region
        $region53: #{tpu_custom_call.1} parent=11 // pred_check
          %p442 = pneg %p308
        $region54: #{tpu_custom_call.1} parent=11 // pred_check_branch
          %444 = sbr.rel (%p442) target = $region56
        $region55: #{tpu_custom_call.1} parent=11 // pred_region
          _
        $region56: #{tpu_custom_call.1} parent=11 // pred_fallthru
          _
        // Predicated region
        $region57: #{tpu_custom_call.1} parent=11 // pred_check
          %p445 = pneg %p329
        $region58: #{tpu_custom_call.1} parent=11 // pred_check_branch
          %447 = sbr.rel (%p445) target = $region60
        $region59: #{tpu_custom_call.1} parent=11 // pred_region
          _
        $region60: #{tpu_custom_call.1} parent=11 // pred_fallthru
          _
        // Predicated region
        $region61: #{tpu_custom_call.1} parent=11 // pred_check
          %p448 = pneg %p350
        $region62: #{tpu_custom_call.1} parent=11 // pred_check_branch
          %450 = sbr.rel (%p448) target = $region64
        $region63: #{tpu_custom_call.1} parent=11 // pred_region
          _
        $region64: #{tpu_custom_call.1} parent=11 // pred_fallthru
          _
        // Predicated region
        $region65: #{tpu_custom_call.1} parent=11 // pred_check
          %p451 = pneg %p371
        $region66: #{tpu_custom_call.1} parent=11 // pred_check_branch
          %453 = sbr.rel (%p451) target = $region68
        $region67: #{tpu_custom_call.1} parent=11 // pred_region
          _
        $region68: #{tpu_custom_call.1} parent=11 // pred_fallthru
          _
      $region12: #{tpu_custom_call.1} parent=5 // pred_fallthru
        _
      %p454 = scmp.lt.s32.totalorder %s25, 2
      // Predicated region
      $region69: #{tpu_custom_call.1} parent=5 // pred_check
        %p455 = pneg %p454
      $region70: #{tpu_custom_call.1} parent=5 // pred_check_branch
        %457 = sbr.rel (%p455) target = $region72
      $region71: #{tpu_custom_call.1} parent=5 // pred_region
        // Predicated region
        $region73: #{tpu_custom_call.1} parent=71 // pred_check
          %p458 = pneg %p45
        $region74: #{tpu_custom_call.1} parent=71 // pred_check_branch
          %460 = sbr.rel (%p458) target = $region76
        $region75: #{tpu_custom_call.1} parent=71 // pred_region
          %p461 = scmp.lt.s32.totalorder %s25, 1
          %s462 = scalar_select %p461, %s25, 1
          %s463 = smul.addr %s462, 8
          %s464 = scalar_lea.vmem %s0, %s463
        $region76: #{tpu_custom_call.1} parent=71 // pred_fallthru
          _
        // Predicated region
        $region77: #{tpu_custom_call.1} parent=71 // pred_check
          %p465 = pneg %p71
        $region78: #{tpu_custom_call.1} parent=71 // pred_check_branch
          %467 = sbr.rel (%p465) target = $region80
        $region79: #{tpu_custom_call.1} parent=71 // pred_region
          %p468 = scmp.lt.s32.totalorder %s25, 1
          %s469 = scalar_select %p468, %s25, 1
          %s470 = scalar_lea.vmem %s1, %s469
        $region80: #{tpu_custom_call.1} parent=71 // pred_fallthru
          _
      $region72: #{tpu_custom_call.1} parent=5 // pred_fallthru
        _
      %p471 = scmp.le.s32.totalorder 1, %s25
      %p472 = scmp.lt.s32.totalorder %s25, 3
      %p473 = pnand %p471, %p472
      %p474 = pneg %p473
      // Predicated region
      $region81: #{tpu_custom_call.1} parent=5 // pred_check
        _
      $region82: #{tpu_custom_call.1} parent=5 // pred_check_branch
        %476 = sbr.rel (%p473) target = $region84
      $region83: #{tpu_custom_call.1} parent=5 // pred_region
        %s477 = ssub.s32 %s25, 1
        %p478 = scmp.lt.s32.totalorder %s30, 1
        %s479 = scalar_select %p478, %s30, 1
        %s480 = smul.addr %s479, 8
        %s481 = scalar_lea.vmem %s0, %s480
        %p482 = pneg %p51
        %p483 = pneg %p48
        %p484 = scmp.lt.s32.totalorder %s30, 1
        %s485 = scalar_select %p484, %s30, 1
        %s486 = scalar_lea.vmem %s1, %s485
        %p487 = pneg %p77
        %p488 = pneg %p74
        %p489 = pneg %p98
        %p490 = pneg %p95
        %p491 = pneg %p119
        %p492 = pneg %p116
        %p493 = pneg %p140
        %p494 = pneg %p137
        %p495 = pneg %p161
        %p496 = pneg %p158
        %p497 = pneg %p182
        %p498 = pneg %p179
        %p499 = pneg %p203
        %p500 = pneg %p200
        %p501 = pneg %p224
        %p502 = pneg %p221
        %p503 = pneg %p245
        %p504 = pneg %p242
        %p505 = pneg %p266
        %p506 = pneg %p263
        %p507 = pneg %p287
        %p508 = pneg %p284
        %p509 = pneg %p308
        %p510 = pneg %p305
        %p511 = pneg %p329
        %p512 = pneg %p326
        %p513 = pneg %p350
        %p514 = pneg %p347
        %p515 = pneg %p371
        %p516 = pneg %p368
        %p517 = pneg %p397
        %p518 = pneg %p394
        %s519 = sand.u32 %s384, 1
        %s520 = scalar_lea.sflag [#allocation7], %s519
        %s521 = sand.u32 %s384, 1
        %s522 = smul.addr %s521, 8
        %s523 = scalar_lea.vmem [#allocation6], %s522
        %p524 = scmp.lt.s32.totalorder %s30, 1
        %s525 = scalar_select %p524, %s30, 1
        %s526 = smul.addr %s525, 8
        %s527 = scalar_lea.vmem %s0, %s526
        %p528 = scmp.lt.s32.totalorder %s30, 1
        %s529 = scalar_select %p528, %s30, 1
        %s530 = scalar_lea.vmem %s1, %s529
        %v532 = vld [vmem:[%s527] sm:$0xff]
        %v533 = vld [vmem:[%s2] sm:$0x1]
        %v534 = vld [vmem:[%s3] sm:$0x1]
        %vm535 = vcmask 261120
        %v536 = vsel %vm535, %v532, 0.0
        %537 = vadd.xlane.f32.xlu0 %v536
        %v538 = vpop.xlane.xlu0 %537
        %v539 = vrcp.pop 32.0
        %v540 = vmul.f32 %v538, %v539
        %v541 = vsub.f32 %v532, %v540
        %v542 = vmul.f32 %v541, %v541
        %v543 = vsel %vm535, %v542, 0.0
        %544 = vadd.xlane.f32.xlu0 %v543
        %v545 = vpop.xlane.xlu0 %544
        %v546 = vmul.f32 %v545, %v539
        %v547 = vadd.f32 %v546, 1e-05
        %v548 = vrsqrt.pop %v547
        %v549 = vmul.f32 %v541, %v548
        %v551 = vlaneseq
        %v552 = vshrl.u32 %v551, 7
        %v553 = vsub.s32 0, %v552
        %v554 = vrot.slane %v533, %v553
        %v556 = vmul.f32 %v549, %v554
        %v558 = vlaneseq
        %v559 = vshrl.u32 %v558, 7
        %v560 = vsub.s32 0, %v559
        %v561 = vrot.slane %v534, %v560
        %v563 = vadd.f32 %v556, %v561
        %v564 = vld [vmem:[%s530] sm:$0x1]
        %vm565 = vcmp.gt.f32.partialorder %v564, 0.0
        %v566 = vsel %vm565, 0.0, -1e+30
        %v567 = vpack.c.bf16 %v563, %v563
        %v568 = vld [vmem:[%s4] sm:$0xf]
        %v569 = vld [vmem:[%s4 + $0x4] sm:$0xf]
        %v570 = vld [vmem:[%s4 + $0x8] sm:$0xf]
        %v571 = vld [vmem:[%s4 + $0xc] sm:$0xf]
        %v572 = vld [vmem:[%s5] sm:$0x1]
        %v574 = vlaneseq
        %v575 = vshrl.u32 %v574, 7
        %v576 = vsub.s32 0, %v575
        %v577 = vrot.slane %v572, %v576
        %v583 = vunpack.c.l.b16 %v568
        %v584 = vunpack.c.l.b16 %v569
        %v585 = vunpack.c.l.b16 %v570
        %v586 = vunpack.c.l.b16 %v571
        %v587 = vpack.c.b16 %v584, %v583
        %v588 = vpack.c.b16 %v586, %v585
        %v592 = vsel %vm535, %v567, 0
        %594 = vmatprep.subr.bf16.mxu0 0
        %595 = vmatpush1.bf16.msra.mxu0 0
        %596 = vmatprep.subr.bf16.mxu0 0
        %597 = vmatpush1.bf16.msra.mxu0 0
        %598 = vmatprep.subr.bf16.mxu0 0
        %599 = vmatpush1.bf16.msra.mxu0 0
        %600 = vmatprep.subr.bf16.mxu0 0
        %601 = vmatpush1.bf16.msra.mxu0 0
        %602 = vmatprep.subr.bf16.mxu0 0
        %603 = vmatpush1.bf16.msra.mxu0 0
        %604 = vmatprep.subr.bf16.mxu0 0
        %605 = vmatpush1.bf16.msra.mxu0 0
        %606 = vmatprep.subr.bf16.mxu0 0
        %607 = vmatpush1.bf16.msra.mxu0 %v588
        %608 = vmatprep.subr.bf16.mxu0 0
        %609 = vmatpush1.bf16.msra.mxu0 %v587
        %610 = vmatprep.subr.bf16.mxu0 0
        %611 = vmatpush2.bf16.msra.mxu0 0
        %612 = vmatprep.subr.bf16.mxu0 0
        %613 = vmatpush2.bf16.msra.mxu0 0
        %614 = vmatprep.subr.bf16.mxu0 0
        %615 = vmatpush2.bf16.msra.mxu0 0
        %616 = vmatprep.subr.bf16.mxu0 0
        %617 = vmatpush2.bf16.msra.mxu0 0
        %618 = vmatprep.subr.bf16.mxu0 0
        %619 = vmatpush2.bf16.msra.mxu0 0
        %620 = vmatprep.subr.bf16.mxu0 0
        %621 = vmatpush2.bf16.msra.mxu0 0
        %622 = vmatprep.subr.bf16.mxu0 0
        %623 = vmatpush2.bf16.msra.mxu0 0
        %624 = vmatprep.subr.bf16.mxu0 0
        %625 = vmatpush2.bf16.msra.mxu0 0
        %626 = vmatprep.mubr.bf16.mxu0 0
        %627 = vmatmul.mubr.bf16.gmra.mxu0 %v592
        %v628 = vpop.f32.mrf.mxu0
        %v629 = vadd.f32 %v577, %v628
        %v630 = vpop.f32.mrf.mxu0
        %v631 = vpop.f32.mrf.mxu0
        %v632 = vpop.f32.mrf.mxu0
        %633 = vdwg.mxu0
        %v634 = vmul.f32 %v629, 0.35355338
        %v635 = vpack.c.bf16 %v634, %v634
        %vm636 = vcmask 60416
        %637 = vst.msk [vmem:[#allocation2] sm:$0xf] %vm636, %v635
        %v638 = vpack.c.bf16 %v629, %v629
        %v640 = vunpack.c.l.b16 %v638
        %v641 = vpack.c.b16 %v640, %v640
        %642 = vrot.lane.b32.xlu0 %v641, 96
        %v643 = vpop.permute.xlu0 %642
        %645 = vst.msk [vmem:[#allocation3] sm:$0xf] %vm636, %v643
        %646 = vrot.lane.b32.xlu0 %v641, 64
        %v647 = vpop.permute.xlu0 %646
        %649 = vst.msk [vmem:[#allocation4] sm:$0xf] %vm636, %v647
        %v651 = vunpack.c.l.b16 %v635
        %v652 = vpack.c.b16 %v651, %v651
        %653 = vrot.lane.b32.xlu0 %v652, 120
        %v654 = vpop.permute.xlu0 %653
        %s656 = scalar_lea.vmem [#allocation2], 4
        %657 = vst.msk [vmem:[%s656] sm:$0xf] %vm636, %v654
        %658 = vrot.lane.b32.xlu0 %v641, 88
        %v659 = vpop.permute.xlu0 %658
        %s661 = scalar_lea.vmem [#allocation3], 4
        %662 = vst.msk [vmem:[%s661] sm:$0xf] %vm636, %v659
        %663 = vrot.lane.b32.xlu0 %v641, 56
        %v664 = vpop.permute.xlu0 %663
        %s666 = scalar_lea.vmem [#allocation4], 4
        %667 = vst.msk [vmem:[%s666] sm:$0xf] %vm636, %v664
        %668 = vrot.lane.b32.xlu0 %v652, 112
        %v669 = vpop.permute.xlu0 %668
        %s671 = scalar_lea.vmem [#allocation2], 8
        %672 = vst.msk [vmem:[%s671] sm:$0xf] %vm636, %v669
        %673 = vrot.lane.b32.xlu0 %v641, 80
        %v674 = vpop.permute.xlu0 %673
        %s676 = scalar_lea.vmem [#allocation3], 8
        %677 = vst.msk [vmem:[%s676] sm:$0xf] %vm636, %v674
        %678 = vrot.lane.b32.xlu0 %v641, 48
        %v679 = vpop.permute.xlu0 %678
        %s681 = scalar_lea.vmem [#allocation4], 8
        %682 = vst.msk [vmem:[%s681] sm:$0xf] %vm636, %v679
        %683 = vrot.lane.b32.xlu0 %v652, 104
        %v684 = vpop.permute.xlu0 %683
        %s686 = scalar_lea.vmem [#allocation2], 12
        %687 = vst.msk [vmem:[%s686] sm:$0xf] %vm636, %v684
        %688 = vrot.lane.b32.xlu0 %v641, 72
        %v689 = vpop.permute.xlu0 %688
        %s691 = scalar_lea.vmem [#allocation3], 12
        %692 = vst.msk [vmem:[%s691] sm:$0xf] %vm636, %v689
        %693 = vrot.lane.b32.xlu0 %v641, 40
        %v694 = vpop.permute.xlu0 %693
        %s696 = scalar_lea.vmem [#allocation4], 12
        %697 = vst.msk [vmem:[%s696] sm:$0xf] %vm636, %v694
        loop: start=0, step=1, limit=4
        $region85: #{tpu_custom_call.1} parent=83 // loop_pre_header
          _
        $region86: #{tpu_custom_call.1} parent=83 // loop_header
          %s699 = sphi 0, %s703
          %p700 = scmp.ge.s32.totalorder %s699, 4
        $region87: #{tpu_custom_call.1} parent=83 // loop_header_branch
          %702 = sbr.rel (%p700) target = $region91
        $region88: #{tpu_custom_call.1} parent=83 // loop_body
          %s704 = smul.addr %s699, 4
          %s705 = scalar_lea.vmem [#allocation2], %s704
          %v706 = vld [vmem:[%s705] sm:$0xf]
          %s707 = smul.addr %s699, 4
          %s708 = scalar_lea.vmem [#allocation3], %s707
          %v709 = vld [vmem:[%s708] sm:$0xf]
          %s710 = smul.addr %s699, 4
          %s711 = scalar_lea.vmem [#allocation4], %s710
          %v712 = vld [vmem:[%s711] sm:$0xf]
          %v714 = vlaneseq
          %v715 = vshrl.u32 %v714, 7
          %v716 = vsub.s32 0, %v715
          %v717 = vrot.slane %v566, %v716
          %vm719 = vcmask 64512
          %v721 = vsel %vm719, %v706, 0
          %v724 = vsel %vm719, %v709, 0
          %726 = vmatprep.subr.bf16.mxu0 0
          %727 = vmatpush1.bf16.xpose.msra.mxu0 0
          %728 = vmatprep.subr.bf16.mxu0 0
          %729 = vmatpush1.bf16.xpose.msra.mxu0 0
          %730 = vmatprep.subr.bf16.mxu0 0
          %731 = vmatpush1.bf16.xpose.msra.mxu0 0
          %732 = vmatprep.subr.bf16.mxu0 0
          %733 = vmatpush1.bf16.xpose.msra.mxu0 0
          %734 = vmatprep.subr.bf16.mxu0 0
          %735 = vmatpush1.bf16.xpose.msra.mxu0 0
          %736 = vmatprep.subr.bf16.mxu0 0
          %737 = vmatpush1.bf16.xpose.msra.mxu0 0
          %738 = vmatprep.subr.bf16.mxu0 0
          %739 = vmatpush1.bf16.xpose.msra.mxu0 0
          %740 = vmatprep.subr.bf16.mxu0 0
          %741 = vmatpush1.bf16.xpose.msra.mxu0 %v724
          %742 = vmatprep.subr.bf16.mxu0 0
          %743 = vmatpush2.bf16.xpose.msra.mxu0 0
          %744 = vmatprep.subr.bf16.mxu0 0
          %745 = vmatpush2.bf16.xpose.msra.mxu0 0
          %746 = vmatprep.subr.bf16.mxu0 0
          %747 = vmatpush2.bf16.xpose.msra.mxu0 0
          %748 = vmatprep.subr.bf16.mxu0 0
          %749 = vmatpush2.bf16.xpose.msra.mxu0 0
          %750 = vmatprep.subr.bf16.mxu0 0
          %751 = vmatpush2.bf16.xpose.msra.mxu0 0
          %752 = vmatprep.subr.bf16.mxu0 0
          %753 = vmatpush2.bf16.xpose.msra.mxu0 0
          %754 = vmatprep.subr.bf16.mxu0 0
          %755 = vmatpush2.bf16.xpose.msra.mxu0 0
          %756 = vmatprep.subr.bf16.mxu0 0
          %757 = vmatpush2.bf16.xpose.msra.mxu0 0
          %758 = vmatprep.mubr.bf16.mxu0 0
          %759 = vmatmul.mubr.bf16.gmra.mxu0 %v721
          %v760 = vpop.f32.mrf.mxu0
          %v761 = vadd.f32 %v717, %v760
          %v762 = vpop.f32.mrf.mxu0
          %v763 = vpop.f32.mrf.mxu0
          %v764 = vpop.f32.mrf.mxu0
          %765 = vdwg.mxu0
          %v766 = vsel %vm719, %v761, -inf
          %767 = vmax.xlane.f32.xlu0 %v766
          %v768 = vpop.xlane.xlu0 %767
          %v769 = vsub.f32 %v761, %v768
          %v770 = vmul.f32 %v769, 1.442695
          %v771 = vpow.pop %v770
          %v772 = vsel %vm719, %v771, 0.0
          %773 = vadd.xlane.f32.xlu0 %v772
          %v774 = vpop.xlane.xlu0 %773
          %v775 = vrcp.pop %v774
          %v776 = vmul.f32 %v771, %v775
          %v777 = vpack.c.bf16 %v776, %v776
          %v779 = vsel %vm719, %v777, 0
          %vm781 = vcmask 1043456
          %v783 = vsel %vm781, %v712, 0
          %785 = vmatprep.subr.bf16.mxu0 0
          %786 = vmatpush1.bf16.msra.mxu0 0
          %787 = vmatprep.subr.bf16.mxu0 0
          %788 = vmatpush1.bf16.msra.mxu0 0
          %789 = vmatprep.subr.bf16.mxu0 0
          %790 = vmatpush1.bf16.msra.mxu0 0
          %791 = vmatprep.subr.bf16.mxu0 0
          %792 = vmatpush1.bf16.msra.mxu0 0
          %793 = vmatprep.subr.bf16.mxu0 0
          %794 = vmatpush1.bf16.msra.mxu0 0
          %795 = vmatprep.subr.bf16.mxu0 0
          %796 = vmatpush1.bf16.msra.mxu0 0
          %797 = vmatprep.subr.bf16.mxu0 0
          %798 = vmatpush1.bf16.msra.mxu0 0
          %799 = vmatprep.subr.bf16.mxu0 0
          %800 = vmatpush1.bf16.msra.mxu0 %v783
          %801 = vmatprep.subr.bf16.mxu0 0
          %802 = vmatpush2.bf16.msra.mxu0 0
          %803 = vmatprep.subr.bf16.mxu0 0
          %804 = vmatpush2.bf16.msra.mxu0 0
          %805 = vmatprep.subr.bf16.mxu0 0
          %806 = vmatpush2.bf16.msra.mxu0 0
          %807 = vmatprep.subr.bf16.mxu0 0
          %808 = vmatpush2.bf16.msra.mxu0 0
          %809 = vmatprep.subr.bf16.mxu0 0
          %810 = vmatpush2.bf16.msra.mxu0 0
          %811 = vmatprep.subr.bf16.mxu0 0
          %812 = vmatpush2.bf16.msra.mxu0 0
          %813 = vmatprep.subr.bf16.mxu0 0
          %814 = vmatpush2.bf16.msra.mxu0 0
          %815 = vmatprep.subr.bf16.mxu0 0
          %816 = vmatpush2.bf16.msra.mxu0 0
          %817 = vmatprep.mubr.bf16.mxu0 0
          %818 = vmatmul.mubr.bf16.gmra.mxu0 %v779
          %v819 = vpop.f32.mrf.mxu0
          %v820 = vadd.f32 0.0, %v819
          %v821 = vpop.f32.mrf.mxu0
          %v822 = vpop.f32.mrf.mxu0
          %v823 = vpop.f32.mrf.mxu0
          %824 = vdwg.mxu0
          %v825 = vpack.c.bf16 %v820, %v820
          %s826 = smul.addr %s699, 4
          %s827 = scalar_lea.vmem [#allocation5], %s826
          %828 = vst.msk [vmem:[%s827] sm:$0xf] %vm636, %v825
        $region89: #{tpu_custom_call.1} parent=83 // loop_footer
          %s703 = sadd.s32 1, %s699
        $region90: #{tpu_custom_call.1} parent=83 // loop_footer_branch
          %698 = sbr.rel target = $region86
        $region91: #{tpu_custom_call.1} parent=83 // loop_exit
          _
        %v829 = vld [vmem:[#allocation5] sm:$0xf]
        %s830 = scalar_lea.vmem [#allocation5], 4
        %v831 = vld [vmem:[%s830] sm:$0xf]
        %s832 = scalar_lea.vmem [#allocation5], 8
        %v833 = vld [vmem:[%s832] sm:$0xf]
        %s834 = scalar_lea.vmem [#allocation5], 12
        %v835 = vld [vmem:[%s834] sm:$0xf]
        %v837 = vunpack.c.l.b16 %v831
        %v838 = vpack.c.b16 %v837, %v837
        %839 = vrot.lane.b32.xlu0 %v838, 8
        %v840 = vpop.permute.xlu0 %839
        %v842 = vunpack.c.l.b16 %v833
        %v843 = vpack.c.b16 %v842, %v842
        %844 = vrot.lane.b32.xlu0 %v843, 16
        %v845 = vpop.permute.xlu0 %844
        %v847 = vunpack.c.l.b16 %v835
        %v848 = vpack.c.b16 %v847, %v847
        %849 = vrot.lane.b32.xlu0 %v848, 24
        %v850 = vpop.permute.xlu0 %849
        %vm851 = vcmask 64512
        %v854 = vsel %vm851, %v829, %v840
        %vm855 = vcmask 130048
        %v857 = vsel %vm855, %v854, %v845
        %vm858 = vcmask 195584
        %v860 = vsel %vm858, %v857, %v850
        %v861 = vld [vmem:[%s6] sm:$0xf]
        %v862 = vld [vmem:[%s6 + $0x4] sm:$0xf]
        %v863 = vld [vmem:[%s6 + $0x8] sm:$0xf]
        %v864 = vld [vmem:[%s6 + $0xc] sm:$0xf]
        %v865 = vld [vmem:[%s7] sm:$0x1]
        %v867 = vlaneseq
        %v868 = vshrl.u32 %v867, 7
        %v869 = vsub.s32 0, %v868
        %v870 = vrot.slane %v865, %v869
        %v876 = vunpack.c.l.b16 %v861
        %v877 = vunpack.c.l.b16 %v862
        %v878 = vunpack.c.l.b16 %v863
        %v879 = vunpack.c.l.b16 %v864
        %v880 = vpack.c.b16 %v877, %v876
        %v881 = vpack.c.b16 %v879, %v878
        %v884 = vsel %vm535, %v860, 0
        %886 = vmatprep.subr.bf16.mxu0 0
        %887 = vmatpush1.bf16.msra.mxu0 0
        %888 = vmatprep.subr.bf16.mxu0 0
        %889 = vmatpush1.bf16.msra.mxu0 0
        %890 = vmatprep.subr.bf16.mxu0 0
        %891 = vmatpush1.bf16.msra.mxu0 0
        %892 = vmatprep.subr.bf16.mxu0 0
        %893 = vmatpush1.bf16.msra.mxu0 0
        %894 = vmatprep.subr.bf16.mxu0 0
        %895 = vmatpush1.bf16.msra.mxu0 0
        %896 = vmatprep.subr.bf16.mxu0 0
        %897 = vmatpush1.bf16.msra.mxu0 0
        %898 = vmatprep.subr.bf16.mxu0 0
        %899 = vmatpush1.bf16.msra.mxu0 %v881
        %900 = vmatprep.subr.bf16.mxu0 0
        %901 = vmatpush1.bf16.msra.mxu0 %v880
        %902 = vmatprep.subr.bf16.mxu0 0
        %903 = vmatpush2.bf16.msra.mxu0 0
        %904 = vmatprep.subr.bf16.mxu0 0
        %905 = vmatpush2.bf16.msra.mxu0 0
        %906 = vmatprep.subr.bf16.mxu0 0
        %907 = vmatpush2.bf16.msra.mxu0 0
        %908 = vmatprep.subr.bf16.mxu0 0
        %909 = vmatpush2.bf16.msra.mxu0 0
        %910 = vmatprep.subr.bf16.mxu0 0
        %911 = vmatpush2.bf16.msra.mxu0 0
        %912 = vmatprep.subr.bf16.mxu0 0
        %913 = vmatpush2.bf16.msra.mxu0 0
        %914 = vmatprep.subr.bf16.mxu0 0
        %915 = vmatpush2.bf16.msra.mxu0 0
        %916 = vmatprep.subr.bf16.mxu0 0
        %917 = vmatpush2.bf16.msra.mxu0 0
        %918 = vmatprep.mubr.bf16.mxu0 0
        %919 = vmatmul.mubr.bf16.gmra.mxu0 %v884
        %v920 = vpop.f32.mrf.mxu0
        %v921 = vadd.f32 %v870, %v920
        %v922 = vpop.f32.mrf.mxu0
        %v923 = vpop.f32.mrf.mxu0
        %v924 = vpop.f32.mrf.mxu0
        %925 = vdwg.mxu0
        %v926 = vadd.f32 %v563, %v921
        %v927 = vld [vmem:[%s8] sm:$0x1]
        %v928 = vld [vmem:[%s9] sm:$0x1]
        %v929 = vsel %vm535, %v926, 0.0
        %930 = vadd.xlane.f32.xlu0 %v929
        %v931 = vpop.xlane.xlu0 %930
        %v932 = vmul.f32 %v931, %v539
        %v933 = vsub.f32 %v926, %v932
        %v934 = vmul.f32 %v933, %v933
        %v935 = vsel %vm535, %v934, 0.0
        %936 = vadd.xlane.f32.xlu0 %v935
        %v937 = vpop.xlane.xlu0 %936
        %v938 = vmul.f32 %v937, %v539
        %v939 = vadd.f32 %v938, 1e-05
        %v940 = vrsqrt.pop %v939
        %v941 = vmul.f32 %v933, %v940
        %v943 = vlaneseq
        %v944 = vshrl.u32 %v943, 7
        %v945 = vsub.s32 0, %v944
        %v946 = vrot.slane %v927, %v945
        %v948 = vmul.f32 %v941, %v946
        %v950 = vlaneseq
        %v951 = vshrl.u32 %v950, 7
        %v952 = vsub.s32 0, %v951
        %v953 = vrot.slane %v928, %v952
        %v955 = vadd.f32 %v948, %v953
        %v956 = vpack.c.bf16 %v955, %v955
        %v957 = vld [vmem:[%s10] sm:$0xf]
        %v958 = vld [vmem:[%s10 + $0x4] sm:$0xf]
        %v959 = vld [vmem:[%s10 + $0x8] sm:$0xf]
        %v960 = vld [vmem:[%s10 + $0xc] sm:$0xf]
        %v961 = vld [vmem:[%s11] sm:$0x1]
        %v963 = vlaneseq
        %v964 = vshrl.u32 %v963, 7
        %v965 = vsub.s32 0, %v964
        %v966 = vrot.slane %v961, %v965
        %v972 = vunpack.c.l.b16 %v957
        %v973 = vunpack.c.l.b16 %v958
        %v974 = vunpack.c.l.b16 %v959
        %v975 = vunpack.c.l.b16 %v960
        %v976 = vpack.c.b16 %v973, %v972
        %v977 = vpack.c.b16 %v975, %v974
        %v981 = vsel %vm535, %v956, 0
        %983 = vmatprep.subr.bf16.mxu0 0
        %984 = vmatpush1.bf16.msra.mxu0 0
        %985 = vmatprep.subr.bf16.mxu0 0
        %986 = vmatpush1.bf16.msra.mxu0 0
        %987 = vmatprep.subr.bf16.mxu0 0
        %988 = vmatpush1.bf16.msra.mxu0 0
        %989 = vmatprep.subr.bf16.mxu0 0
        %990 = vmatpush1.bf16.msra.mxu0 0
        %991 = vmatprep.subr.bf16.mxu0 0
        %992 = vmatpush1.bf16.msra.mxu0 0
        %993 = vmatprep.subr.bf16.mxu0 0
        %994 = vmatpush1.bf16.msra.mxu0 0
        %995 = vmatprep.subr.bf16.mxu0 0
        %996 = vmatpush1.bf16.msra.mxu0 %v977
        %997 = vmatprep.subr.bf16.mxu0 0
        %998 = vmatpush1.bf16.msra.mxu0 %v976
        %999 = vmatprep.subr.bf16.mxu0 0
        %1000 = vmatpush2.bf16.msra.mxu0 0
        %1001 = vmatprep.subr.bf16.mxu0 0
        %1002 = vmatpush2.bf16.msra.mxu0 0
        %1003 = vmatprep.subr.bf16.mxu0 0
        %1004 = vmatpush2.bf16.msra.mxu0 0
        %1005 = vmatprep.subr.bf16.mxu0 0
        %1006 = vmatpush2.bf16.msra.mxu0 0
        %1007 = vmatprep.subr.bf16.mxu0 0
        %1008 = vmatpush2.bf16.msra.mxu0 0
        %1009 = vmatprep.subr.bf16.mxu0 0
        %1010 = vmatpush2.bf16.msra.mxu0 0
        %1011 = vmatprep.subr.bf16.mxu0 0
        %1012 = vmatpush2.bf16.msra.mxu0 0
        %1013 = vmatprep.subr.bf16.mxu0 0
        %1014 = vmatpush2.bf16.msra.mxu0 0
        %1015 = vmatprep.mubr.bf16.mxu0 0
        %1016 = vmatmul.mubr.bf16.gmra.mxu0 %v981
        %v1017 = vpop.f32.mrf.mxu0
        %v1018 = vadd.f32 %v966, %v1017
        %v1019 = vpop.f32.mrf.mxu0
        %v1020 = vpop.f32.mrf.mxu0
        %v1021 = vpop.f32.mrf.mxu0
        %1022 = vdwg.mxu0
        %v1023 = vmul.f32 %v1018, 0.5
        %v1024 = vmul.f32 %v1018, 0.044715
        %v1025 = vmul.f32 %v1024, %v1018
        %v1026 = vmul.f32 %v1025, %v1018
        %v1027 = vadd.f32 %v1018, %v1026
        %v1028 = vmul.f32 %v1027, 0.7978846
        %v1029 = vtanh.pop %v1028
        %v1030 = vadd.f32 %v1029, 1.0
        %v1031 = vmul.f32 %v1023, %v1030
        %v1032 = vpack.c.bf16 %v1031, %v1031
        %v1033 = vld [vmem:[%s12] sm:$0xf]
        %v1034 = vld [vmem:[%s12 + $0x4] sm:$0xf]
        %v1035 = vld [vmem:[%s12 + $0x8] sm:$0xf]
        %v1036 = vld [vmem:[%s12 + $0xc] sm:$0xf]
        %v1037 = vld [vmem:[%s12 + $0x10] sm:$0xf]
        %v1038 = vld [vmem:[%s12 + $0x14] sm:$0xf]
        %v1039 = vld [vmem:[%s12 + $0x18] sm:$0xf]
        %v1040 = vld [vmem:[%s12 + $0x1c] sm:$0xf]
        %v1041 = vld [vmem:[%s12 + $0x20] sm:$0xf]
        %v1042 = vld [vmem:[%s12 + $0x24] sm:$0xf]
        %v1043 = vld [vmem:[%s12 + $0x28] sm:$0xf]
        %v1044 = vld [vmem:[%s12 + $0x2c] sm:$0xf]
        %v1045 = vld [vmem:[%s12 + $0x30] sm:$0xf]
        %v1046 = vld [vmem:[%s12 + $0x34] sm:$0xf]
        %v1047 = vld [vmem:[%s12 + $0x38] sm:$0xf]
        %v1048 = vld [vmem:[%s12 + $0x3c] sm:$0xf]
        %v1049 = vld [vmem:[%s13] sm:$0x1]
        %v1051 = vlaneseq
        %v1052 = vshrl.u32 %v1051, 7
        %v1053 = vsub.s32 0, %v1052
        %v1054 = vrot.slane %v1049, %v1053
        %v1072 = vunpack.c.l.b16 %v1033
        %v1073 = vunpack.c.l.b16 %v1034
        %v1074 = vunpack.c.l.b16 %v1035
        %v1075 = vunpack.c.l.b16 %v1036
        %v1076 = vunpack.c.l.b16 %v1037
        %v1077 = vunpack.c.l.b16 %v1038
        %v1078 = vunpack.c.l.b16 %v1039
        %v1079 = vunpack.c.l.b16 %v1040
        %v1080 = vunpack.c.l.b16 %v1041
        %v1081 = vunpack.c.l.b16 %v1042
        %v1082 = vunpack.c.l.b16 %v1043
        %v1083 = vunpack.c.l.b16 %v1044
        %v1084 = vunpack.c.l.b16 %v1045
        %v1085 = vunpack.c.l.b16 %v1046
        %v1086 = vunpack.c.l.b16 %v1047
        %v1087 = vunpack.c.l.b16 %v1048
        %v1088 = vpack.c.b16 %v1073, %v1072
        %v1089 = vpack.c.b16 %v1075, %v1074
        %v1090 = vpack.c.b16 %v1077, %v1076
        %v1091 = vpack.c.b16 %v1079, %v1078
        %v1092 = vpack.c.b16 %v1081, %v1080
        %v1093 = vpack.c.b16 %v1083, %v1082
        %v1094 = vpack.c.b16 %v1085, %v1084
        %v1095 = vpack.c.b16 %v1087, %v1086
        %1104 = vmatprep.subr.bf16.mxu0 0
        %1105 = vmatpush1.bf16.msra.mxu0 %v1095
        %1106 = vmatprep.subr.bf16.mxu0 0
        %1107 = vmatpush1.bf16.msra.mxu0 %v1094
        %1108 = vmatprep.subr.bf16.mxu0 0
        %1109 = vmatpush1.bf16.msra.mxu0 %v1093
        %1110 = vmatprep.subr.bf16.mxu0 0
        %1111 = vmatpush1.bf16.msra.mxu0 %v1092
        %1112 = vmatprep.subr.bf16.mxu0 0
        %1113 = vmatpush1.bf16.msra.mxu0 %v1091
        %1114 = vmatprep.subr.bf16.mxu0 0
        %1115 = vmatpush1.bf16.msra.mxu0 %v1090
        %1116 = vmatprep.subr.bf16.mxu0 0
        %1117 = vmatpush1.bf16.msra.mxu0 %v1089
        %1118 = vmatprep.subr.bf16.mxu0 0
        %1119 = vmatpush1.bf16.msra.mxu0 %v1088
        %1120 = vmatprep.subr.bf16.mxu0 0
        %1121 = vmatpush2.bf16.msra.mxu0 0
        %1122 = vmatprep.subr.bf16.mxu0 0
        %1123 = vmatpush2.bf16.msra.mxu0 0
        %1124 = vmatprep.subr.bf16.mxu0 0
        %1125 = vmatpush2.bf16.msra.mxu0 0
        %1126 = vmatprep.subr.bf16.mxu0 0
        %1127 = vmatpush2.bf16.msra.mxu0 0
        %1128 = vmatprep.subr.bf16.mxu0 0
        %1129 = vmatpush2.bf16.msra.mxu0 0
        %1130 = vmatprep.subr.bf16.mxu0 0
        %1131 = vmatpush2.bf16.msra.mxu0 0
        %1132 = vmatprep.subr.bf16.mxu0 0
        %1133 = vmatpush2.bf16.msra.mxu0 0
        %1134 = vmatprep.subr.bf16.mxu0 0
        %1135 = vmatpush2.bf16.msra.mxu0 0
        %1136 = vmatprep.mubr.bf16.mxu0 0
        %1137 = vmatmul.mubr.bf16.gmra.mxu0 %v1032
        %v1138 = vpop.f32.mrf.mxu0
        %v1139 = vadd.f32 %v1054, %v1138
        %v1140 = vpop.f32.mrf.mxu0
        %v1141 = vpop.f32.mrf.mxu0
        %v1142 = vpop.f32.mrf.mxu0
        %1143 = vdwg.mxu0
        %v1144 = vadd.f32 %v955, %v1139
        %v1145 = vld [vmem:[%s14] sm:$0x1]
        %v1146 = vld [vmem:[%s15] sm:$0x1]
        %v1147 = vsel %vm535, %v1144, 0.0
        %1148 = vadd.xlane.f32.xlu0 %v1147
        %v1149 = vpop.xlane.xlu0 %1148
        %v1150 = vmul.f32 %v1149, %v539
        %v1151 = vsub.f32 %v1144, %v1150
        %v1152 = vmul.f32 %v1151, %v1151
        %v1153 = vsel %vm535, %v1152, 0.0
        %1154 = vadd.xlane.f32.xlu0 %v1153
        %v1155 = vpop.xlane.xlu0 %1154
        %v1156 = vmul.f32 %v1155, %v539
        %v1157 = vadd.f32 %v1156, 1e-05
        %v1158 = vrsqrt.pop %v1157
        %v1159 = vmul.f32 %v1151, %v1158
        %v1161 = vlaneseq
        %v1162 = vshrl.u32 %v1161, 7
        %v1163 = vsub.s32 0, %v1162
        %v1164 = vrot.slane %v1145, %v1163
        %v1166 = vmul.f32 %v1159, %v1164
        %v1168 = vlaneseq
        %v1169 = vshrl.u32 %v1168, 7
        %v1170 = vsub.s32 0, %v1169
        %v1171 = vrot.slane %v1146, %v1170
        %v1173 = vadd.f32 %v1166, %v1171
        %1174 = vst.msk [vmem:[%s523] sm:$0xff] %vm535, %v1173
        %s1175 = sand.u32 %s384, 1
        %s1176 = scalar_lea.sflag [#allocation7], %s1175
        %s1177 = sand.u32 %s384, 1
        %s1178 = smul.addr %s1177, 8
        %s1179 = scalar_lea.vmem [#allocation6], %s1178
        // Predicated region
        $region92: #{tpu_custom_call.1} parent=83 // pred_check
          %p1180 = pneg %p394
        $region93: #{tpu_custom_call.1} parent=83 // pred_check_branch
          %1182 = sbr.rel (%p1180) target = $region95
        $region94: #{tpu_custom_call.1} parent=83 // pred_region
          %s1184 = ssub.s32 128, 128
          %1185 = vsyncadd %s1176, %s1184
          %s1186 = smul.addr %s30, 128
          %s1187 = scalar_lea.hbm %s16, %s1186
          %s1189 = sshll.u32 %s1179, 4
          %s1190 = int_to_ptr.vmem [resolvable:$true] %s1189
          %1192 = dma.vmem_to_hbm [thread:$0]  %s1190, 128, %s1187, %s1176
        $region95: #{tpu_custom_call.1} parent=83 // pred_fallthru
          _
      $region84: #{tpu_custom_call.1} parent=5 // pred_fallthru
        _
      %p1193 = scmp.le.s32.totalorder 2, %s25
      // Predicated region
      $region96: #{tpu_custom_call.1} parent=5 // pred_check
        %p1194 = pneg %p1193
      $region97: #{tpu_custom_call.1} parent=5 // pred_check_branch
        %1196 = sbr.rel (%p1194) target = $region99
      $region98: #{tpu_custom_call.1} parent=5 // pred_region
        %s1197 = ssub.s32 %s25, 2
        // Predicated region
        $region100: #{tpu_custom_call.1} parent=98 // pred_check
          %p1198 = pneg %p400
        $region101: #{tpu_custom_call.1} parent=98 // pred_check_branch
          %1200 = sbr.rel (%p1198) target = $region103
        $region102: #{tpu_custom_call.1} parent=98 // pred_region
          %s1201 = sand.u32 %s385, 1
          %s1202 = scalar_lea.sflag [#allocation7], %s1201
          %s1203 = sand.u32 %s385, 1
          %s1204 = smul.addr %s1203, 8
          %s1205 = scalar_lea.vmem [#allocation6], %s1204
          %1206 = dma.done %s1202, 128
        $region103: #{tpu_custom_call.1} parent=98 // pred_fallthru
          _
      $region99: #{tpu_custom_call.1} parent=5 // pred_fallthru
        _
    $region6: #{tpu_custom_call.1} parent=1 // loop_footer
      %s29 = sadd.s32 1, %s25
    $region7: #{tpu_custom_call.1} parent=1 // loop_footer_branch
      %24 = sbr.rel target = $region3
    $region8: #{tpu_custom_call.1} parent=1 // loop_exit
      _
    %1207 = vsyncpa [#allocation7], 1
    %s1208 = scalar_lea.sflag [#allocation7], 1
    %1209 = vsyncpa %s1208, 1

// kernel: tpu_custom_call.1
$region0: #{tpu_custom_call.1}
  #allocation0 [shape = 'u32[]', space=smem, size = 0x4, offset = 0x4, fixed_abs, tag = 'smem constant byte address 0x4 - core index']
  #allocation1 [shape = 'u32[144,128]{1,0:T(1,128)}', space=vmem, size = 0x12000, scoped, tag = 'internal scratch']
  #allocation2 [shape = 'bf16[4,8,8]{2,1,0:T(8,128)(2,1)}', space=vmem, size = 0x2000, scoped, tag = 'scratch operand']
  #allocation3 [shape = 'bf16[4,8,8]{2,1,0:T(8,128)(2,1)}', space=vmem, size = 0x2000, scoped, tag = 'scratch operand']
  #allocation4 [shape = 'bf16[4,8,8]{2,1,0:T(8,128)(2,1)}', space=vmem, size = 0x2000, scoped, tag = 'scratch operand']
  #allocation5 [shape = 'bf16[4,8,8]{2,1,0:T(8,128)(2,1)}', space=vmem, size = 0x2000, scoped, tag = 'scratch operand']
  %s0 = inlined_call_operand.vmem [shape: f32[2,8,32], index: 0, kind: input, shape index: {}]
  %s1 = inlined_call_operand.vmem [shape: f32[2,1,8], index: 1, kind: input, shape index: {}]
  %s2 = inlined_call_operand.vmem [shape: f32[1,32], index: 2, kind: input, shape index: {}]
  %s3 = inlined_call_operand.vmem [shape: f32[1,32], index: 3, kind: input, shape index: {}]
  %s4 = inlined_call_operand.vmem [shape: bf16[32,96], index: 4, kind: input, shape index: {}]
  %s5 = inlined_call_operand.vmem [shape: f32[1,96], index: 5, kind: input, shape index: {}]
  %s6 = inlined_call_operand.vmem [shape: bf16[32,32], index: 6, kind: input, shape index: {}]
  %s7 = inlined_call_operand.vmem [shape: f32[1,32], index: 7, kind: input, shape index: {}]
  %s8 = inlined_call_operand.vmem [shape: f32[1,32], index: 8, kind: input, shape index: {}]
  %s9 = inlined_call_operand.vmem [shape: f32[1,32], index: 9, kind: input, shape index: {}]
  %s10 = inlined_call_operand.vmem [shape: bf16[32,128], index: 10, kind: input, shape index: {}]
  %s11 = inlined_call_operand.vmem [shape: f32[1,128], index: 11, kind: input, shape index: {}]
  %s12 = inlined_call_operand.vmem [shape: bf16[128,32], index: 12, kind: input, shape index: {}]
  %s13 = inlined_call_operand.vmem [shape: f32[1,32], index: 13, kind: input, shape index: {}]
  %s14 = inlined_call_operand.vmem [shape: f32[1,32], index: 14, kind: input, shape index: {}]
  %s15 = inlined_call_operand.vmem [shape: f32[1,32], index: 15, kind: input, shape index: {}]
  %s16 = inlined_call_operand.hbm [shape: f32[2,8,32], index: 16, kind: output, shape index: {}]
  %s17 = sld [smem:[#allocation0]]
  $region104: #{tpu_custom_call.1} parent=0
    _
  %s19 = ssub.s32 1, %s17
  %s20 = scalar_select 0, %s19, %s17
  $region1: #{tpu_custom_call.1} parent=0
    #allocation6 [shape = 'u8[8192]{0}', space=vmem, size = 0x2000, scoped, tag = 'output window, operand 0']
    #allocation7 [shape = 's32[2]{0}', space=sflag, size = 0x8, scoped, tag = 'scoped memory for tpu_custom_call.1']
    %21 = vsyncpa [#allocation7], 0
    %s22 = scalar_lea.sflag [#allocation7], 1
    %23 = vsyncpa %s22, 0
    loop: start=0, step=1, limit=4
    $region2: #{tpu_custom_call.1} parent=1 // loop_pre_header
      _
    $region3: #{tpu_custom_call.1} parent=1 // loop_header
      %s25 = sphi 0, %s29
      %p26 = scmp.ge.s32.totalorder %s25, 4
      %s35 = sphi 0, %s37
      %s38 = sphi 0, %s35
      %s39 = sphi 0, %s38
      %s55 = sphi 0, %s39
      %s61 = sphi 0, %s63
      %s64 = sphi 0, %s61
      %s65 = sphi 0, %s64
      %s81 = sphi 0, %s65
      %s85 = sphi 0, %s85
      %s87 = sphi 0, %s85
      %s88 = sphi 0, %s87
      %s102 = sphi 0, %s88
      %s106 = sphi 0, %s106
      %s108 = sphi 0, %s106
      %s109 = sphi 0, %s108
      %s123 = sphi 0, %s109
      %s127 = sphi 0, %s127
      %s129 = sphi 0, %s127
      %s130 = sphi 0, %s129
      %s144 = sphi 0, %s130
      %s148 = sphi 0, %s148
      %s150 = sphi 0, %s148
      %s151 = sphi 0, %s150
      %s165 = sphi 0, %s151
      %s169 = sphi 0, %s169
      %s171 = sphi 0, %s169
      %s172 = sphi 0, %s171
      %s186 = sphi 0, %s172
      %s190 = sphi 0, %s190
      %s192 = sphi 0, %s190
      %s193 = sphi 0, %s192
      %s207 = sphi 0, %s193
      %s211 = sphi 0, %s211
      %s213 = sphi 0, %s211
      %s214 = sphi 0, %s213
      %s228 = sphi 0, %s214
      %s232 = sphi 0, %s232
      %s234 = sphi 0, %s232
      %s235 = sphi 0, %s234
      %s249 = sphi 0, %s235
      %s253 = sphi 0, %s253
      %s255 = sphi 0, %s253
      %s256 = sphi 0, %s255
      %s270 = sphi 0, %s256
      %s274 = sphi 0, %s274
      %s276 = sphi 0, %s274
      %s277 = sphi 0, %s276
      %s291 = sphi 0, %s277
      %s295 = sphi 0, %s295
      %s297 = sphi 0, %s295
      %s298 = sphi 0, %s297
      %s312 = sphi 0, %s298
      %s316 = sphi 0, %s316
      %s318 = sphi 0, %s316
      %s319 = sphi 0, %s318
      %s333 = sphi 0, %s319
      %s337 = sphi 0, %s337
      %s339 = sphi 0, %s337
      %s340 = sphi 0, %s339
      %s354 = sphi 0, %s340
      %s358 = sphi 0, %s358
      %s360 = sphi 0, %s358
      %s361 = sphi 0, %s360
      %s375 = sphi 0, %s361
      %s381 = sphi 0, %s383
      %s384 = sphi 0, %s381
      %s385 = sphi 0, %s384
      %s401 = sphi 0, %s385
    $region4: #{tpu_custom_call.1} parent=1 // loop_header_branch
      %28 = sbr.rel (%p26) target = $region8
    $region5: #{tpu_custom_call.1} parent=1 // loop_body
      %s30 = ssub.s32 %s25, 1
      %s31 = ssub.s32 %s25, 2
      %s32 = sadd.s32 %s25, 1
      %s33 = ssub.s32 %s25, %s32
      %p34 = scmp.eq.s32.totalorder %s33, 0
      %s36 = sadd.s32 %s35, 1
      %s37 = scalar_select %p34, %s35, %s36
      %p40 = pneg %p34
      %p41 = scmp.eq.s32.totalorder %s25, 1
      %p42 = por %p40, %p41
      %p43 = scmp.ne.s32.totalorder %s35, %s38
      %p44 = scmp.eq.s32.totalorder %s25, 0
      %p45 = por %p43, %p44
      %p46 = scmp.ne.s32.totalorder %s35, %s38
      %p47 = scmp.eq.s32.totalorder %s30, 1
      %p48 = por %p46, %p47
      %p49 = scmp.ne.s32.totalorder %s38, %s39
      %p50 = scmp.eq.s32.totalorder %s30, 0
      %p51 = por %p49, %p50
      %p52 = scmp.ne.s32.totalorder %s38, %s39
      %p53 = scmp.eq.s32.totalorder %s31, 1
      %p54 = por %p52, %p53
      %p56 = scmp.ne.s32.totalorder %s39, %s55
      %p57 = scmp.eq.s32.totalorder %s31, 0
      %p58 = por %p56, %p57
      %s59 = ssub.s32 %s25, %s32
      %p60 = scmp.eq.s32.totalorder %s59, 0
      %s62 = sadd.s32 %s61, 1
      %s63 = scalar_select %p60, %s61, %s62
      %p66 = pneg %p60
      %p67 = scmp.eq.s32.totalorder %s25, 1
      %p68 = por %p66, %p67
      %p69 = scmp.ne.s32.totalorder %s61, %s64
      %p70 = scmp.eq.s32.totalorder %s25, 0
      %p71 = por %p69, %p70
      %p72 = scmp.ne.s32.totalorder %s61, %s64
      %p73 = scmp.eq.s32.totalorder %s30, 1
      %p74 = por %p72, %p73
      %p75 = scmp.ne.s32.totalorder %s64, %s65
      %p76 = scmp.eq.s32.totalorder %s30, 0
      %p77 = por %p75, %p76
      %p78 = scmp.ne.s32.totalorder %s64, %s65
      %p79 = scmp.eq.s32.totalorder %s31, 1
      %p80 = por %p78, %p79
      %p82 = scmp.ne.s32.totalorder %s65, %s81
      %p83 = scmp.eq.s32.totalorder %s31, 0
      %p84 = por %p82, %p83
      %s86 = sadd.s32 %s85, 1
      %p89 = scmp.eq.s32.totalorder %s25, 1
      %p90 = scmp.ne.s32.totalorder %s85, %s87
      %p91 = scmp.eq.s32.totalorder %s25, 0
      %p92 = por %p90, %p91
      %p93 = scmp.ne.s32.totalorder %s85, %s87
      %p94 = scmp.eq.s32.totalorder %s30, 1
      %p95 = por %p93, %p94
      %p96 = scmp.ne.s32.totalorder %s87, %s88
      %p97 = scmp.eq.s32.totalorder %s30, 0
      %p98 = por %p96, %p97
      %p99 = scmp.ne.s32.totalorder %s87, %s88
      %p100 = scmp.eq.s32.totalorder %s31, 1
      %p101 = por %p99, %p100
      %p103 = scmp.ne.s32.totalorder %s88, %s102
      %p104 = scmp.eq.s32.totalorder %s31, 0
      %p105 = por %p103, %p104
      %s107 = sadd.s32 %s106, 1
      %p110 = scmp.eq.s32.totalorder %s25, 1
      %p111 = scmp.ne.s32.totalorder %s106, %s108
      %p112 = scmp.eq.s32.totalorder %s25, 0
      %p113 = por %p111, %p112
      %p114 = scmp.ne.s32.totalorder %s106, %s108
      %p115 = scmp.eq.s32.totalorder %s30, 1
      %p116 = por %p114, %p115
      %p117 = scmp.ne.s32.totalorder %s108, %s109
      %p118 = scmp.eq.s32.totalorder %s30, 0
      %p119 = por %p117, %p118
      %p120 = scmp.ne.s32.totalorder %s108, %s109
      %p121 = scmp.eq.s32.totalorder %s31, 1
      %p122 = por %p120, %p121
      %p124 = scmp.ne.s32.totalorder %s109, %s123
      %p125 = scmp.eq.s32.totalorder %s31, 0
      %p126 = por %p124, %p125
      %s128 = sadd.s32 %s127, 1
      %p131 = scmp.eq.s32.totalorder %s25, 1
      %p132 = scmp.ne.s32.totalorder %s127, %s129
      %p133 = scmp.eq.s32.totalorder %s25, 0
      %p134 = por %p132, %p133
      %p135 = scmp.ne.s32.totalorder %s127, %s129
      %p136 = scmp.eq.s32.totalorder %s30, 1
      %p137 = por %p135, %p136
      %p138 = scmp.ne.s32.totalorder %s129, %s130
      %p139 = scmp.eq.s32.totalorder %s30, 0
      %p140 = por %p138, %p139
      %p141 = scmp.ne.s32.totalorder %s129, %s130
      %p142 = scmp.eq.s32.totalorder %s31, 1
      %p143 = por %p141, %p142
      %p145 = scmp.ne.s32.totalorder %s130, %s144
      %p146 = scmp.eq.s32.totalorder %s31, 0
      %p147 = por %p145, %p146
      %s149 = sadd.s32 %s148, 1
      %p152 = scmp.eq.s32.totalorder %s25, 1
      %p153 = scmp.ne.s32.totalorder %s148, %s150
      %p154 = scmp.eq.s32.totalorder %s25, 0
      %p155 = por %p153, %p154
      %p156 = scmp.ne.s32.totalorder %s148, %s150
      %p157 = scmp.eq.s32.totalorder %s30, 1
      %p158 = por %p156, %p157
      %p159 = scmp.ne.s32.totalorder %s150, %s151
      %p160 = scmp.eq.s32.totalorder %s30, 0
      %p161 = por %p159, %p160
      %p162 = scmp.ne.s32.totalorder %s150, %s151
      %p163 = scmp.eq.s32.totalorder %s31, 1
      %p164 = por %p162, %p163
      %p166 = scmp.ne.s32.totalorder %s151, %s165
      %p167 = scmp.eq.s32.totalorder %s31, 0
      %p168 = por %p166, %p167
      %s170 = sadd.s32 %s169, 1
      %p173 = scmp.eq.s32.totalorder %s25, 1
      %p174 = scmp.ne.s32.totalorder %s169, %s171
      %p175 = scmp.eq.s32.totalorder %s25, 0
      %p176 = por %p174, %p175
      %p177 = scmp.ne.s32.totalorder %s169, %s171
      %p178 = scmp.eq.s32.totalorder %s30, 1
      %p179 = por %p177, %p178
      %p180 = scmp.ne.s32.totalorder %s171, %s172
      %p181 = scmp.eq.s32.totalorder %s30, 0
      %p182 = por %p180, %p181
      %p183 = scmp.ne.s32.totalorder %s171, %s172
      %p184 = scmp.eq.s32.totalorder %s31, 1
      %p185 = por %p183, %p184
      %p187 = scmp.ne.s32.totalorder %s172, %s186
      %p188 = scmp.eq.s32.totalorder %s31, 0
      %p189 = por %p187, %p188
      %s191 = sadd.s32 %s190, 1
      %p194 = scmp.eq.s32.totalorder %s25, 1
      %p195 = scmp.ne.s32.totalorder %s190, %s192
      %p196 = scmp.eq.s32.totalorder %s25, 0
      %p197 = por %p195, %p196
      %p198 = scmp.ne.s32.totalorder %s190, %s192
      %p199 = scmp.eq.s32.totalorder %s30, 1
      %p200 = por %p198, %p199
      %p201 = scmp.ne.s32.totalorder %s192, %s193
      %p202 = scmp.eq.s32.totalorder %s30, 0
      %p203 = por %p201, %p202
      %p204 = scmp.ne.s32.totalorder %s192, %s193
      %p205 = scmp.eq.s32.totalorder %s31, 1
      %p206 = por %p204, %p205
      %p208 = scmp.ne.s32.totalorder %s193, %s207
      %p209 = scmp.eq.s32.totalorder %s31, 0
      %p210 = por %p208, %p209
      %s212 = sadd.s32 %s211, 1
      %p215 = scmp.eq.s32.totalorder %s25, 1
      %p216 = scmp.ne.s32.totalorder %s211, %s213
      %p217 = scmp.eq.s32.totalorder %s25, 0
      %p218 = por %p216, %p217
      %p219 = scmp.ne.s32.totalorder %s211, %s213
      %p220 = scmp.eq.s32.totalorder %s30, 1
      %p221 = por %p219, %p220
      %p222 = scmp.ne.s32.totalorder %s213, %s214
      %p223 = scmp.eq.s32.totalorder %s30, 0
      %p224 = por %p222, %p223
      %p225 = scmp.ne.s32.totalorder %s213, %s214
      %p226 = scmp.eq.s32.totalorder %s31, 1
      %p227 = por %p225, %p226
      %p229 = scmp.ne.s32.totalorder %s214, %s228
      %p230 = scmp.eq.s32.totalorder %s31, 0
      %p231 = por %p229, %p230
      %s233 = sadd.s32 %s232, 1
      %p236 = scmp.eq.s32.totalorder %s25, 1
      %p237 = scmp.ne.s32.totalorder %s232, %s234
      %p238 = scmp.eq.s32.totalorder %s25, 0
      %p239 = por %p237, %p238
      %p240 = scmp.ne.s32.totalorder %s232, %s234
      %p241 = scmp.eq.s32.totalorder %s30, 1
      %p242 = por %p240, %p241
      %p243 = scmp.ne.s32.totalorder %s234, %s235
      %p244 = scmp.eq.s32.totalorder %s30, 0
      %p245 = por %p243, %p244
      %p246 = scmp.ne.s32.totalorder %s234, %s235
      %p247 = scmp.eq.s32.totalorder %s31, 1
      %p248 = por %p246, %p247
      %p250 = scmp.ne.s32.totalorder %s235, %s249
      %p251 = scmp.eq.s32.totalorder %s31, 0
      %p252 = por %p250, %p251
      %s254 = sadd.s32 %s253, 1
      %p257 = scmp.eq.s32.totalorder %s25, 1
      %p258 = scmp.ne.s32.totalorder %s253, %s255
      %p259 = scmp.eq.s32.totalorder %s25, 0
      %p260 = por %p258, %p259
      %p261 = scmp.ne.s32.totalorder %s253, %s255
      %p262 = scmp.eq.s32.totalorder %s30, 1
      %p263 = por %p261, %p262
      %p264 = scmp.ne.s32.totalorder %s255, %s256
      %p265 = scmp.eq.s32.totalorder %s30, 0
      %p266 = por %p264, %p265
      %p267 = scmp.ne.s32.totalorder %s255, %s256
      %p268 = scmp.eq.s32.totalorder %s31, 1
      %p269 = por %p267, %p268
      %p271 = scmp.ne.s32.totalorder %s256, %s270
      %p272 = scmp.eq.s32.totalorder %s31, 0
      %p273 = por %p271, %p272
      %s275 = sadd.s32 %s274, 1
      %p278 = scmp.eq.s32.totalorder %s25, 1
      %p279 = scmp.ne.s32.totalorder %s274, %s276
      %p280 = scmp.eq.s32.totalorder %s25, 0
      %p281 = por %p279, %p280
      %p282 = scmp.ne.s32.totalorder %s274, %s276
      %p283 = scmp.eq.s32.totalorder %s30, 1
      %p284 = por %p282, %p283
      %p285 = scmp.ne.s32.totalorder %s276, %s277
      %p286 = scmp.eq.s32.totalorder %s30, 0
      %p287 = por %p285, %p286
      %p288 = scmp.ne.s32.totalorder %s276, %s277
      %p289 = scmp.eq.s32.totalorder %s31, 1
      %p290 = por %p288, %p289
      %p292 = scmp.ne.s32.totalorder %s277, %s291
      %p293 = scmp.eq.s32.totalorder %s31, 0
      %p294 = por %p292, %p293
      %s296 = sadd.s32 %s295, 1
      %p299 = scmp.eq.s32.totalorder %s25, 1
      %p300 = scmp.ne.s32.totalorder %s295, %s297
      %p301 = scmp.eq.s32.totalorder %s25, 0
      %p302 = por %p300, %p301
      %p303 = scmp.ne.s32.totalorder %s295, %s297
      %p304 = scmp.eq.s32.totalorder %s30, 1
      %p305 = por %p303, %p304
      %p306 = scmp.ne.s32.totalorder %s297, %s298
      %p307 = scmp.eq.s32.totalorder %s30, 0
      %p308 = por %p306, %p307
      %p309 = scmp.ne.s32.totalorder %s297, %s298
      %p310 = scmp.eq.s32.totalorder %s31, 1
      %p311 = por %p309, %p310
      %p313 = scmp.ne.s32.totalorder %s298, %s312
      %p314 = scmp.eq.s32.totalorder %s31, 0
      %p315 = por %p313, %p314
      %s317 = sadd.s32 %s316, 1
      %p320 = scmp.eq.s32.totalorder %s25, 1
      %p321 = scmp.ne.s32.totalorder %s316, %s318
      %p322 = scmp.eq.s32.totalorder %s25, 0
      %p323 = por %p321, %p322
      %p324 = scmp.ne.s32.totalorder %s316, %s318
      %p325 = scmp.eq.s32.totalorder %s30, 1
      %p326 = por %p324, %p325
      %p327 = scmp.ne.s32.totalorder %s318, %s319
      %p328 = scmp.eq.s32.totalorder %s30, 0
      %p329 = por %p327, %p328
      %p330 = scmp.ne.s32.totalorder %s318, %s319
      %p331 = scmp.eq.s32.totalorder %s31, 1
      %p332 = por %p330, %p331
      %p334 = scmp.ne.s32.totalorder %s319, %s333
      %p335 = scmp.eq.s32.totalorder %s31, 0
      %p336 = por %p334, %p335
      %s338 = sadd.s32 %s337, 1
      %p341 = scmp.eq.s32.totalorder %s25, 1
      %p342 = scmp.ne.s32.totalorder %s337, %s339
      %p343 = scmp.eq.s32.totalorder %s25, 0
      %p344 = por %p342, %p343
      %p345 = scmp.ne.s32.totalorder %s337, %s339
      %p346 = scmp.eq.s32.totalorder %s30, 1
      %p347 = por %p345, %p346
      %p348 = scmp.ne.s32.totalorder %s339, %s340
      %p349 = scmp.eq.s32.totalorder %s30, 0
      %p350 = por %p348, %p349
      %p351 = scmp.ne.s32.totalorder %s339, %s340
      %p352 = scmp.eq.s32.totalorder %s31, 1
      %p353 = por %p351, %p352
      %p355 = scmp.ne.s32.totalorder %s340, %s354
      %p356 = scmp.eq.s32.totalorder %s31, 0
      %p357 = por %p355, %p356
      %s359 = sadd.s32 %s358, 1
      %p362 = scmp.eq.s32.totalorder %s25, 1
      %p363 = scmp.ne.s32.totalorder %s358, %s360
      %p364 = scmp.eq.s32.totalorder %s25, 0
      %p365 = por %p363, %p364
      %p366 = scmp.ne.s32.totalorder %s358, %s360
      %p367 = scmp.eq.s32.totalorder %s30, 1
      %p368 = por %p366, %p367
      %p369 = scmp.ne.s32.totalorder %s360, %s361
      %p370 = scmp.eq.s32.totalorder %s30, 0
      %p371 = por %p369, %p370
      %p372 = scmp.ne.s32.totalorder %s360, %s361
      %p373 = scmp.eq.s32.totalorder %s31, 1
      %p374 = por %p372, %p373
      %p376 = scmp.ne.s32.totalorder %s361, %s375
      %p377 = scmp.eq.s32.totalorder %s31, 0
      %p378 = por %p376, %p377
      %s379 = ssub.s32 %s25, %s32
      %p380 = scmp.eq.s32.totalorder %s379, 0
      %s382 = sadd.s32 %s381, 1
      %s383 = scalar_select %p380, %s381, %s382
      %p386 = pneg %p380
      %p387 = scmp.eq.s32.totalorder %s25, 1
      %p388 = por %p386, %p387
      %p389 = scmp.ne.s32.totalorder %s381, %s384
      %p390 = scmp.eq.s32.totalorder %s25, 0
      %p391 = por %p389, %p390
      %p392 = scmp.ne.s32.totalorder %s381, %s384
      %p393 = scmp.eq.s32.totalorder %s30, 1
      %p394 = por %p392, %p393
      %p395 = scmp.ne.s32.totalorder %s384, %s385
      %p396 = scmp.eq.s32.totalorder %s30, 0
      %p397 = por %p395, %p396
      %p398 = scmp.ne.s32.totalorder %s384, %s385
      %p399 = scmp.eq.s32.totalorder %s31, 1
      %p400 = por %p398, %p399
      %p402 = scmp.ne.s32.totalorder %s385, %s401
      %p403 = scmp.eq.s32.totalorder %s31, 0
      %p404 = por %p402, %p403
      %p405 = scmp.le.s32.totalorder 1, %s25
      %p406 = scmp.lt.s32.totalorder %s25, 3
      %p407 = pnand %p405, %p406
      %p408 = pneg %p407
      // Predicated region
      $region9: #{tpu_custom_call.1} parent=5 // pred_check
        _
      $region10: #{tpu_custom_call.1} parent=5 // pred_check_branch
        %410 = sbr.rel (%p407) target = $region12
      $region11: #{tpu_custom_call.1} parent=5 // pred_region
        %s411 = ssub.s32 %s25, 1
        // Predicated region
        $region13: #{tpu_custom_call.1} parent=11 // pred_check
          %p412 = pneg %p98
        $region14: #{tpu_custom_call.1} parent=11 // pred_check_branch
          %414 = sbr.rel (%p412) target = $region16
        $region15: #{tpu_custom_call.1} parent=11 // pred_region
          _
        $region16: #{tpu_custom_call.1} parent=11 // pred_fallthru
          _
        // Predicated region
        $region17: #{tpu_custom_call.1} parent=11 // pred_check
          %p415 = pneg %p119
        $region18: #{tpu_custom_call.1} parent=11 // pred_check_branch
          %417 = sbr.rel (%p415) target = $region20
        $region19: #{tpu_custom_call.1} parent=11 // pred_region
          _
        $region20: #{tpu_custom_call.1} parent=11 // pred_fallthru
          _
        // Predicated region
        $region21: #{tpu_custom_call.1} parent=11 // pred_check
          %p418 = pneg %p140
        $region22: #{tpu_custom_call.1} parent=11 // pred_check_branch
          %420 = sbr.rel (%p418) target = $region24
        $region23: #{tpu_custom_call.1} parent=11 // pred_region
          _
        $region24: #{tpu_custom_call.1} parent=11 // pred_fallthru
          _
        // Predicated region
        $region25: #{tpu_custom_call.1} parent=11 // pred_check
          %p421 = pneg %p161
        $region26: #{tpu_custom_call.1} parent=11 // pred_check_branch
          %423 = sbr.rel (%p421) target = $region28
        $region27: #{tpu_custom_call.1} parent=11 // pred_region
          _
        $region28: #{tpu_custom_call.1} parent=11 // pred_fallthru
          _
        // Predicated region
        $region29: #{tpu_custom_call.1} parent=11 // pred_check
          %p424 = pneg %p182
        $region30: #{tpu_custom_call.1} parent=11 // pred_check_branch
          %426 = sbr.rel (%p424) target = $region32
        $region31: #{tpu_custom_call.1} parent=11 // pred_region
          _
        $region32: #{tpu_custom_call.1} parent=11 // pred_fallthru
          _
        // Predicated region
        $region33: #{tpu_custom_call.1} parent=11 // pred_check
          %p427 = pneg %p203
        $region34: #{tpu_custom_call.1} parent=11 // pred_check_branch
          %429 = sbr.rel (%p427) target = $region36
        $region35: #{tpu_custom_call.1} parent=11 // pred_region
          _
        $region36: #{tpu_custom_call.1} parent=11 // pred_fallthru
          _
        // Predicated region
        $region37: #{tpu_custom_call.1} parent=11 // pred_check
          %p430 = pneg %p224
        $region38: #{tpu_custom_call.1} parent=11 // pred_check_branch
          %432 = sbr.rel (%p430) target = $region40
        $region39: #{tpu_custom_call.1} parent=11 // pred_region
          _
        $region40: #{tpu_custom_call.1} parent=11 // pred_fallthru
          _
        // Predicated region
        $region41: #{tpu_custom_call.1} parent=11 // pred_check
          %p433 = pneg %p245
        $region42: #{tpu_custom_call.1} parent=11 // pred_check_branch
          %435 = sbr.rel (%p433) target = $region44
        $region43: #{tpu_custom_call.1} parent=11 // pred_region
          _
        $region44: #{tpu_custom_call.1} parent=11 // pred_fallthru
          _
        // Predicated region
        $region45: #{tpu_custom_call.1} parent=11 // pred_check
          %p436 = pneg %p266
        $region46: #{tpu_custom_call.1} parent=11 // pred_check_branch
          %438 = sbr.rel (%p436) target = $region48
        $region47: #{tpu_custom_call.1} parent=11 // pred_region
          _
        $region48: #{tpu_custom_call.1} parent=11 // pred_fallthru
          _
        // Predicated region
        $region49: #{tpu_custom_call.1} parent=11 // pred_check
          %p439 = pneg %p287
        $region50: #{tpu_custom_call.1} parent=11 // pred_check_branch
          %441 = sbr.rel (%p439) target = $region52
        $region51: #{tpu_custom_call.1} parent=11 // pred_region
          _
        $region52: #{tpu_custom_call.1} parent=11 // pred_fallthru
          _
        // Predicated region
        $region53: #{tpu_custom_call.1} parent=11 // pred_check
          %p442 = pneg %p308
        $region54: #{tpu_custom_call.1} parent=11 // pred_check_branch
          %444 = sbr.rel (%p442) target = $region56
        $region55: #{tpu_custom_call.1} parent=11 // pred_region
          _
        $region56: #{tpu_custom_call.1} parent=11 // pred_fallthru
          _
        // Predicated region
        $region57: #{tpu_custom_call.1} parent=11 // pred_check
          %p445 = pneg %p329
        $region58: #{tpu_custom_call.1} parent=11 // pred_check_branch
          %447 = sbr.rel (%p445) target = $region60
        $region59: #{tpu_custom_call.1} parent=11 // pred_region
          _
        $region60: #{tpu_custom_call.1} parent=11 // pred_fallthru
          _
        // Predicated region
        $region61: #{tpu_custom_call.1} parent=11 // pred_check
          %p448 = pneg %p350
        $region62: #{tpu_custom_call.1} parent=11 // pred_check_branch
          %450 = sbr.rel (%p448) target = $region64
        $region63: #{tpu_custom_call.1} parent=11 // pred_region
          _
        $region64: #{tpu_custom_call.1} parent=11 // pred_fallthru
          _
        // Predicated region
        $region65: #{tpu_custom_call.1} parent=11 // pred_check
          %p451 = pneg %p371
        $region66: #{tpu_custom_call.1} parent=11 // pred_check_branch
          %453 = sbr.rel (%p451) target = $region68
        $region67: #{tpu_custom_call.1} parent=11 // pred_region
          _
        $region68: #{tpu_custom_call.1} parent=11 // pred_fallthru
          _
      $region12: #{tpu_custom_call.1} parent=5 // pred_fallthru
        _
      %p454 = scmp.lt.s32.totalorder %s25, 2
      // Predicated region
      $region69: #{tpu_custom_call.1} parent=5 // pred_check
        %p455 = pneg %p454
      $region70: #{tpu_custom_call.1} parent=5 // pred_check_branch
        %457 = sbr.rel (%p455) target = $region72
      $region71: #{tpu_custom_call.1} parent=5 // pred_region
        // Predicated region
        $region73: #{tpu_custom_call.1} parent=71 // pred_check
          %p458 = pneg %p45
        $region74: #{tpu_custom_call.1} parent=71 // pred_check_branch
          %460 = sbr.rel (%p458) target = $region76
        $region75: #{tpu_custom_call.1} parent=71 // pred_region
          %p461 = scmp.lt.s32.totalorder %s25, 1
          %s462 = scalar_select %p461, %s25, 1
          %s463 = smul.addr %s462, 8
          %s464 = scalar_lea.vmem %s0, %s463
        $region76: #{tpu_custom_call.1} parent=71 // pred_fallthru
          _
        // Predicated region
        $region77: #{tpu_custom_call.1} parent=71 // pred_check
          %p465 = pneg %p71
        $region78: #{tpu_custom_call.1} parent=71 // pred_check_branch
          %467 = sbr.rel (%p465) target = $region80
        $region79: #{tpu_custom_call.1} parent=71 // pred_region
          %p468 = scmp.lt.s32.totalorder %s25, 1
          %s469 = scalar_select %p468, %s25, 1
          %s470 = scalar_lea.vmem %s1, %s469
        $region80: #{tpu_custom_call.1} parent=71 // pred_fallthru
          _
      $region72: #{tpu_custom_call.1} parent=5 // pred_fallthru
        _
      %p471 = scmp.le.s32.totalorder 1, %s25
      %p472 = scmp.lt.s32.totalorder %s25, 3
      %p473 = pnand %p471, %p472
      %p474 = pneg %p473
      // Predicated region
      $region81: #{tpu_custom_call.1} parent=5 // pred_check
        _
      $region82: #{tpu_custom_call.1} parent=5 // pred_check_branch
        %476 = sbr.rel (%p473) target = $region84
      $region83: #{tpu_custom_call.1} parent=5 // pred_region
        %s477 = ssub.s32 %s25, 1
        %p478 = scmp.lt.s32.totalorder %s30, 1
        %s479 = scalar_select %p478, %s30, 1
        %s480 = smul.addr %s479, 8
        %s481 = scalar_lea.vmem %s0, %s480
        %p482 = pneg %p51
        %p483 = pneg %p48
        %p484 = scmp.lt.s32.totalorder %s30, 1
        %s485 = scalar_select %p484, %s30, 1
        %s486 = scalar_lea.vmem %s1, %s485
        %p487 = pneg %p77
        %p488 = pneg %p74
        %p489 = pneg %p98
        %p490 = pneg %p95
        %p491 = pneg %p119
        %p492 = pneg %p116
        %p493 = pneg %p140
        %p494 = pneg %p137
        %p495 = pneg %p161
        %p496 = pneg %p158
        %p497 = pneg %p182
        %p498 = pneg %p179
        %p499 = pneg %p203
        %p500 = pneg %p200
        %p501 = pneg %p224
        %p502 = pneg %p221
        %p503 = pneg %p245
        %p504 = pneg %p242
        %p505 = pneg %p266
        %p506 = pneg %p263
        %p507 = pneg %p287
        %p508 = pneg %p284
        %p509 = pneg %p308
        %p510 = pneg %p305
        %p511 = pneg %p329
        %p512 = pneg %p326
        %p513 = pneg %p350
        %p514 = pneg %p347
        %p515 = pneg %p371
        %p516 = pneg %p368
        %p517 = pneg %p397
        %p518 = pneg %p394
        %s519 = sand.u32 %s384, 1
        %s520 = scalar_lea.sflag [#allocation7], %s519
        %s521 = sand.u32 %s384, 1
        %s522 = smul.addr %s521, 8
        %s523 = scalar_lea.vmem [#allocation6], %s522
        %p524 = scmp.lt.s32.totalorder %s30, 1
        %s525 = scalar_select %p524, %s30, 1
        %s526 = smul.addr %s525, 8
        %s527 = scalar_lea.vmem %s0, %s526
        %p528 = scmp.lt.s32.totalorder %s30, 1
        %s529 = scalar_select %p528, %s30, 1
        %s530 = scalar_lea.vmem %s1, %s529
        %v532 = vld [vmem:[%s527] sm:$0xff]
        %v533 = vld [vmem:[%s2] sm:$0x1]
        %v534 = vld [vmem:[%s3] sm:$0x1]
        %vm535 = vcmask 261120
        %v536 = vsel %vm535, %v532, 0.0
        %537 = vadd.xlane.f32.xlu0 %v536
        %v538 = vpop.xlane.xlu0 %537
        %v539 = vrcp.pop 32.0
        %v540 = vmul.f32 %v538, %v539
        %v541 = vsub.f32 %v532, %v540
        %v542 = vmul.f32 %v541, %v541
        %v543 = vsel %vm535, %v542, 0.0
        %544 = vadd.xlane.f32.xlu0 %v543
        %v545 = vpop.xlane.xlu0 %544
        %v546 = vmul.f32 %v545, %v539
        %v547 = vadd.f32 %v546, 1e-05
        %v548 = vrsqrt.pop %v547
        %v549 = vmul.f32 %v541, %v548
        %v551 = vlaneseq
        %v552 = vshrl.u32 %v551, 7
        %v553 = vsub.s32 0, %v552
        %v554 = vrot.slane %v533, %v553
        %v556 = vmul.f32 %v549, %v554
        %v558 = vlaneseq
        %v559 = vshrl.u32 %v558, 7
        %v560 = vsub.s32 0, %v559
        %v561 = vrot.slane %v534, %v560
        %v563 = vadd.f32 %v556, %v561
        %v564 = vld [vmem:[%s530] sm:$0x1]
        %vm565 = vcmp.gt.f32.partialorder %v564, 0.0
        %v566 = vsel %vm565, 0.0, -1e+30
        %v567 = vpack.c.bf16 %v563, %v563
        %v568 = vld [vmem:[%s4] sm:$0xf]
        %v569 = vld [vmem:[%s4 + $0x4] sm:$0xf]
        %v570 = vld [vmem:[%s4 + $0x8] sm:$0xf]
        %v571 = vld [vmem:[%s4 + $0xc] sm:$0xf]
        %v572 = vld [vmem:[%s5] sm:$0x1]
        %v574 = vlaneseq
        %v575 = vshrl.u32 %v574, 7
        %v576 = vsub.s32 0, %v575
        %v577 = vrot.slane %v572, %v576
        %v583 = vunpack.c.l.b16 %v568
        %v584 = vunpack.c.l.b16 %v569
        %v585 = vunpack.c.l.b16 %v570
        %v586 = vunpack.c.l.b16 %v571
        %v587 = vpack.c.b16 %v584, %v583
        %v588 = vpack.c.b16 %v586, %v585
        %v592 = vsel %vm535, %v567, 0
        %594 = vmatprep.subr.bf16.mxu0 0
        %595 = vmatpush1.bf16.msra.mxu0 0
        %596 = vmatprep.subr.bf16.mxu0 0
        %597 = vmatpush1.bf16.msra.mxu0 0
        %598 = vmatprep.subr.bf16.mxu0 0
        %599 = vmatpush1.bf16.msra.mxu0 0
        %600 = vmatprep.subr.bf16.mxu0 0
        %601 = vmatpush1.bf16.msra.mxu0 0
        %602 = vmatprep.subr.bf16.mxu0 0
        %603 = vmatpush1.bf16.msra.mxu0 0
        %604 = vmatprep.subr.bf16.mxu0 0
        %605 = vmatpush1.bf16.msra.mxu0 0
        %606 = vmatprep.subr.bf16.mxu0 0
        %607 = vmatpush1.bf16.msra.mxu0 %v588
        %608 = vmatprep.subr.bf16.mxu0 0
        %609 = vmatpush1.bf16.msra.mxu0 %v587
        %610 = vmatprep.subr.bf16.mxu0 0
        %611 = vmatpush2.bf16.msra.mxu0 0
        %612 = vmatprep.subr.bf16.mxu0 0
        %613 = vmatpush2.bf16.msra.mxu0 0
        %614 = vmatprep.subr.bf16.mxu0 0
        %615 = vmatpush2.bf16.msra.mxu0 0
        %616 = vmatprep.subr.bf16.mxu0 0
        %617 = vmatpush2.bf16.msra.mxu0 0
        %618 = vmatprep.subr.bf16.mxu0 0
        %619 = vmatpush2.bf16.msra.mxu0 0
        %620 = vmatprep.subr.bf16.mxu0 0
        %621 = vmatpush2.bf16.msra.mxu0 0
        %622 = vmatprep.subr.bf16.mxu0 0
        %623 = vmatpush2.bf16.msra.mxu0 0
        %624 = vmatprep.subr.bf16.mxu0 0
        %625 = vmatpush2.bf16.msra.mxu0 0
        %626 = vmatprep.mubr.bf16.mxu0 0
        %627 = vmatmul.mubr.bf16.gmra.mxu0 %v592
        %v628 = vpop.f32.mrf.mxu0
        %v629 = vadd.f32 %v577, %v628
        %v630 = vpop.f32.mrf.mxu0
        %v631 = vpop.f32.mrf.mxu0
        %v632 = vpop.f32.mrf.mxu0
        %633 = vdwg.mxu0
        %v634 = vmul.f32 %v629, 0.35355338
        %v635 = vpack.c.bf16 %v634, %v634
        %vm636 = vcmask 60416
        %637 = vst.msk [vmem:[#allocation2] sm:$0xf] %vm636, %v635
        %v638 = vpack.c.bf16 %v629, %v629
        %v640 = vunpack.c.l.b16 %v638
        %v641 = vpack.c.b16 %v640, %v640
        %642 = vrot.lane.b32.xlu0 %v641, 96
        %v643 = vpop.permute.xlu0 %642
        %645 = vst.msk [vmem:[#allocation3] sm:$0xf] %vm636, %v643
        %646 = vrot.lane.b32.xlu0 %v641, 64
        %v647 = vpop.permute.xlu0 %646
        %649 = vst.msk [vmem:[#allocation4] sm:$0xf] %vm636, %v647
        %v651 = vunpack.c.l.b16 %v635
        %v652 = vpack.c.b16 %v651, %v651
        %653 = vrot.lane.b32.xlu0 %v652, 120
        %v654 = vpop.permute.xlu0 %653
        %s656 = scalar_lea.vmem [#allocation2], 4
        %657 = vst.msk [vmem:[%s656] sm:$0xf] %vm636, %v654
        %658 = vrot.lane.b32.xlu0 %v641, 88
        %v659 = vpop.permute.xlu0 %658
        %s661 = scalar_lea.vmem [#allocation3], 4
        %662 = vst.msk [vmem:[%s661] sm:$0xf] %vm636, %v659
        %663 = vrot.lane.b32.xlu0 %v641, 56
        %v664 = vpop.permute.xlu0 %663
        %s666 = scalar_lea.vmem [#allocation4], 4
        %667 = vst.msk [vmem:[%s666] sm:$0xf] %vm636, %v664
        %668 = vrot.lane.b32.xlu0 %v652, 112
        %v669 = vpop.permute.xlu0 %668
        %s671 = scalar_lea.vmem [#allocation2], 8
        %672 = vst.msk [vmem:[%s671] sm:$0xf] %vm636, %v669
        %673 = vrot.lane.b32.xlu0 %v641, 80
        %v674 = vpop.permute.xlu0 %673
        %s676 = scalar_lea.vmem [#allocation3], 8
        %677 = vst.msk [vmem:[%s676] sm:$0xf] %vm636, %v674
        %678 = vrot.lane.b32.xlu0 %v641, 48
        %v679 = vpop.permute.xlu0 %678
        %s681 = scalar_lea.vmem [#allocation4], 8
        %682 = vst.msk [vmem:[%s681] sm:$0xf] %vm636, %v679
        %683 = vrot.lane.b32.xlu0 %v652, 104
        %v684 = vpop.permute.xlu0 %683
        %s686 = scalar_lea.vmem [#allocation2], 12
        %687 = vst.msk [vmem:[%s686] sm:$0xf] %vm636, %v684
        %688 = vrot.lane.b32.xlu0 %v641, 72
        %v689 = vpop.permute.xlu0 %688
        %s691 = scalar_lea.vmem [#allocation3], 12
        %692 = vst.msk [vmem:[%s691] sm:$0xf] %vm636, %v689
        %693 = vrot.lane.b32.xlu0 %v641, 40
        %v694 = vpop.permute.xlu0 %693
        %s696 = scalar_lea.vmem [#allocation4], 12
        %697 = vst.msk [vmem:[%s696] sm:$0xf] %vm636, %v694
        loop: start=0, step=1, limit=4
        $region85: #{tpu_custom_call.1} parent=83 // loop_pre_header
          _
        $region86: #{tpu_custom_call.1} parent=83 // loop_header
          %s699 = sphi 0, %s703
          %p700 = scmp.ge.s32.totalorder %s699, 4
        $region87: #{tpu_custom_call.1} parent=83 // loop_header_branch
          %702 = sbr.rel (%p700) target = $region91
        $region88: #{tpu_custom_call.1} parent=83 // loop_body
          %s704 = smul.addr %s699, 4
          %s705 = scalar_lea.vmem [#allocation2], %s704
          %v706 = vld [vmem:[%s705] sm:$0xf]
          %s707 = smul.addr %s699, 4
          %s708 = scalar_lea.vmem [#allocation3], %s707
          %v709 = vld [vmem:[%s708] sm:$0xf]
          %s710 = smul.addr %s699, 4
          %s711 = scalar_lea.vmem [#allocation4], %s710
          %v712 = vld [vmem:[%s711] sm:$0xf]
          %v714 = vlaneseq
          %v715 = vshrl.u32 %v714, 7
          %v716 = vsub.s32 0, %v715
          %v717 = vrot.slane %v566, %v716
          %vm719 = vcmask 64512
          %v721 = vsel %vm719, %v706, 0
          %v724 = vsel %vm719, %v709, 0
          %726 = vmatprep.subr.bf16.mxu0 0
          %727 = vmatpush1.bf16.xpose.msra.mxu0 0
          %728 = vmatprep.subr.bf16.mxu0 0
          %729 = vmatpush1.bf16.xpose.msra.mxu0 0
          %730 = vmatprep.subr.bf16.mxu0 0
          %731 = vmatpush1.bf16.xpose.msra.mxu0 0
          %732 = vmatprep.subr.bf16.mxu0 0
          %733 = vmatpush1.bf16.xpose.msra.mxu0 0
          %734 = vmatprep.subr.bf16.mxu0 0
          %735 = vmatpush1.bf16.xpose.msra.mxu0 0
          %736 = vmatprep.subr.bf16.mxu0 0
          %737 = vmatpush1.bf16.xpose.msra.mxu0 0
          %738 = vmatprep.subr.bf16.mxu0 0
          %739 = vmatpush1.bf16.xpose.msra.mxu0 0
          %740 = vmatprep.subr.bf16.mxu0 0
          %741 = vmatpush1.bf16.xpose.msra.mxu0 %v724
          %742 = vmatprep.subr.bf16.mxu0 0
          %743 = vmatpush2.bf16.xpose.msra.mxu0 0
          %744 = vmatprep.subr.bf16.mxu0 0
          %745 = vmatpush2.bf16.xpose.msra.mxu0 0
          %746 = vmatprep.subr.bf16.mxu0 0
          %747 = vmatpush2.bf16.xpose.msra.mxu0 0
          %748 = vmatprep.subr.bf16.mxu0 0
          %749 = vmatpush2.bf16.xpose.msra.mxu0 0
          %750 = vmatprep.subr.bf16.mxu0 0
          %751 = vmatpush2.bf16.xpose.msra.mxu0 0
          %752 = vmatprep.subr.bf16.mxu0 0
          %753 = vmatpush2.bf16.xpose.msra.mxu0 0
          %754 = vmatprep.subr.bf16.mxu0 0
          %755 = vmatpush2.bf16.xpose.msra.mxu0 0
          %756 = vmatprep.subr.bf16.mxu0 0
          %757 = vmatpush2.bf16.xpose.msra.mxu0 0
          %758 = vmatprep.mubr.bf16.mxu0 0
          %759 = vmatmul.mubr.bf16.gmra.mxu0 %v721
          %v760 = vpop.f32.mrf.mxu0
          %v761 = vadd.f32 %v717, %v760
          %v762 = vpop.f32.mrf.mxu0
          %v763 = vpop.f32.mrf.mxu0
          %v764 = vpop.f32.mrf.mxu0
          %765 = vdwg.mxu0
          %v766 = vsel %vm719, %v761, -inf
          %767 = vmax.xlane.f32.xlu0 %v766
          %v768 = vpop.xlane.xlu0 %767
          %v769 = vsub.f32 %v761, %v768
          %v770 = vmul.f32 %v769, 1.442695
          %v771 = vpow.pop %v770
          %v772 = vsel %vm719, %v771, 0.0
          %773 = vadd.xlane.f32.xlu0 %v772
          %v774 = vpop.xlane.xlu0 %773
          %v775 = vrcp.pop %v774
          %v776 = vmul.f32 %v771, %v775
          %v777 = vpack.c.bf16 %v776, %v776
          %v779 = vsel %vm719, %v777, 0
          %vm781 = vcmask 1043456
          %v783 = vsel %vm781, %v712, 0
          %785 = vmatprep.subr.bf16.mxu0 0
          %786 = vmatpush1.bf16.msra.mxu0 0
          %787 = vmatprep.subr.bf16.mxu0 0
          %788 = vmatpush1.bf16.msra.mxu0 0
          %789 = vmatprep.subr.bf16.mxu0 0
          %790 = vmatpush1.bf16.msra.mxu0 0
          %791 = vmatprep.subr.bf16.mxu0 0
          %792 = vmatpush1.bf16.msra.mxu0 0
          %793 = vmatprep.subr.bf16.mxu0 0
          %794 = vmatpush1.bf16.msra.mxu0 0
          %795 = vmatprep.subr.bf16.mxu0 0
          %796 = vmatpush1.bf16.msra.mxu0 0
          %797 = vmatprep.subr.bf16.mxu0 0
          %798 = vmatpush1.bf16.msra.mxu0 0
          %799 = vmatprep.subr.bf16.mxu0 0
          %800 = vmatpush1.bf16.msra.mxu0 %v783
          %801 = vmatprep.subr.bf16.mxu0 0
          %802 = vmatpush2.bf16.msra.mxu0 0
          %803 = vmatprep.subr.bf16.mxu0 0
          %804 = vmatpush2.bf16.msra.mxu0 0
          %805 = vmatprep.subr.bf16.mxu0 0
          %806 = vmatpush2.bf16.msra.mxu0 0
          %807 = vmatprep.subr.bf16.mxu0 0
          %808 = vmatpush2.bf16.msra.mxu0 0
          %809 = vmatprep.subr.bf16.mxu0 0
          %810 = vmatpush2.bf16.msra.mxu0 0
          %811 = vmatprep.subr.bf16.mxu0 0
          %812 = vmatpush2.bf16.msra.mxu0 0
          %813 = vmatprep.subr.bf16.mxu0 0
          %814 = vmatpush2.bf16.msra.mxu0 0
          %815 = vmatprep.subr.bf16.mxu0 0
          %816 = vmatpush2.bf16.msra.mxu0 0
          %817 = vmatprep.mubr.bf16.mxu0 0
          %818 = vmatmul.mubr.bf16.gmra.mxu0 %v779
          %v819 = vpop.f32.mrf.mxu0
          %v820 = vadd.f32 0.0, %v819
          %v821 = vpop.f32.mrf.mxu0
          %v822 = vpop.f32.mrf.mxu0
          %v823 = vpop.f32.mrf.mxu0
          %824 = vdwg.mxu0
          %v825 = vpack.c.bf16 %v820, %v820
          %s826 = smul.addr %s699, 4
          %s827 = scalar_lea.vmem [#allocation5], %s826
          %828 = vst.msk [vmem:[%s827] sm:$0xf] %vm636, %v825
        $region89: #{tpu_custom_call.1} parent=83 // loop_footer
          %s703 = sadd.s32 1, %s699
        $region90: #{tpu_custom_call.1} parent=83 // loop_footer_branch
          %698 = sbr.rel target = $region86
        $region91: #{tpu_custom_call.1} parent=83 // loop_exit
          _
        %v829 = vld [vmem:[#allocation5] sm:$0xf]
        %s830 = scalar_lea.vmem [#allocation5], 4
        %v831 = vld [vmem:[%s830] sm:$0xf]
        %s832 = scalar_lea.vmem [#allocation5], 8
        %v833 = vld [vmem:[%s832] sm:$0xf]
        %s834 = scalar_lea.vmem [#allocation5], 12
        %v835 = vld [vmem:[%s834] sm:$0xf]
        %v837 = vunpack.c.l.b16 %v831
        %v838 = vpack.c.b16 %v837, %v837
        %839 = vrot.lane.b32.xlu0 %v838, 8
        %v840 = vpop.permute.xlu0 %839
        %v842 = vunpack.c.l.b16 %v833
        %v843 = vpack.c.b16 %v842, %v842
        %844 = vrot.lane.b32.xlu0 %v843, 16
        %v845 = vpop.permute.xlu0 %844
        %v847 = vunpack.c.l.b16 %v835
        %v848 = vpack.c.b16 %v847, %v847
        %849 = vrot.lane.b32.xlu0 %v848, 24
        %v850 = vpop.permute.xlu0 %849
        %vm851 = vcmask 64512
        %v854 = vsel %vm851, %v829, %v840
        %vm855 = vcmask 130048
        %v857 = vsel %vm855, %v854, %v845
        %vm858 = vcmask 195584
        %v860 = vsel %vm858, %v857, %v850
        %v861 = vld [vmem:[%s6] sm:$0xf]
        %v862 = vld [vmem:[%s6 + $0x4] sm:$0xf]
        %v863 = vld [vmem:[%s6 + $0x8] sm:$0xf]
        %v864 = vld [vmem:[%s6 + $0xc] sm:$0xf]
        %v865 = vld [vmem:[%s7] sm:$0x1]
        %v867 = vlaneseq
        %v868 = vshrl.u32 %v867, 7
        %v869 = vsub.s32 0, %v868
        %v870 = vrot.slane %v865, %v869
        %v876 = vunpack.c.l.b16 %v861
        %v877 = vunpack.c.l.b16 %v862
        %v878 = vunpack.c.l.b16 %v863
        %v879 = vunpack.c.l.b16 %v864
        %v880 = vpack.c.b16 %v877, %v876
        %v881 = vpack.c.b16 %v879, %v878
        %v884 = vsel %vm535, %v860, 0
        %886 = vmatprep.subr.bf16.mxu0 0
        %887 = vmatpush1.bf16.msra.mxu0 0
        %888 = vmatprep.subr.bf16.mxu0 0
        %889 = vmatpush1.bf16.msra.mxu0 0
        %890 = vmatprep.subr.bf16.mxu0 0
        %891 = vmatpush1.bf16.msra.mxu0 0
        %892 = vmatprep.subr.bf16.mxu0 0
        %893 = vmatpush1.bf16.msra.mxu0 0
        %894 = vmatprep.subr.bf16.mxu0 0
        %895 = vmatpush1.bf16.msra.mxu0 0
        %896 = vmatprep.subr.bf16.mxu0 0
        %897 = vmatpush1.bf16.msra.mxu0 0
        %898 = vmatprep.subr.bf16.mxu0 0
        %899 = vmatpush1.bf16.msra.mxu0 %v881
        %900 = vmatprep.subr.bf16.mxu0 0
        %901 = vmatpush1.bf16.msra.mxu0 %v880
        %902 = vmatprep.subr.bf16.mxu0 0
        %903 = vmatpush2.bf16.msra.mxu0 0
        %904 = vmatprep.subr.bf16.mxu0 0
        %905 = vmatpush2.bf16.msra.mxu0 0
        %906 = vmatprep.subr.bf16.mxu0 0
        %907 = vmatpush2.bf16.msra.mxu0 0
        %908 = vmatprep.subr.bf16.mxu0 0
        %909 = vmatpush2.bf16.msra.mxu0 0
        %910 = vmatprep.subr.bf16.mxu0 0
        %911 = vmatpush2.bf16.msra.mxu0 0
        %912 = vmatprep.subr.bf16.mxu0 0
        %913 = vmatpush2.bf16.msra.mxu0 0
        %914 = vmatprep.subr.bf16.mxu0 0
        %915 = vmatpush2.bf16.msra.mxu0 0
        %916 = vmatprep.subr.bf16.mxu0 0
        %917 = vmatpush2.bf16.msra.mxu0 0
        %918 = vmatprep.mubr.bf16.mxu0 0
        %919 = vmatmul.mubr.bf16.gmra.mxu0 %v884
        %v920 = vpop.f32.mrf.mxu0
        %v921 = vadd.f32 %v870, %v920
        %v922 = vpop.f32.mrf.mxu0
        %v923 = vpop.f32.mrf.mxu0
        %v924 = vpop.f32.mrf.mxu0
        %925 = vdwg.mxu0
        %v926 = vadd.f32 %v563, %v921
        %v927 = vld [vmem:[%s8] sm:$0x1]
        %v928 = vld [vmem:[%s9] sm:$0x1]
        %v929 = vsel %vm535, %v926, 0.0
        %930 = vadd.xlane.f32.xlu0 %v929
        %v931 = vpop.xlane.xlu0 %930
        %v932 = vmul.f32 %v931, %v539
        %v933 = vsub.f32 %v926, %v932
        %v934 = vmul.f32 %v933, %v933
        %v935 = vsel %vm535, %v934, 0.0
        %936 = vadd.xlane.f32.xlu0 %v935
        %v937 = vpop.xlane.xlu0 %936
        %v938 = vmul.f32 %v937, %v539
        %v939 = vadd.f32 %v938, 1e-05
        %v940 = vrsqrt.pop %v939
        %v941 = vmul.f32 %v933, %v940
        %v943 = vlaneseq
        %v944 = vshrl.u32 %v943, 7
        %v945 = vsub.s32 0, %v944
        %v946 = vrot.slane %v927, %v945
        %v948 = vmul.f32 %v941, %v946
        %v950 = vlaneseq
        %v951 = vshrl.u32 %v950, 7
        %v952 = vsub.s32 0, %v951
        %v953 = vrot.slane %v928, %v952
        %v955 = vadd.f32 %v948, %v953
        %v956 = vpack.c.bf16 %v955, %v955
        %v957 = vld [vmem:[%s10] sm:$0xf]
        %v958 = vld [vmem:[%s10 + $0x4] sm:$0xf]
        %v959 = vld [vmem:[%s10 + $0x8] sm:$0xf]
        %v960 = vld [vmem:[%s10 + $0xc] sm:$0xf]
        %v961 = vld [vmem:[%s11] sm:$0x1]
        %v963 = vlaneseq
        %v964 = vshrl.u32 %v963, 7
        %v965 = vsub.s32 0, %v964
        %v966 = vrot.slane %v961, %v965
        %v972 = vunpack.c.l.b16 %v957
        %v973 = vunpack.c.l.b16 %v958
        %v974 = vunpack.c.l.b16 %v959
        %v975 = vunpack.c.l.b16 %v960
        %v976 = vpack.c.b16 %v973, %v972
        %v977 = vpack.c.b16 %v975, %v974
        %v981 = vsel %vm535, %v956, 0
        %983 = vmatprep.subr.bf16.mxu0 0
        %984 = vmatpush1.bf16.msra.mxu0 0
        %985 = vmatprep.subr.bf16.mxu0 0
        %986 = vmatpush1.bf16.msra.mxu0 0
        %987 = vmatprep.subr.bf16.mxu0 0
        %988 = vmatpush1.bf16.msra.mxu0 0
        %989 = vmatprep.subr.bf16.mxu0 0
        %990 = vmatpush1.bf16.msra.mxu0 0
        %991 = vmatprep.subr.bf16.mxu0 0
        %992 = vmatpush1.bf16.msra.mxu0 0
        %993 = vmatprep.subr.bf16.mxu0 0
        %994 = vmatpush1.bf16.msra.mxu0 0
        %995 = vmatprep.subr.bf16.mxu0 0
        %996 = vmatpush1.bf16.msra.mxu0 %v977
        %997 = vmatprep.subr.bf16.mxu0 0
        %998 = vmatpush1.bf16.msra.mxu0 %v976
        %999 = vmatprep.subr.bf16.mxu0 0
        %1000 = vmatpush2.bf16.msra.mxu0 0
        %1001 = vmatprep.subr.bf16.mxu0 0
        %1002 = vmatpush2.bf16.msra.mxu0 0
        %1003 = vmatprep.subr.bf16.mxu0 0
        %1004 = vmatpush2.bf16.msra.mxu0 0
        %1005 = vmatprep.subr.bf16.mxu0 0
        %1006 = vmatpush2.bf16.msra.mxu0 0
        %1007 = vmatprep.subr.bf16.mxu0 0
        %1008 = vmatpush2.bf16.msra.mxu0 0
        %1009 = vmatprep.subr.bf16.mxu0 0
        %1010 = vmatpush2.bf16.msra.mxu0 0
        %1011 = vmatprep.subr.bf16.mxu0 0
        %1012 = vmatpush2.bf16.msra.mxu0 0
        %1013 = vmatprep.subr.bf16.mxu0 0
        %1014 = vmatpush2.bf16.msra.mxu0 0
        %1015 = vmatprep.mubr.bf16.mxu0 0
        %1016 = vmatmul.mubr.bf16.gmra.mxu0 %v981
        %v1017 = vpop.f32.mrf.mxu0
        %v1018 = vadd.f32 %v966, %v1017
        %v1019 = vpop.f32.mrf.mxu0
        %v1020 = vpop.f32.mrf.mxu0
        %v1021 = vpop.f32.mrf.mxu0
        %1022 = vdwg.mxu0
        %v1023 = vmul.f32 %v1018, 0.5
        %v1024 = vmul.f32 %v1018, 0.044715
        %v1025 = vmul.f32 %v1024, %v1018
        %v1026 = vmul.f32 %v1025, %v1018
        %v1027 = vadd.f32 %v1018, %v1026
        %v1028 = vmul.f32 %v1027, 0.7978846
        %v1029 = vtanh.pop %v1028
        %v1030 = vadd.f32 %v1029, 1.0
        %v1031 = vmul.f32 %v1023, %v1030
        %v1032 = vpack.c.bf16 %v1031, %v1031
        %v1033 = vld [vmem:[%s12] sm:$0xf]
        %v1034 = vld [vmem:[%s12 + $0x4] sm:$0xf]
        %v1035 = vld [vmem:[%s12 + $0x8] sm:$0xf]
        %v1036 = vld [vmem:[%s12 + $0xc] sm:$0xf]
        %v1037 = vld [vmem:[%s12 + $0x10] sm:$0xf]
        %v1038 = vld [vmem:[%s12 + $0x14] sm:$0xf]
        %v1039 = vld [vmem:[%s12 + $0x18] sm:$0xf]
        %v1040 = vld [vmem:[%s12 + $0x1c] sm:$0xf]
        %v1041 = vld [vmem:[%s12 + $0x20] sm:$0xf]
        %v1042 = vld [vmem:[%s12 + $0x24] sm:$0xf]
        %v1043 = vld [vmem:[%s12 + $0x28] sm:$0xf]
        %v1044 = vld [vmem:[%s12 + $0x2c] sm:$0xf]
        %v1045 = vld [vmem:[%s12 + $0x30] sm:$0xf]
        %v1046 = vld [vmem:[%s12 + $0x34] sm:$0xf]
        %v1047 = vld [vmem:[%s12 + $0x38] sm:$0xf]
        %v1048 = vld [vmem:[%s12 + $0x3c] sm:$0xf]
        %v1049 = vld [vmem:[%s13] sm:$0x1]
        %v1051 = vlaneseq
        %v1052 = vshrl.u32 %v1051, 7
        %v1053 = vsub.s32 0, %v1052
        %v1054 = vrot.slane %v1049, %v1053
        %v1072 = vunpack.c.l.b16 %v1033
        %v1073 = vunpack.c.l.b16 %v1034
        %v1074 = vunpack.c.l.b16 %v1035
        %v1075 = vunpack.c.l.b16 %v1036
        %v1076 = vunpack.c.l.b16 %v1037
        %v1077 = vunpack.c.l.b16 %v1038
        %v1078 = vunpack.c.l.b16 %v1039
        %v1079 = vunpack.c.l.b16 %v1040
        %v1080 = vunpack.c.l.b16 %v1041
        %v1081 = vunpack.c.l.b16 %v1042
        %v1082 = vunpack.c.l.b16 %v1043
        %v1083 = vunpack.c.l.b16 %v1044
        %v1084 = vunpack.c.l.b16 %v1045
        %v1085 = vunpack.c.l.b16 %v1046
        %v1086 = vunpack.c.l.b16 %v1047
        %v1087 = vunpack.c.l.b16 %v1048
        %v1088 = vpack.c.b16 %v1073, %v1072
        %v1089 = vpack.c.b16 %v1075, %v1074
        %v1090 = vpack.c.b16 %v1077, %v1076
        %v1091 = vpack.c.b16 %v1079, %v1078
        %v1092 = vpack.c.b16 %v1081, %v1080
        %v1093 = vpack.c.b16 %v1083, %v1082
        %v1094 = vpack.c.b16 %v1085, %v1084
        %v1095 = vpack.c.b16 %v1087, %v1086
        %1104 = vmatprep.subr.bf16.mxu0 0
        %1105 = vmatpush1.bf16.msra.mxu0 %v1095
        %1106 = vmatprep.subr.bf16.mxu0 0
        %1107 = vmatpush1.bf16.msra.mxu0 %v1094
        %1108 = vmatprep.subr.bf16.mxu0 0
        %1109 = vmatpush1.bf16.msra.mxu0 %v1093
        %1110 = vmatprep.subr.bf16.mxu0 0
        %1111 = vmatpush1.bf16.msra.mxu0 %v1092
        %1112 = vmatprep.subr.bf16.mxu0 0
        %1113 = vmatpush1.bf16.msra.mxu0 %v1091
        %1114 = vmatprep.subr.bf16.mxu0 0
        %1115 = vmatpush1.bf16.msra.mxu0 %v1090
        %1116 = vmatprep.subr.bf16.mxu0 0
        %1117 = vmatpush1.bf16.msra.mxu0 %v1089
        %1118 = vmatprep.subr.bf16.mxu0 0
        %1119 = vmatpush1.bf16.msra.mxu0 %v1088
        %1120 = vmatprep.subr.bf16.mxu0 0
        %1121 = vmatpush2.bf16.msra.mxu0 0
        %1122 = vmatprep.subr.bf16.mxu0 0
        %1123 = vmatpush2.bf16.msra.mxu0 0
        %1124 = vmatprep.subr.bf16.mxu0 0
        %1125 = vmatpush2.bf16.msra.mxu0 0
        %1126 = vmatprep.subr.bf16.mxu0 0
        %1127 = vmatpush2.bf16.msra.mxu0 0
        %1128 = vmatprep.subr.bf16.mxu0 0
        %1129 = vmatpush2.bf16.msra.mxu0 0
        %1130 = vmatprep.subr.bf16.mxu0 0
        %1131 = vmatpush2.bf16.msra.mxu0 0
        %1132 = vmatprep.subr.bf16.mxu0 0
        %1133 = vmatpush2.bf16.msra.mxu0 0
        %1134 = vmatprep.subr.bf16.mxu0 0
        %1135 = vmatpush2.bf16.msra.mxu0 0
        %1136 = vmatprep.mubr.bf16.mxu0 0
        %1137 = vmatmul.mubr.bf16.gmra.mxu0 %v1032
        %v1138 = vpop.f32.mrf.mxu0
        %v1139 = vadd.f32 %v1054, %v1138
        %v1140 = vpop.f32.mrf.mxu0
        %v1141 = vpop.f32.mrf.mxu0
        %v1142 = vpop.f32.mrf.mxu0
        %1143 = vdwg.mxu0
        %v1144 = vadd.f32 %v955, %v1139
        %v1145 = vld [vmem:[%s14] sm:$0x1]
        %v1146 = vld [vmem:[%s15] sm:$0x1]
        %v1147 = vsel %vm535, %v1144, 0.0
        %1148 = vadd.xlane.f32.xlu0 %v1147
        %v1149 = vpop.xlane.xlu0 %1148
        %v1150 = vmul.f32 %v1149, %v539
        %v1151 = vsub.f32 %v1144, %v1150
        %v1152 = vmul.f32 %v1151, %v1151
        %v1153 = vsel %vm535, %v1152, 0.0
        %1154 = vadd.xlane.f32.xlu0 %v1153
        %v1155 = vpop.xlane.xlu0 %1154
        %v1156 = vmul.f32 %v1155, %v539
        %v1157 = vadd.f32 %v1156, 1e-05
        %v1158 = vrsqrt.pop %v1157
        %v1159 = vmul.f32 %v1151, %v1158
        %v1161 = vlaneseq
        %v1162 = vshrl.u32 %v1161, 7
        %v1163 = vsub.s32 0, %v1162
        %v1164 = vrot.slane %v1145, %v1163
        %v1166 = vmul.f32 %v1159, %v1164
        %v1168 = vlaneseq
        %v1169 = vshrl.u32 %v1168, 7
        %v1170 = vsub.s32 0, %v1169
        %v1171 = vrot.slane %v1146, %v1170
        %v1173 = vadd.f32 %v1166, %v1171
        %1174 = vst.msk [vmem:[%s523] sm:$0xff] %vm535, %v1173
        %s1175 = sand.u32 %s384, 1
        %s1176 = scalar_lea.sflag [#allocation7], %s1175
        %s1177 = sand.u32 %s384, 1
        %s1178 = smul.addr %s1177, 8
        %s1179 = scalar_lea.vmem [#allocation6], %s1178
        // Predicated region
        $region92: #{tpu_custom_call.1} parent=83 // pred_check
          %p1180 = pneg %p394
        $region93: #{tpu_custom_call.1} parent=83 // pred_check_branch
          %1182 = sbr.rel (%p1180) target = $region95
        $region94: #{tpu_custom_call.1} parent=83 // pred_region
          %s1184 = ssub.s32 128, 128
          %1185 = vsyncadd %s1176, %s1184
          %s1186 = smul.addr %s30, 128
          %s1187 = scalar_lea.hbm %s16, %s1186
          %s1189 = sshll.u32 %s1179, 4
          %s1190 = int_to_ptr.vmem [resolvable:$true] %s1189
          %1192 = dma.vmem_to_hbm [thread:$0]  %s1190, 128, %s1187, %s1176
        $region95: #{tpu_custom_call.1} parent=83 // pred_fallthru
          _
      $region84: #{tpu_custom_call.1} parent=5 // pred_fallthru
        _
      %p1193 = scmp.le.s32.totalorder 2, %s25
      // Predicated region
      $region96: #{tpu_custom_call.1} parent=5 // pred_check
        %p1194 = pneg %p1193
      $region97: #{tpu_custom_call.1} parent=5 // pred_check_branch
        %1196 = sbr.rel (%p1194) target = $region99
      $region98: #{tpu_custom_call.1} parent=5 // pred_region
        %s1197 = ssub.s32 %s25, 2
        // Predicated region
        $region100: #{tpu_custom_call.1} parent=98 // pred_check
          %p1198 = pneg %p400
        $region101: #{tpu_custom_call.1} parent=98 // pred_check_branch
          %1200 = sbr.rel (%p1198) target = $region103
        $region102: #{tpu_custom_call.1} parent=98 // pred_region
          %s1201 = sand.u32 %s385, 1
          %s1202 = scalar_lea.sflag [#allocation7], %s1201
          %s1203 = sand.u32 %s385, 1
          %s1204 = smul.addr %s1203, 8
          %s1205 = scalar_lea.vmem [#allocation6], %s1204
          %1206 = dma.done %s1202, 128
        $region103: #{tpu_custom_call.1} parent=98 // pred_fallthru
          _
      $region99: #{tpu_custom_call.1} parent=5 // pred_fallthru
        _
    $region6: #{tpu_custom_call.1} parent=1 // loop_footer
      %s29 = sadd.s32 1, %s25
    $region7: #{tpu_custom_call.1} parent=1 // loop_footer_branch
      %24 = sbr.rel target = $region3
    $region8: #{tpu_custom_call.1} parent=1 // loop_exit
      _
    %1207 = vsyncpa [#allocation7], 1
    %s1208 = scalar_lea.sflag [#allocation7], 1
    %1209 = vsyncpa %s1208, 1

</llo_original>
